<compile_context>
chip_gen: v6e
topology: v6e:2x2x1
jax: 0.10.0
libtpu: 0.0.40
codegen_flags: <defaults>
</compile_context>

<pallas_src>
import functools

import jax
import jax.numpy as jnp
from jax import lax
from jax.experimental import pallas as pl
from jax.experimental.pallas import tpu as pltpu


# ------------------------------ fused kernel --------------------------------

def _fused_self_attn_kernel(x_ref, wqkv_ref, wo_ref, bo_ref, o_ref, *,
                            heads, head_dim, scale):
    """One batch element per grid step; QKV + attention + out-proj in VMEM."""
    inner = heads * head_dim

    x = x_ref[0]                                              # (S, D) bf16

    # Fused Q/K/V projection: one wide MXU matmul, f32 accumulate.
    qkv = jnp.dot(x, wqkv_ref[...],
                  preferred_element_type=jnp.float32)         # (S, 3*inner)

    q = qkv[:, 0:inner] * scale            # fold softmax scale into q
    k = qkv[:, inner:2 * inner]
    v = qkv[:, 2 * inner:3 * inner]

    qb = q.astype(jnp.bfloat16)
    kb = k.astype(jnp.bfloat16)
    vb = v.astype(jnp.bfloat16)

    head_outs = []
    for h in range(heads):                 # static unroll; heads is small
        lo = h * head_dim
        hi = lo + head_dim
        qh = qb[:, lo:hi]                  # (S, hd)
        kh = kb[:, lo:hi]                  # (S, hd)
        vh = vb[:, lo:hi]                  # (S, hd)

        # scores: contract last dims of both operands (no explicit k.T).
        s = lax.dot_general(qh, kh, (((1,), (1,)), ((), ())),
                            preferred_element_type=jnp.float32)   # (S, S)
        m = jnp.max(s, axis=-1, keepdims=True)
        p = jnp.exp(s - m)
        denom = jnp.sum(p, axis=-1, keepdims=True)
        p = p * pl.reciprocal(denom, approx=True)

        head_outs.append(
            jnp.dot(p.astype(jnp.bfloat16), vh,
                    preferred_element_type=jnp.float32))          # (S, hd)

    attn = jnp.concatenate(head_outs, axis=-1)                    # (S, inner)

    out = jnp.dot(attn.astype(jnp.bfloat16), wo_ref[...],
                  preferred_element_type=jnp.float32)             # (S, D)
    o_ref[0] = out + bo_ref[...]


# ----------------------------- module wrapper --------------------------------

def inflated_attention_forward(hidden_states, params, *, heads):
    """Self-attention path of InflatedAttention.forward (encoder_hidden_states=None)."""
    B, S, D = hidden_states.shape
    _ = (B % 6 == 0)   # is_cubemap: forward behavior is identical either way.

    wq, wk, wv = params["wq"], params["wk"], params["wv"]
    wo, bo = params["wo"], params["bo"]
    scale = params["scale"]
    inner = wq.shape[1]
    head_dim = inner // heads

    x = hidden_states.astype(jnp.bfloat16)
    wqkv = jnp.concatenate([wq, wk, wv], axis=1).astype(jnp.bfloat16)  # (D, 3*inner)
    wo_b = wo.astype(jnp.bfloat16)                                     # (inner, D)
    bo2 = bo.reshape(1, D).astype(jnp.float32)

    kernel = functools.partial(_fused_self_attn_kernel,
                               heads=heads, head_dim=head_dim, scale=scale)

    return pl.pallas_call(
        kernel,
        out_shape=jax.ShapeDtypeStruct((B, S, D), jnp.float32),
        grid=(B,),
        in_specs=[
            pl.BlockSpec((1, S, D), lambda b: (b, 0, 0)),        # x (per batch)
            pl.BlockSpec((D, 3 * inner), lambda b: (0, 0)),      # wqkv (resident)
            pl.BlockSpec((inner, D), lambda b: (0, 0)),          # wo   (resident)
            pl.BlockSpec((1, D), lambda b: (0, 0)),              # bias (resident)
        ],
        out_specs=pl.BlockSpec((1, S, D), lambda b: (b, 0, 0)),
        compiler_params=pltpu.CompilerParams(
            dimension_semantics=("parallel",)),
    )(x, wqkv, wo_b, bo2)


# ------------------------------ reference (JAX) ------------------------------

def reference_forward(hidden_states, params, *, heads):
    """jnp reference mirroring the kernel's bf16 matmul / f32 accumulate numerics."""
    B, S, D = hidden_states.shape
    wq, wk, wv = params["wq"], params["wk"], params["wv"]
    wo, bo = params["wo"], params["bo"]
    scale = params["scale"]
    inner = wq.shape[1]
    hd = inner // heads

    x = hidden_states.astype(jnp.bfloat16)
    q = jnp.einsum("bsd,de->bse", x, wq.astype(jnp.bfloat16),
                   preferred_element_type=jnp.float32) * scale
    k = jnp.einsum("bsd,de->bse", x, wk.astype(jnp.bfloat16),
                   preferred_element_type=jnp.float32)
    v = jnp.einsum("bsd,de->bse", x, wv.astype(jnp.bfloat16),
                   preferred_element_type=jnp.float32)

    def sh(t):
        return (t.reshape(B, S, heads, hd)
                 .transpose(0, 2, 1, 3)
                 .astype(jnp.bfloat16))

    qh, kh, vh = sh(q), sh(k), sh(v)
    s = jnp.einsum("bhqd,bhkd->bhqk", qh, kh,
                   preferred_element_type=jnp.float32)
    p = jax.nn.softmax(s, axis=-1)
    o = jnp.einsum("bhqk,bhkd->bhqd", p.astype(jnp.bfloat16), vh,
                   preferred_element_type=jnp.float32)
    o = o.transpose(0, 2, 1, 3).reshape(B, S, inner)
    out = jnp.einsum("bsi,io->bso", o.astype(jnp.bfloat16),
                     wo.astype(jnp.bfloat16),
                     preferred_element_type=jnp.float32) + bo
    return out


# ---------------------------------- main ------------------------------------

if __name__ == "__main__":
    # Cubemap batch (multiple of 6); head_dim chosen as a multiple of 128 so
    # in-kernel head slices / concat are lane-tile aligned and lane-dense.
    B, S, D = 6, 64, 512
    heads = 4
    head_dim = D // heads         # 128
    inner = heads * head_dim      # 512

    key = jax.random.PRNGKey(0)
    k0, k1, k2, k3, k4, k5 = jax.random.split(key, 6)

    params = {
        # Linear weights stored as (in, out) so forward is x @ W.
        "wq": jax.random.normal(k0, (D, inner), jnp.float32) * (D ** -0.5),
        "wk": jax.random.normal(k1, (D, inner), jnp.float32) * (D ** -0.5),
        "wv": jax.random.normal(k2, (D, inner), jnp.float32) * (D ** -0.5),
        "wo": jax.random.normal(k3, (inner, D), jnp.float32) * (inner ** -0.5),
        "bo": 0.01 * jax.random.normal(k4, (D,), jnp.float32),
        "scale": float(head_dim) ** -0.5,
    }

    hidden_states = jax.random.normal(k5, (B, S, D), jnp.float32)

    out = inflated_attention_forward(hidden_states, params, heads=heads)
    out = jax.block_until_ready(out)

    ref = reference_forward(hidden_states, params, heads=heads)
    assert out.shape == (B, S, D)
    max_err = float(jnp.max(jnp.abs(out - ref)))
    assert jnp.allclose(out, ref, atol=2e-2, rtol=2e-2), max_err

    print("KERNEL_OK")
</pallas_src>

<mosaic_0001>
module attributes {stable_mosaic.version = 11 : i64} {
  func.func @_fused_self_attn_kernel(%arg0: i32, %arg1: memref<1x64x512xbf16, #tpu.memory_space<vmem>>, %arg2: memref<512x1536xbf16, #tpu.memory_space<vmem>>, %arg3: memref<512x512xbf16, #tpu.memory_space<vmem>>, %arg4: memref<1x512xf32, #tpu.memory_space<vmem>>, %arg5: memref<1x64x512xf32, #tpu.memory_space<vmem>>) attributes {dimension_semantics = [#tpu.dimension_semantics<parallel>], iteration_bounds = array<i64: 6>, scalar_prefetch = 0 : i64, scratch_operands = 0 : i64, tpu.core_type = #tpu.core_type<tc>, window_params = [{transform_indices = @transform_0, window_bounds = array<i64: 1, 64, 512>}, {pipeline_mode = #tpu.pipeline_mode<synchronous>, transform_indices = @transform_1, window_bounds = array<i64: 512, 1536>}, {pipeline_mode = #tpu.pipeline_mode<synchronous>, transform_indices = @transform_2, window_bounds = array<i64: 512, 512>}, {pipeline_mode = #tpu.pipeline_mode<synchronous>, transform_indices = @transform_3, window_bounds = array<i64: 1, 512>}, {transform_indices = @transform_4, window_bounds = array<i64: 1, 64, 512>}]} {
    %c0 = arith.constant 0 : index
    %c0_0 = arith.constant 0 : index
    %c0_1 = arith.constant 0 : index
    %0 = vector.load %arg1[%c0, %c0_0, %c0_1] : memref<1x64x512xbf16, #tpu.memory_space<vmem>>, vector<1x64x512xbf16>
    %1 = vector.shape_cast %0 : vector<1x64x512xbf16> to vector<64x512xbf16>
    %c0_2 = arith.constant 0 : index
    %c0_3 = arith.constant 0 : index
    %2 = vector.load %arg2[%c0_2, %c0_3] : memref<512x1536xbf16, #tpu.memory_space<vmem>>, vector<512x1536xbf16>
    %cst = arith.constant dense<0.000000e+00> : vector<64x1536xf32>
    %3 = tpu.matmul %1, %2, %cst {dimension_numbers = #tpu.dot_dimension_numbers<[1], [0], [0], [1], [0, 0, 1, 1], [], []>} : vector<64x512xbf16>, vector<512x1536xbf16>, vector<64x1536xf32> -> vector<64x1536xf32>
    %4 = vector.extract_strided_slice %3 {offsets = [0, 0], sizes = [64, 512], strides = [1, 1]} : vector<64x1536xf32> to vector<64x512xf32>
    %cst_4 = arith.constant 0.0883883461 : f32
    %5 = vector.broadcast %cst_4 : f32 to vector<64x512xf32>
    %6 = arith.mulf %4, %5 : vector<64x512xf32>
    %7 = vector.extract_strided_slice %3 {offsets = [0, 512], sizes = [64, 512], strides = [1, 1]} : vector<64x1536xf32> to vector<64x512xf32>
    %8 = vector.extract_strided_slice %3 {offsets = [0, 1024], sizes = [64, 512], strides = [1, 1]} : vector<64x1536xf32> to vector<64x512xf32>
    %9 = arith.truncf %6 : vector<64x512xf32> to vector<64x512xbf16>
    %10 = arith.truncf %7 : vector<64x512xf32> to vector<64x512xbf16>
    %11 = arith.truncf %8 : vector<64x512xf32> to vector<64x512xbf16>
    %12 = vector.extract_strided_slice %9 {offsets = [0, 0], sizes = [64, 128], strides = [1, 1]} : vector<64x512xbf16> to vector<64x128xbf16>
    %13 = vector.extract_strided_slice %10 {offsets = [0, 0], sizes = [64, 128], strides = [1, 1]} : vector<64x512xbf16> to vector<64x128xbf16>
    %14 = vector.extract_strided_slice %11 {offsets = [0, 0], sizes = [64, 128], strides = [1, 1]} : vector<64x512xbf16> to vector<64x128xbf16>
    %cst_5 = arith.constant dense<0.000000e+00> : vector<64x64xf32>
    %15 = tpu.matmul %12, %13, %cst_5 {dimension_numbers = #tpu.dot_dimension_numbers<[1], [1], [0], [0], [0, 0, 1, 0], [], []>} : vector<64x128xbf16>, vector<64x128xbf16>, vector<64x64xf32> -> vector<64x64xf32>
    %cst_6 = arith.constant dense<0xFF800000> : vector<64xf32>
    %16 = vector.multi_reduction <maximumf>, %15, %cst_6 [1] : vector<64x64xf32> to vector<64xf32>
    %17 = vector.shape_cast %16 : vector<64xf32> to vector<64x1xf32>
    %18 = vector.broadcast %17 : vector<64x1xf32> to vector<64x64xf32>
    %19 = arith.subf %15, %18 : vector<64x64xf32>
    %20 = math.exp %19 : vector<64x64xf32>
    %cst_7 = arith.constant dense<0.000000e+00> : vector<64xf32>
    %21 = vector.multi_reduction <add>, %20, %cst_7 [1] : vector<64x64xf32> to vector<64xf32>
    %22 = vector.shape_cast %21 : vector<64xf32> to vector<64x1xf32>
    %23 = tpu.reciprocal %22 {approx = true} : vector<64x1xf32> -> vector<64x1xf32>
    %24 = vector.broadcast %23 : vector<64x1xf32> to vector<64x64xf32>
    %25 = arith.mulf %20, %24 : vector<64x64xf32>
    %26 = arith.truncf %25 : vector<64x64xf32> to vector<64x64xbf16>
    %cst_8 = arith.constant dense<0.000000e+00> : vector<64x128xf32>
    %27 = tpu.matmul %26, %14, %cst_8 {dimension_numbers = #tpu.dot_dimension_numbers<[1], [0], [0], [1], [0, 0, 1, 1], [], []>} : vector<64x64xbf16>, vector<64x128xbf16>, vector<64x128xf32> -> vector<64x128xf32>
    %28 = vector.extract_strided_slice %9 {offsets = [0, 128], sizes = [64, 128], strides = [1, 1]} : vector<64x512xbf16> to vector<64x128xbf16>
    %29 = vector.extract_strided_slice %10 {offsets = [0, 128], sizes = [64, 128], strides = [1, 1]} : vector<64x512xbf16> to vector<64x128xbf16>
    %30 = vector.extract_strided_slice %11 {offsets = [0, 128], sizes = [64, 128], strides = [1, 1]} : vector<64x512xbf16> to vector<64x128xbf16>
    %cst_9 = arith.constant dense<0.000000e+00> : vector<64x64xf32>
    %31 = tpu.matmul %28, %29, %cst_9 {dimension_numbers = #tpu.dot_dimension_numbers<[1], [1], [0], [0], [0, 0, 1, 0], [], []>} : vector<64x128xbf16>, vector<64x128xbf16>, vector<64x64xf32> -> vector<64x64xf32>
    %cst_10 = arith.constant dense<0xFF800000> : vector<64xf32>
    %32 = vector.multi_reduction <maximumf>, %31, %cst_10 [1] : vector<64x64xf32> to vector<64xf32>
    %33 = vector.shape_cast %32 : vector<64xf32> to vector<64x1xf32>
    %34 = vector.broadcast %33 : vector<64x1xf32> to vector<64x64xf32>
    %35 = arith.subf %31, %34 : vector<64x64xf32>
    %36 = math.exp %35 : vector<64x64xf32>
    %cst_11 = arith.constant dense<0.000000e+00> : vector<64xf32>
    %37 = vector.multi_reduction <add>, %36, %cst_11 [1] : vector<64x64xf32> to vector<64xf32>
    %38 = vector.shape_cast %37 : vector<64xf32> to vector<64x1xf32>
    %39 = tpu.reciprocal %38 {approx = true} : vector<64x1xf32> -> vector<64x1xf32>
    %40 = vector.broadcast %39 : vector<64x1xf32> to vector<64x64xf32>
    %41 = arith.mulf %36, %40 : vector<64x64xf32>
    %42 = arith.truncf %41 : vector<64x64xf32> to vector<64x64xbf16>
    %cst_12 = arith.constant dense<0.000000e+00> : vector<64x128xf32>
    %43 = tpu.matmul %42, %30, %cst_12 {dimension_numbers = #tpu.dot_dimension_numbers<[1], [0], [0], [1], [0, 0, 1, 1], [], []>} : vector<64x64xbf16>, vector<64x128xbf16>, vector<64x128xf32> -> vector<64x128xf32>
    %44 = vector.extract_strided_slice %9 {offsets = [0, 256], sizes = [64, 128], strides = [1, 1]} : vector<64x512xbf16> to vector<64x128xbf16>
    %45 = vector.extract_strided_slice %10 {offsets = [0, 256], sizes = [64, 128], strides = [1, 1]} : vector<64x512xbf16> to vector<64x128xbf16>
    %46 = vector.extract_strided_slice %11 {offsets = [0, 256], sizes = [64, 128], strides = [1, 1]} : vector<64x512xbf16> to vector<64x128xbf16>
    %cst_13 = arith.constant dense<0.000000e+00> : vector<64x64xf32>
    %47 = tpu.matmul %44, %45, %cst_13 {dimension_numbers = #tpu.dot_dimension_numbers<[1], [1], [0], [0], [0, 0, 1, 0], [], []>} : vector<64x128xbf16>, vector<64x128xbf16>, vector<64x64xf32> -> vector<64x64xf32>
    %cst_14 = arith.constant dense<0xFF800000> : vector<64xf32>
    %48 = vector.multi_reduction <maximumf>, %47, %cst_14 [1] : vector<64x64xf32> to vector<64xf32>
    %49 = vector.shape_cast %48 : vector<64xf32> to vector<64x1xf32>
    %50 = vector.broadcast %49 : vector<64x1xf32> to vector<64x64xf32>
    %51 = arith.subf %47, %50 : vector<64x64xf32>
    %52 = math.exp %51 : vector<64x64xf32>
    %cst_15 = arith.constant dense<0.000000e+00> : vector<64xf32>
    %53 = vector.multi_reduction <add>, %52, %cst_15 [1] : vector<64x64xf32> to vector<64xf32>
    %54 = vector.shape_cast %53 : vector<64xf32> to vector<64x1xf32>
    %55 = tpu.reciprocal %54 {approx = true} : vector<64x1xf32> -> vector<64x1xf32>
    %56 = vector.broadcast %55 : vector<64x1xf32> to vector<64x64xf32>
    %57 = arith.mulf %52, %56 : vector<64x64xf32>
    %58 = arith.truncf %57 : vector<64x64xf32> to vector<64x64xbf16>
    %cst_16 = arith.constant dense<0.000000e+00> : vector<64x128xf32>
    %59 = tpu.matmul %58, %46, %cst_16 {dimension_numbers = #tpu.dot_dimension_numbers<[1], [0], [0], [1], [0, 0, 1, 1], [], []>} : vector<64x64xbf16>, vector<64x128xbf16>, vector<64x128xf32> -> vector<64x128xf32>
    %60 = vector.extract_strided_slice %9 {offsets = [0, 384], sizes = [64, 128], strides = [1, 1]} : vector<64x512xbf16> to vector<64x128xbf16>
    %61 = vector.extract_strided_slice %10 {offsets = [0, 384], sizes = [64, 128], strides = [1, 1]} : vector<64x512xbf16> to vector<64x128xbf16>
    %62 = vector.extract_strided_slice %11 {offsets = [0, 384], sizes = [64, 128], strides = [1, 1]} : vector<64x512xbf16> to vector<64x128xbf16>
    %cst_17 = arith.constant dense<0.000000e+00> : vector<64x64xf32>
    %63 = tpu.matmul %60, %61, %cst_17 {dimension_numbers = #tpu.dot_dimension_numbers<[1], [1], [0], [0], [0, 0, 1, 0], [], []>} : vector<64x128xbf16>, vector<64x128xbf16>, vector<64x64xf32> -> vector<64x64xf32>
    %cst_18 = arith.constant dense<0xFF800000> : vector<64xf32>
    %64 = vector.multi_reduction <maximumf>, %63, %cst_18 [1] : vector<64x64xf32> to vector<64xf32>
    %65 = vector.shape_cast %64 : vector<64xf32> to vector<64x1xf32>
    %66 = vector.broadcast %65 : vector<64x1xf32> to vector<64x64xf32>
    %67 = arith.subf %63, %66 : vector<64x64xf32>
    %68 = math.exp %67 : vector<64x64xf32>
    %cst_19 = arith.constant dense<0.000000e+00> : vector<64xf32>
    %69 = vector.multi_reduction <add>, %68, %cst_19 [1] : vector<64x64xf32> to vector<64xf32>
    %70 = vector.shape_cast %69 : vector<64xf32> to vector<64x1xf32>
    %71 = tpu.reciprocal %70 {approx = true} : vector<64x1xf32> -> vector<64x1xf32>
    %72 = vector.broadcast %71 : vector<64x1xf32> to vector<64x64xf32>
    %73 = arith.mulf %68, %72 : vector<64x64xf32>
    %74 = arith.truncf %73 : vector<64x64xf32> to vector<64x64xbf16>
    %cst_20 = arith.constant dense<0.000000e+00> : vector<64x128xf32>
    %75 = tpu.matmul %74, %62, %cst_20 {dimension_numbers = #tpu.dot_dimension_numbers<[1], [0], [0], [1], [0, 0, 1, 1], [], []>} : vector<64x64xbf16>, vector<64x128xbf16>, vector<64x128xf32> -> vector<64x128xf32>
    %76 = tpu.concatenate %27, %43, %59, %75 in 1 : vector<64x128xf32>, vector<64x128xf32>, vector<64x128xf32>, vector<64x128xf32> -> vector<64x512xf32>
    %77 = arith.truncf %76 : vector<64x512xf32> to vector<64x512xbf16>
    %c0_21 = arith.constant 0 : index
    %c0_22 = arith.constant 0 : index
    %78 = vector.load %arg3[%c0_21, %c0_22] : memref<512x512xbf16, #tpu.memory_space<vmem>>, vector<512x512xbf16>
    %cst_23 = arith.constant dense<0.000000e+00> : vector<64x512xf32>
    %79 = tpu.matmul %77, %78, %cst_23 {dimension_numbers = #tpu.dot_dimension_numbers<[1], [0], [0], [1], [0, 0, 1, 1], [], []>} : vector<64x512xbf16>, vector<512x512xbf16>, vector<64x512xf32> -> vector<64x512xf32>
    %c0_24 = arith.constant 0 : index
    %c0_25 = arith.constant 0 : index
    %80 = vector.load %arg4[%c0_24, %c0_25] : memref<1x512xf32, #tpu.memory_space<vmem>>, vector<1x512xf32>
    %81 = vector.broadcast %80 : vector<1x512xf32> to vector<64x512xf32>
    %82 = arith.addf %79, %81 : vector<64x512xf32>
    %c0_26 = arith.constant 0 : index
    %c0_27 = arith.constant 0 : index
    %c0_28 = arith.constant 0 : index
    %83 = vector.load %arg5[%c0_26, %c0_27, %c0_28] : memref<1x64x512xf32, #tpu.memory_space<vmem>>, vector<1x64x512xf32>
    %84 = vector.shape_cast %83 : vector<1x64x512xf32> to vector<64x512xf32>
    %85 = vector.shape_cast %82 : vector<64x512xf32> to vector<1x64x512xf32>
    tpu.vector_store %arg5[%c0_26, %c0_27, %c0_28], %85 {strides = array<i32>} : memref<1x64x512xf32, #tpu.memory_space<vmem>>, vector<1x64x512xf32>,
    return
  }
  func.func @transform_0(%arg0: i32) -> (i32, i32, i32) {
    %c0_i32 = arith.constant 0 : i32
    %c0_i32_0 = arith.constant 0 : i32
    %c0_i32_1 = arith.constant 0 : i32
    return %arg0, %c0_i32, %c0_i32_0 : i32, i32, i32
  }
  func.func @transform_1(%arg0: i32) -> (i32, i32) {
    %c0_i32 = arith.constant 0 : i32
    %c0_i32_0 = arith.constant 0 : i32
    %c0_i32_1 = arith.constant 0 : i32
    return %c0_i32, %c0_i32_0 : i32, i32
  }
  func.func @transform_2(%arg0: i32) -> (i32, i32) {
    %c0_i32 = arith.constant 0 : i32
    %c0_i32_0 = arith.constant 0 : i32
    %c0_i32_1 = arith.constant 0 : i32
    return %c0_i32, %c0_i32_0 : i32, i32
  }
  func.func @transform_3(%arg0: i32) -> (i32, i32) {
    %c0_i32 = arith.constant 0 : i32
    %c0_i32_0 = arith.constant 0 : i32
    %c0_i32_1 = arith.constant 0 : i32
    return %c0_i32, %c0_i32_0 : i32, i32
  }
  func.func @transform_4(%arg0: i32) -> (i32, i32, i32) {
    %c0_i32 = arith.constant 0 : i32
    %c0_i32_0 = arith.constant 0 : i32
    %c0_i32_1 = arith.constant 0 : i32
    return %arg0, %c0_i32, %c0_i32_0 : i32, i32, i32
  }
}

</mosaic_0001>

<llo_original>
// kernel: tpu_custom_call.1
$region0: #{tpu_custom_call.1}
  #allocation0 [shape = 'u32[]', space=smem, size = 0x4, offset = 0x4, fixed_abs, tag = 'smem constant byte address 0x4 - core index']
  #allocation1 [shape = 'u32[144,128]{1,0:T(1,128)}', space=vmem, size = 0x12000, scoped, tag = 'internal scratch']
  %s0 = inlined_call_operand.hbm [shape: bf16[6,64,512], index: 0, kind: input, shape index: {}]
  %s1 = inlined_call_operand.hbm [shape: bf16[512,1536], index: 1, kind: input, shape index: {}]
  %s2 = inlined_call_operand.hbm [shape: bf16[512,512], index: 2, kind: input, shape index: {}]
  %s3 = inlined_call_operand.hbm [shape: f32[1,512], index: 3, kind: input, shape index: {}]
  %s4 = inlined_call_operand.hbm [shape: f32[6,64,512], index: 4, kind: output, shape index: {}]
  %s5 = sld [smem:[#allocation0]]
  $region65: #{tpu_custom_call.1} parent=0
    _
  %s7 = ssub.s32 1, %s5
  %s8 = scalar_select 0, %s7, %s5
  $region1: #{tpu_custom_call.1} parent=0
    #allocation2 [shape = 'u8[131072]{0}', space=vmem, size = 0x20000, scoped, tag = 'input window, operand 0']
    #allocation3 [shape = 's32[2]{0}', space=sflag, size = 0x8, scoped, tag = 'scoped memory for tpu_custom_call.1']
    #allocation4 [shape = 's32[2]{0}', space=sflag, size = 0x8, scoped, tag = 'scoped memory for tpu_custom_call.1']
    #allocation5 [shape = 'u8[1572864]{0}', space=vmem, size = 0x180000, scoped, tag = 'input window, operand 1, single buffered']
    #allocation6 [shape = 's32[1]{0}', space=sflag, size = 0x4, scoped, tag = 'scoped memory for tpu_custom_call.1']
    #allocation7 [shape = 'u8[524288]{0}', space=vmem, size = 0x80000, scoped, tag = 'input window, operand 2, single buffered']
    #allocation8 [shape = 'u8[2048]{0}', space=vmem, size = 0x800, scoped, tag = 'input window, operand 3, single buffered']
    #allocation9 [shape = 's32[1]{0}', space=sflag, size = 0x4, scoped, tag = 'scoped memory for tpu_custom_call.1']
    #allocation10 [shape = 'u8[262144]{0}', space=vmem, size = 0x40000, scoped, tag = 'output window, operand 0']
    %9 = vsyncpa [#allocation3], 0
    %s10 = scalar_lea.sflag [#allocation3], 1
    %11 = vsyncpa %s10, 0
    %12 = vsyncpa [#allocation6], 0
    %13 = vsyncpa [#allocation9], 0
    %14 = vsyncpa [#allocation4], 0
    %s15 = scalar_lea.sflag [#allocation4], 1
    %16 = vsyncpa %s15, 0
    loop: start=0, step=1, limit=8
    $region2: #{tpu_custom_call.1} parent=1 // loop_pre_header
      _
    $region3: #{tpu_custom_call.1} parent=1 // loop_header
      %s18 = sphi 0, %s22
      %p19 = scmp.ge.s32.totalorder %s18, 8
      %s28 = sphi 0, %s30
      %s31 = sphi 0, %s28
      %s32 = sphi 0, %s31
      %s48 = sphi 0, %s32
      %s52 = sphi 0, %s52
      %s54 = sphi 0, %s52
      %s55 = sphi 0, %s54
      %s69 = sphi 0, %s55
      %s73 = sphi 0, %s73
      %s75 = sphi 0, %s73
      %s76 = sphi 0, %s75
      %s90 = sphi 0, %s76
      %s94 = sphi 0, %s94
      %s96 = sphi 0, %s94
      %s97 = sphi 0, %s96
      %s111 = sphi 0, %s97
      %s117 = sphi 0, %s119
      %s120 = sphi 0, %s117
      %s121 = sphi 0, %s120
      %s137 = sphi 0, %s121
    $region4: #{tpu_custom_call.1} parent=1 // loop_header_branch
      %21 = sbr.rel (%p19) target = $region8
    $region5: #{tpu_custom_call.1} parent=1 // loop_body
      %s23 = ssub.s32 %s18, 1
      %s24 = ssub.s32 %s18, 2
      %s25 = sadd.s32 %s18, 1
      %s26 = ssub.s32 %s18, %s25
      %p27 = scmp.eq.s32.totalorder %s26, 0
      %s29 = sadd.s32 %s28, 1
      %s30 = scalar_select %p27, %s28, %s29
      %p33 = pneg %p27
      %p34 = scmp.eq.s32.totalorder %s18, 5
      %p35 = por %p33, %p34
      %p36 = scmp.ne.s32.totalorder %s28, %s31
      %p37 = scmp.eq.s32.totalorder %s18, 0
      %p38 = por %p36, %p37
      %p39 = scmp.ne.s32.totalorder %s28, %s31
      %p40 = scmp.eq.s32.totalorder %s23, 5
      %p41 = por %p39, %p40
      %p42 = scmp.ne.s32.totalorder %s31, %s32
      %p43 = scmp.eq.s32.totalorder %s23, 0
      %p44 = por %p42, %p43
      %p45 = scmp.ne.s32.totalorder %s31, %s32
      %p46 = scmp.eq.s32.totalorder %s24, 5
      %p47 = por %p45, %p46
      %p49 = scmp.ne.s32.totalorder %s32, %s48
      %p50 = scmp.eq.s32.totalorder %s24, 0
      %p51 = por %p49, %p50
      %s53 = sadd.s32 %s52, 1
      %p56 = scmp.eq.s32.totalorder %s18, 5
      %p57 = scmp.ne.s32.totalorder %s52, %s54
      %p58 = scmp.eq.s32.totalorder %s18, 0
      %p59 = por %p57, %p58
      %p60 = scmp.ne.s32.totalorder %s52, %s54
      %p61 = scmp.eq.s32.totalorder %s23, 5
      %p62 = por %p60, %p61
      %p63 = scmp.ne.s32.totalorder %s54, %s55
      %p64 = scmp.eq.s32.totalorder %s23, 0
      %p65 = por %p63, %p64
      %p66 = scmp.ne.s32.totalorder %s54, %s55
      %p67 = scmp.eq.s32.totalorder %s24, 5
      %p68 = por %p66, %p67
      %p70 = scmp.ne.s32.totalorder %s55, %s69
      %p71 = scmp.eq.s32.totalorder %s24, 0
      %p72 = por %p70, %p71
      %s74 = sadd.s32 %s73, 1
      %p77 = scmp.eq.s32.totalorder %s18, 5
      %p78 = scmp.ne.s32.totalorder %s73, %s75
      %p79 = scmp.eq.s32.totalorder %s18, 0
      %p80 = por %p78, %p79
      %p81 = scmp.ne.s32.totalorder %s73, %s75
      %p82 = scmp.eq.s32.totalorder %s23, 5
      %p83 = por %p81, %p82
      %p84 = scmp.ne.s32.totalorder %s75, %s76
      %p85 = scmp.eq.s32.totalorder %s23, 0
      %p86 = por %p84, %p85
      %p87 = scmp.ne.s32.totalorder %s75, %s76
      %p88 = scmp.eq.s32.totalorder %s24, 5
      %p89 = por %p87, %p88
      %p91 = scmp.ne.s32.totalorder %s76, %s90
      %p92 = scmp.eq.s32.totalorder %s24, 0
      %p93 = por %p91, %p92
      %s95 = sadd.s32 %s94, 1
      %p98 = scmp.eq.s32.totalorder %s18, 5
      %p99 = scmp.ne.s32.totalorder %s94, %s96
      %p100 = scmp.eq.s32.totalorder %s18, 0
      %p101 = por %p99, %p100
      %p102 = scmp.ne.s32.totalorder %s94, %s96
      %p103 = scmp.eq.s32.totalorder %s23, 5
      %p104 = por %p102, %p103
      %p105 = scmp.ne.s32.totalorder %s96, %s97
      %p106 = scmp.eq.s32.totalorder %s23, 0
      %p107 = por %p105, %p106
      %p108 = scmp.ne.s32.totalorder %s96, %s97
      %p109 = scmp.eq.s32.totalorder %s24, 5
      %p110 = por %p108, %p109
      %p112 = scmp.ne.s32.totalorder %s97, %s111
      %p113 = scmp.eq.s32.totalorder %s24, 0
      %p114 = por %p112, %p113
      %s115 = ssub.s32 %s18, %s25
      %p116 = scmp.eq.s32.totalorder %s115, 0
      %s118 = sadd.s32 %s117, 1
      %s119 = scalar_select %p116, %s117, %s118
      %p122 = pneg %p116
      %p123 = scmp.eq.s32.totalorder %s18, 5
      %p124 = por %p122, %p123
      %p125 = scmp.ne.s32.totalorder %s117, %s120
      %p126 = scmp.eq.s32.totalorder %s18, 0
      %p127 = por %p125, %p126
      %p128 = scmp.ne.s32.totalorder %s117, %s120
      %p129 = scmp.eq.s32.totalorder %s23, 5
      %p130 = por %p128, %p129
      %p131 = scmp.ne.s32.totalorder %s120, %s121
      %p132 = scmp.eq.s32.totalorder %s23, 0
      %p133 = por %p131, %p132
      %p134 = scmp.ne.s32.totalorder %s120, %s121
      %p135 = scmp.eq.s32.totalorder %s24, 5
      %p136 = por %p134, %p135
      %p138 = scmp.ne.s32.totalorder %s121, %s137
      %p139 = scmp.eq.s32.totalorder %s24, 0
      %p140 = por %p138, %p139
      %p141 = scmp.le.s32.totalorder 1, %s18
      %p142 = scmp.lt.s32.totalorder %s18, 7
      %p143 = pnand %p141, %p142
      %p144 = pneg %p143
      // Predicated region
      $region9: #{tpu_custom_call.1} parent=5 // pred_check
        _
      $region10: #{tpu_custom_call.1} parent=5 // pred_check_branch
        %146 = sbr.rel (%p143) target = $region12
      $region11: #{tpu_custom_call.1} parent=5 // pred_region
        %s147 = ssub.s32 %s18, 1
        // Predicated region
        $region13: #{tpu_custom_call.1} parent=11 // pred_check
          %p148 = pneg %p65
        $region14: #{tpu_custom_call.1} parent=11 // pred_check_branch
          %150 = sbr.rel (%p148) target = $region16
        $region15: #{tpu_custom_call.1} parent=11 // pred_region
          %s152 = ssub.s32 49152, 49152
          %153 = vsyncadd [#allocation6], %s152
          %s154 = sshll.u32 [#allocation5], 4
          %s155 = int_to_ptr.vmem [resolvable:$true] %s154
          %160 = dma.hbm_to_vmem [thread:$0]  %s1, 49152, %s155, [#allocation6], 768, 768, 48
        $region16: #{tpu_custom_call.1} parent=11 // pred_fallthru
          _
        // Predicated region
        $region17: #{tpu_custom_call.1} parent=11 // pred_check
          %p161 = pneg %p86
        $region18: #{tpu_custom_call.1} parent=11 // pred_check_branch
          %163 = sbr.rel (%p161) target = $region20
        $region19: #{tpu_custom_call.1} parent=11 // pred_region
          %s165 = ssub.s32 16384, 16384
          %166 = vsyncadd [#allocation6], %s165
          %s167 = sshll.u32 [#allocation7], 4
          %s168 = int_to_ptr.vmem [resolvable:$true] %s167
          %173 = dma.hbm_to_vmem [thread:$0]  %s2, 16384, %s168, [#allocation6], 256, 256, 16
        $region20: #{tpu_custom_call.1} parent=11 // pred_fallthru
          _
        // Predicated region
        $region21: #{tpu_custom_call.1} parent=11 // pred_check
          %p174 = pneg %p107
        $region22: #{tpu_custom_call.1} parent=11 // pred_check_branch
          %176 = sbr.rel (%p174) target = $region24
        $region23: #{tpu_custom_call.1} parent=11 // pred_region
          %s178 = ssub.s32 64, 64
          %179 = vsyncadd [#allocation9], %s178
          %s181 = sshll.u32 [#allocation8], 4
          %s182 = int_to_ptr.vmem [resolvable:$true] %s181
          %184 = dma.hbm_to_vmem [thread:$0]  %s3, 64, %s182, [#allocation9]
        $region24: #{tpu_custom_call.1} parent=11 // pred_fallthru
          _
      $region12: #{tpu_custom_call.1} parent=5 // pred_fallthru
        _
      %p185 = scmp.lt.s32.totalorder %s18, 6
      // Predicated region
      $region25: #{tpu_custom_call.1} parent=5 // pred_check
        %p186 = pneg %p185
      $region26: #{tpu_custom_call.1} parent=5 // pred_check_branch
        %188 = sbr.rel (%p186) target = $region28
      $region27: #{tpu_custom_call.1} parent=5 // pred_region
        // Predicated region
        $region29: #{tpu_custom_call.1} parent=27 // pred_check
          %p189 = pneg %p38
        $region30: #{tpu_custom_call.1} parent=27 // pred_check_branch
          %191 = sbr.rel (%p189) target = $region32
        $region31: #{tpu_custom_call.1} parent=27 // pred_region
          %s192 = sand.u32 %s28, 1
          %s193 = scalar_lea.sflag [#allocation3], %s192
          %s194 = sand.u32 %s28, 1
          %s195 = smul.addr %s194, 128
          %s196 = scalar_lea.vmem [#allocation2], %s195
          %s198 = ssub.s32 2048, 2048
          %199 = vsyncadd %s193, %s198
          %s200 = smul.addr %s18, 32
          %s201 = smul.addr %s200, 64
          %s202 = scalar_lea.hbm %s0, %s201
          %s203 = sshll.u32 %s196, 4
          %s204 = int_to_ptr.vmem [resolvable:$true] %s203
          %209 = dma.hbm_to_vmem [thread:$0]  %s202, 2048, %s204, %s193, 256, 256, 16
        $region32: #{tpu_custom_call.1} parent=27 // pred_fallthru
          _
      $region28: #{tpu_custom_call.1} parent=5 // pred_fallthru
        _
      %p210 = scmp.le.s32.totalorder 1, %s18
      %p211 = scmp.lt.s32.totalorder %s18, 7
      %p212 = pnand %p210, %p211
      %p213 = pneg %p212
      // Predicated region
      $region33: #{tpu_custom_call.1} parent=5 // pred_check
        _
      $region34: #{tpu_custom_call.1} parent=5 // pred_check_branch
        %215 = sbr.rel (%p212) target = $region36
      $region35: #{tpu_custom_call.1} parent=5 // pred_region
        %s216 = ssub.s32 %s18, 1
        %s217 = sand.u32 %s31, 1
        %s218 = scalar_lea.sflag [#allocation3], %s217
        %s219 = sand.u32 %s31, 1
        %s220 = smul.addr %s219, 128
        %s221 = scalar_lea.vmem [#allocation2], %s220
        // Predicated region
        $region37: #{tpu_custom_call.1} parent=35 // pred_check
          %p222 = pneg %p44
        $region38: #{tpu_custom_call.1} parent=35 // pred_check_branch
          %224 = sbr.rel (%p222) target = $region40
        $region39: #{tpu_custom_call.1} parent=35 // pred_region
          %225 = dma.done %s218, 2048
        $region40: #{tpu_custom_call.1} parent=35 // pred_fallthru
          _
        // Predicated region
        $region41: #{tpu_custom_call.1} parent=35 // pred_check
          %p226 = pneg %p65
        $region42: #{tpu_custom_call.1} parent=35 // pred_check_branch
          %228 = sbr.rel (%p226) target = $region44
        $region43: #{tpu_custom_call.1} parent=35 // pred_region
          %229 = dma.done [#allocation6], 49152
        $region44: #{tpu_custom_call.1} parent=35 // pred_fallthru
          _
        // Predicated region
        $region45: #{tpu_custom_call.1} parent=35 // pred_check
          %p230 = pneg %p86
        $region46: #{tpu_custom_call.1} parent=35 // pred_check_branch
          %232 = sbr.rel (%p230) target = $region48
        $region47: #{tpu_custom_call.1} parent=35 // pred_region
          %233 = dma.done [#allocation6], 16384
        $region48: #{tpu_custom_call.1} parent=35 // pred_fallthru
          _
        // Predicated region
        $region49: #{tpu_custom_call.1} parent=35 // pred_check
          %p234 = pneg %p107
        $region50: #{tpu_custom_call.1} parent=35 // pred_check_branch
          %236 = sbr.rel (%p234) target = $region52
        $region51: #{tpu_custom_call.1} parent=35 // pred_region
          %237 = dma.done [#allocation9], 64
        $region52: #{tpu_custom_call.1} parent=35 // pred_fallthru
          _
        %s238 = sand.u32 %s31, 1
        %s239 = scalar_lea.sflag [#allocation3], %s238
        %s240 = sand.u32 %s31, 1
        %s241 = smul.addr %s240, 128
        %s242 = scalar_lea.vmem [#allocation2], %s241
        %p243 = pneg %p44
        %p244 = pneg %p41
        %p245 = pneg %p65
        %p246 = pneg %p62
        %p247 = pneg %p86
        %p248 = pneg %p83
        %p249 = pneg %p107
        %p250 = pneg %p104
        %p251 = pneg %p133
        %p252 = pneg %p130
        %s253 = sand.u32 %s120, 1
        %s254 = scalar_lea.sflag [#allocation4], %s253
        %s255 = sand.u32 %s120, 1
        %s256 = smul.addr %s255, 256
        %s257 = scalar_lea.vmem [#allocation10], %s256
        %v259 = vld [vmem:[%s221] sm:$0xff]
        %v260 = vld [vmem:[%s221 + $0x8] sm:$0xff]
        %v261 = vld [vmem:[%s221 + $0x10] sm:$0xff]
        %v262 = vld [vmem:[%s221 + $0x18] sm:$0xff]
        %v263 = vld [vmem:[%s221 + $0x20] sm:$0xff]
        %v264 = vld [vmem:[%s221 + $0x28] sm:$0xff]
        %v265 = vld [vmem:[%s221 + $0x30] sm:$0xff]
        %v266 = vld [vmem:[%s221 + $0x38] sm:$0xff]
        %v267 = vld [vmem:[%s221 + $0x40] sm:$0xff]
        %v268 = vld [vmem:[%s221 + $0x48] sm:$0xff]
        %v269 = vld [vmem:[%s221 + $0x50] sm:$0xff]
        %v270 = vld [vmem:[%s221 + $0x58] sm:$0xff]
        %v271 = vld [vmem:[%s221 + $0x60] sm:$0xff]
        %v272 = vld [vmem:[%s221 + $0x68] sm:$0xff]
        %v273 = vld [vmem:[%s221 + $0x70] sm:$0xff]
        %v274 = vld [vmem:[%s221 + $0x78] sm:$0xff]
        %v275 = vld [vmem:[#allocation5] sm:$0xff]
        %v276 = vld [vmem:[#allocation5 + $0x8] sm:$0xff]
        %v277 = vld [vmem:[#allocation5 + $0x10] sm:$0xff]
        %v278 = vld [vmem:[#allocation5 + $0x18] sm:$0xff]
        %v279 = vld [vmem:[#allocation5 + $0x20] sm:$0xff]
        %v280 = vld [vmem:[#allocation5 + $0x28] sm:$0xff]
        %v281 = vld [vmem:[#allocation5 + $0x30] sm:$0xff]
        %v282 = vld [vmem:[#allocation5 + $0x38] sm:$0xff]
        %v283 = vld [vmem:[#allocation5 + $0x40] sm:$0xff]
        %v284 = vld [vmem:[#allocation5 + $0x48] sm:$0xff]
        %v285 = vld [vmem:[#allocation5 + $0x50] sm:$0xff]
        %v286 = vld [vmem:[#allocation5 + $0x58] sm:$0xff]
        %v287 = vld [vmem:[#allocation5 + $0x60] sm:$0xff]
        %v288 = vld [vmem:[#allocation5 + $0x68] sm:$0xff]
        %v289 = vld [vmem:[#allocation5 + $0x70] sm:$0xff]
        %v290 = vld [vmem:[#allocation5 + $0x78] sm:$0xff]
        %v291 = vld [vmem:[#allocation5 + $0x80] sm:$0xff]
        %v292 = vld [vmem:[#allocation5 + $0x88] sm:$0xff]
        %v293 = vld [vmem:[#allocation5 + $0x90] sm:$0xff]
        %v294 = vld [vmem:[#allocation5 + $0x98] sm:$0xff]
        %v295 = vld [vmem:[#allocation5 + $0xa0] sm:$0xff]
        %v296 = vld [vmem:[#allocation5 + $0xa8] sm:$0xff]
        %v297 = vld [vmem:[#allocation5 + $0xb0] sm:$0xff]
        %v298 = vld [vmem:[#allocation5 + $0xb8] sm:$0xff]
        %v299 = vld [vmem:[#allocation5 + $0xc0] sm:$0xff]
        %v300 = vld [vmem:[#allocation5 + $0xc8] sm:$0xff]
        %v301 = vld [vmem:[#allocation5 + $0xd0] sm:$0xff]
        %v302 = vld [vmem:[#allocation5 + $0xd8] sm:$0xff]
        %v303 = vld [vmem:[#allocation5 + $0xe0] sm:$0xff]
        %v304 = vld [vmem:[#allocation5 + $0xe8] sm:$0xff]
        %v305 = vld [vmem:[#allocation5 + $0xf0] sm:$0xff]
        %v306 = vld [vmem:[#allocation5 + $0xf8] sm:$0xff]
        %v307 = vld [vmem:[#allocation5 + $0x100] sm:$0xff]
        %v308 = vld [vmem:[#allocation5 + $0x108] sm:$0xff]
        %v309 = vld [vmem:[#allocation5 + $0x110] sm:$0xff]
        %v310 = vld [vmem:[#allocation5 + $0x118] sm:$0xff]
        %v311 = vld [vmem:[#allocation5 + $0x120] sm:$0xff]
        %v312 = vld [vmem:[#allocation5 + $0x128] sm:$0xff]
        %v313 = vld [vmem:[#allocation5 + $0x130] sm:$0xff]
        %v314 = vld [vmem:[#allocation5 + $0x138] sm:$0xff]
        %v315 = vld [vmem:[#allocation5 + $0x140] sm:$0xff]
        %v316 = vld [vmem:[#allocation5 + $0x148] sm:$0xff]
        %v317 = vld [vmem:[#allocation5 + $0x150] sm:$0xff]
        %v318 = vld [vmem:[#allocation5 + $0x158] sm:$0xff]
        %v319 = vld [vmem:[#allocation5 + $0x160] sm:$0xff]
        %v320 = vld [vmem:[#allocation5 + $0x168] sm:$0xff]
        %v321 = vld [vmem:[#allocation5 + $0x170] sm:$0xff]
        %v322 = vld [vmem:[#allocation5 + $0x178] sm:$0xff]
        %v323 = vld [vmem:[#allocation5 + $0x180] sm:$0xff]
        %v324 = vld [vmem:[#allocation5 + $0x188] sm:$0xff]
        %v325 = vld [vmem:[#allocation5 + $0x190] sm:$0xff]
        %v326 = vld [vmem:[#allocation5 + $0x198] sm:$0xff]
        %v327 = vld [vmem:[#allocation5 + $0x1a0] sm:$0xff]
        %v328 = vld [vmem:[#allocation5 + $0x1a8] sm:$0xff]
        %v329 = vld [vmem:[#allocation5 + $0x1b0] sm:$0xff]
        %v330 = vld [vmem:[#allocation5 + $0x1b8] sm:$0xff]
        %v331 = vld [vmem:[#allocation5 + $0x1c0] sm:$0xff]
        %v332 = vld [vmem:[#allocation5 + $0x1c8] sm:$0xff]
        %v333 = vld [vmem:[#allocation5 + $0x1d0] sm:$0xff]
        %v334 = vld [vmem:[#allocation5 + $0x1d8] sm:$0xff]
        %v335 = vld [vmem:[#allocation5 + $0x1e0] sm:$0xff]
        %v336 = vld [vmem:[#allocation5 + $0x1e8] sm:$0xff]
        %v337 = vld [vmem:[#allocation5 + $0x1f0] sm:$0xff]
        %v338 = vld [vmem:[#allocation5 + $0x1f8] sm:$0xff]
        %v339 = vld [vmem:[#allocation5 + $0x200] sm:$0xff]
        %v340 = vld [vmem:[#allocation5 + $0x208] sm:$0xff]
        %v341 = vld [vmem:[#allocation5 + $0x210] sm:$0xff]
        %v342 = vld [vmem:[#allocation5 + $0x218] sm:$0xff]
        %v343 = vld [vmem:[#allocation5 + $0x220] sm:$0xff]
        %v344 = vld [vmem:[#allocation5 + $0x228] sm:$0xff]
        %v345 = vld [vmem:[#allocation5 + $0x230] sm:$0xff]
        %v346 = vld [vmem:[#allocation5 + $0x238] sm:$0xff]
        %v347 = vld [vmem:[#allocation5 + $0x240] sm:$0xff]
        %v348 = vld [vmem:[#allocation5 + $0x248] sm:$0xff]
        %v349 = vld [vmem:[#allocation5 + $0x250] sm:$0xff]
        %v350 = vld [vmem:[#allocation5 + $0x258] sm:$0xff]
        %v351 = vld [vmem:[#allocation5 + $0x260] sm:$0xff]
        %v352 = vld [vmem:[#allocation5 + $0x268] sm:$0xff]
        %v353 = vld [vmem:[#allocation5 + $0x270] sm:$0xff]
        %v354 = vld [vmem:[#allocation5 + $0x278] sm:$0xff]
        %v355 = vld [vmem:[#allocation5 + $0x280] sm:$0xff]
        %v356 = vld [vmem:[#allocation5 + $0x288] sm:$0xff]
        %v357 = vld [vmem:[#allocation5 + $0x290] sm:$0xff]
        %v358 = vld [vmem:[#allocation5 + $0x298] sm:$0xff]
        %v359 = vld [vmem:[#allocation5 + $0x2a0] sm:$0xff]
        %v360 = vld [vmem:[#allocation5 + $0x2a8] sm:$0xff]
        %v361 = vld [vmem:[#allocation5 + $0x2b0] sm:$0xff]
        %v362 = vld [vmem:[#allocation5 + $0x2b8] sm:$0xff]
        %v363 = vld [vmem:[#allocation5 + $0x2c0] sm:$0xff]
        %v364 = vld [vmem:[#allocation5 + $0x2c8] sm:$0xff]
        %v365 = vld [vmem:[#allocation5 + $0x2d0] sm:$0xff]
        %v366 = vld [vmem:[#allocation5 + $0x2d8] sm:$0xff]
        %v367 = vld [vmem:[#allocation5 + $0x2e0] sm:$0xff]
        %v368 = vld [vmem:[#allocation5 + $0x2e8] sm:$0xff]
        %v369 = vld [vmem:[#allocation5 + $0x2f0] sm:$0xff]
        %v370 = vld [vmem:[#allocation5 + $0x2f8] sm:$0xff]
        %v371 = vld [vmem:[#allocation5 + $0x300] sm:$0xff]
        %v372 = vld [vmem:[#allocation5 + $0x308] sm:$0xff]
        %v373 = vld [vmem:[#allocation5 + $0x310] sm:$0xff]
        %v374 = vld [vmem:[#allocation5 + $0x318] sm:$0xff]
        %v375 = vld [vmem:[#allocation5 + $0x320] sm:$0xff]
        %v376 = vld [vmem:[#allocation5 + $0x328] sm:$0xff]
        %v377 = vld [vmem:[#allocation5 + $0x330] sm:$0xff]
        %v378 = vld [vmem:[#allocation5 + $0x338] sm:$0xff]
        %v379 = vld [vmem:[#allocation5 + $0x340] sm:$0xff]
        %v380 = vld [vmem:[#allocation5 + $0x348] sm:$0xff]
        %v381 = vld [vmem:[#allocation5 + $0x350] sm:$0xff]
        %v382 = vld [vmem:[#allocation5 + $0x358] sm:$0xff]
        %v383 = vld [vmem:[#allocation5 + $0x360] sm:$0xff]
        %v384 = vld [vmem:[#allocation5 + $0x368] sm:$0xff]
        %v385 = vld [vmem:[#allocation5 + $0x370] sm:$0xff]
        %v386 = vld [vmem:[#allocation5 + $0x378] sm:$0xff]
        %v387 = vld [vmem:[#allocation5 + $0x380] sm:$0xff]
        %v388 = vld [vmem:[#allocation5 + $0x388] sm:$0xff]
        %v389 = vld [vmem:[#allocation5 + $0x390] sm:$0xff]
        %v390 = vld [vmem:[#allocation5 + $0x398] sm:$0xff]
        %v391 = vld [vmem:[#allocation5 + $0x3a0] sm:$0xff]
        %v392 = vld [vmem:[#allocation5 + $0x3a8] sm:$0xff]
        %v393 = vld [vmem:[#allocation5 + $0x3b0] sm:$0xff]
        %v394 = vld [vmem:[#allocation5 + $0x3b8] sm:$0xff]
        %v395 = vld [vmem:[#allocation5 + $0x3c0] sm:$0xff]
        %v396 = vld [vmem:[#allocation5 + $0x3c8] sm:$0xff]
        %v397 = vld [vmem:[#allocation5 + $0x3d0] sm:$0xff]
        %v398 = vld [vmem:[#allocation5 + $0x3d8] sm:$0xff]
        %v399 = vld [vmem:[#allocation5 + $0x3e0] sm:$0xff]
        %v400 = vld [vmem:[#allocation5 + $0x3e8] sm:$0xff]
        %v401 = vld [vmem:[#allocation5 + $0x3f0] sm:$0xff]
        %v402 = vld [vmem:[#allocation5 + $0x3f8] sm:$0xff]
        %v403 = vld [vmem:[#allocation5 + $0x400] sm:$0xff]
        %v404 = vld [vmem:[#allocation5 + $0x408] sm:$0xff]
        %v405 = vld [vmem:[#allocation5 + $0x410] sm:$0xff]
        %v406 = vld [vmem:[#allocation5 + $0x418] sm:$0xff]
        %v407 = vld [vmem:[#allocation5 + $0x420] sm:$0xff]
        %v408 = vld [vmem:[#allocation5 + $0x428] sm:$0xff]
        %v409 = vld [vmem:[#allocation5 + $0x430] sm:$0xff]
        %v410 = vld [vmem:[#allocation5 + $0x438] sm:$0xff]
        %v411 = vld [vmem:[#allocation5 + $0x440] sm:$0xff]
        %v412 = vld [vmem:[#allocation5 + $0x448] sm:$0xff]
        %v413 = vld [vmem:[#allocation5 + $0x450] sm:$0xff]
        %v414 = vld [vmem:[#allocation5 + $0x458] sm:$0xff]
        %v415 = vld [vmem:[#allocation5 + $0x460] sm:$0xff]
        %v416 = vld [vmem:[#allocation5 + $0x468] sm:$0xff]
        %v417 = vld [vmem:[#allocation5 + $0x470] sm:$0xff]
        %v418 = vld [vmem:[#allocation5 + $0x478] sm:$0xff]
        %v419 = vld [vmem:[#allocation5 + $0x480] sm:$0xff]
        %v420 = vld [vmem:[#allocation5 + $0x488] sm:$0xff]
        %v421 = vld [vmem:[#allocation5 + $0x490] sm:$0xff]
        %v422 = vld [vmem:[#allocation5 + $0x498] sm:$0xff]
        %v423 = vld [vmem:[#allocation5 + $0x4a0] sm:$0xff]
        %v424 = vld [vmem:[#allocation5 + $0x4a8] sm:$0xff]
        %v425 = vld [vmem:[#allocation5 + $0x4b0] sm:$0xff]
        %v426 = vld [vmem:[#allocation5 + $0x4b8] sm:$0xff]
        %v427 = vld [vmem:[#allocation5 + $0x4c0] sm:$0xff]
        %v428 = vld [vmem:[#allocation5 + $0x4c8] sm:$0xff]
        %v429 = vld [vmem:[#allocation5 + $0x4d0] sm:$0xff]
        %v430 = vld [vmem:[#allocation5 + $0x4d8] sm:$0xff]
        %v431 = vld [vmem:[#allocation5 + $0x4e0] sm:$0xff]
        %v432 = vld [vmem:[#allocation5 + $0x4e8] sm:$0xff]
        %v433 = vld [vmem:[#allocation5 + $0x4f0] sm:$0xff]
        %v434 = vld [vmem:[#allocation5 + $0x4f8] sm:$0xff]
        %v435 = vld [vmem:[#allocation5 + $0x500] sm:$0xff]
        %v436 = vld [vmem:[#allocation5 + $0x508] sm:$0xff]
        %v437 = vld [vmem:[#allocation5 + $0x510] sm:$0xff]
        %v438 = vld [vmem:[#allocation5 + $0x518] sm:$0xff]
        %v439 = vld [vmem:[#allocation5 + $0x520] sm:$0xff]
        %v440 = vld [vmem:[#allocation5 + $0x528] sm:$0xff]
        %v441 = vld [vmem:[#allocation5 + $0x530] sm:$0xff]
        %v442 = vld [vmem:[#allocation5 + $0x538] sm:$0xff]
        %v443 = vld [vmem:[#allocation5 + $0x540] sm:$0xff]
        %v444 = vld [vmem:[#allocation5 + $0x548] sm:$0xff]
        %v445 = vld [vmem:[#allocation5 + $0x550] sm:$0xff]
        %v446 = vld [vmem:[#allocation5 + $0x558] sm:$0xff]
        %v447 = vld [vmem:[#allocation5 + $0x560] sm:$0xff]
        %v448 = vld [vmem:[#allocation5 + $0x568] sm:$0xff]
        %v449 = vld [vmem:[#allocation5 + $0x570] sm:$0xff]
        %v450 = vld [vmem:[#allocation5 + $0x578] sm:$0xff]
        %v451 = vld [vmem:[#allocation5 + $0x580] sm:$0xff]
        %v452 = vld [vmem:[#allocation5 + $0x588] sm:$0xff]
        %v453 = vld [vmem:[#allocation5 + $0x590] sm:$0xff]
        %v454 = vld [vmem:[#allocation5 + $0x598] sm:$0xff]
        %v455 = vld [vmem:[#allocation5 + $0x5a0] sm:$0xff]
        %v456 = vld [vmem:[#allocation5 + $0x5a8] sm:$0xff]
        %v457 = vld [vmem:[#allocation5 + $0x5b0] sm:$0xff]
        %v458 = vld [vmem:[#allocation5 + $0x5b8] sm:$0xff]
        %v459 = vld [vmem:[#allocation5 + $0x5c0] sm:$0xff]
        %v460 = vld [vmem:[#allocation5 + $0x5c8] sm:$0xff]
        %v461 = vld [vmem:[#allocation5 + $0x5d0] sm:$0xff]
        %v462 = vld [vmem:[#allocation5 + $0x5d8] sm:$0xff]
        %v463 = vld [vmem:[#allocation5 + $0x5e0] sm:$0xff]
        %v464 = vld [vmem:[#allocation5 + $0x5e8] sm:$0xff]
        %v465 = vld [vmem:[#allocation5 + $0x5f0] sm:$0xff]
        %v466 = vld [vmem:[#allocation5 + $0x5f8] sm:$0xff]
        %v467 = vld [vmem:[#allocation5 + $0x600] sm:$0xff]
        %v468 = vld [vmem:[#allocation5 + $0x608] sm:$0xff]
        %v469 = vld [vmem:[#allocation5 + $0x610] sm:$0xff]
        %v470 = vld [vmem:[#allocation5 + $0x618] sm:$0xff]
        %v471 = vld [vmem:[#allocation5 + $0x620] sm:$0xff]
        %v472 = vld [vmem:[#allocation5 + $0x628] sm:$0xff]
        %v473 = vld [vmem:[#allocation5 + $0x630] sm:$0xff]
        %v474 = vld [vmem:[#allocation5 + $0x638] sm:$0xff]
        %v475 = vld [vmem:[#allocation5 + $0x640] sm:$0xff]
        %v476 = vld [vmem:[#allocation5 + $0x648] sm:$0xff]
        %v477 = vld [vmem:[#allocation5 + $0x650] sm:$0xff]
        %v478 = vld [vmem:[#allocation5 + $0x658] sm:$0xff]
        %v479 = vld [vmem:[#allocation5 + $0x660] sm:$0xff]
        %v480 = vld [vmem:[#allocation5 + $0x668] sm:$0xff]
        %v481 = vld [vmem:[#allocation5 + $0x670] sm:$0xff]
        %v482 = vld [vmem:[#allocation5 + $0x678] sm:$0xff]
        %v483 = vld [vmem:[#allocation5 + $0x680] sm:$0xff]
        %v484 = vld [vmem:[#allocation5 + $0x688] sm:$0xff]
        %v485 = vld [vmem:[#allocation5 + $0x690] sm:$0xff]
        %v486 = vld [vmem:[#allocation5 + $0x698] sm:$0xff]
        %v487 = vld [vmem:[#allocation5 + $0x6a0] sm:$0xff]
        %v488 = vld [vmem:[#allocation5 + $0x6a8] sm:$0xff]
        %v489 = vld [vmem:[#allocation5 + $0x6b0] sm:$0xff]
        %v490 = vld [vmem:[#allocation5 + $0x6b8] sm:$0xff]
        %v491 = vld [vmem:[#allocation5 + $0x6c0] sm:$0xff]
        %v492 = vld [vmem:[#allocation5 + $0x6c8] sm:$0xff]
        %v493 = vld [vmem:[#allocation5 + $0x6d0] sm:$0xff]
        %v494 = vld [vmem:[#allocation5 + $0x6d8] sm:$0xff]
        %v495 = vld [vmem:[#allocation5 + $0x6e0] sm:$0xff]
        %v496 = vld [vmem:[#allocation5 + $0x6e8] sm:$0xff]
        %v497 = vld [vmem:[#allocation5 + $0x6f0] sm:$0xff]
        %v498 = vld [vmem:[#allocation5 + $0x6f8] sm:$0xff]
        %v499 = vld [vmem:[#allocation5 + $0x700] sm:$0xff]
        %v500 = vld [vmem:[#allocation5 + $0x708] sm:$0xff]
        %v501 = vld [vmem:[#allocation5 + $0x710] sm:$0xff]
        %v502 = vld [vmem:[#allocation5 + $0x718] sm:$0xff]
        %v503 = vld [vmem:[#allocation5 + $0x720] sm:$0xff]
        %v504 = vld [vmem:[#allocation5 + $0x728] sm:$0xff]
        %v505 = vld [vmem:[#allocation5 + $0x730] sm:$0xff]
        %v506 = vld [vmem:[#allocation5 + $0x738] sm:$0xff]
        %v507 = vld [vmem:[#allocation5 + $0x740] sm:$0xff]
        %v508 = vld [vmem:[#allocation5 + $0x748] sm:$0xff]
        %v509 = vld [vmem:[#allocation5 + $0x750] sm:$0xff]
        %v510 = vld [vmem:[#allocation5 + $0x758] sm:$0xff]
        %v511 = vld [vmem:[#allocation5 + $0x760] sm:$0xff]
        %v512 = vld [vmem:[#allocation5 + $0x768] sm:$0xff]
        %v513 = vld [vmem:[#allocation5 + $0x770] sm:$0xff]
        %v514 = vld [vmem:[#allocation5 + $0x778] sm:$0xff]
        %v515 = vld [vmem:[#allocation5 + $0x780] sm:$0xff]
        %v516 = vld [vmem:[#allocation5 + $0x788] sm:$0xff]
        %v517 = vld [vmem:[#allocation5 + $0x790] sm:$0xff]
        %v518 = vld [vmem:[#allocation5 + $0x798] sm:$0xff]
        %v519 = vld [vmem:[#allocation5 + $0x7a0] sm:$0xff]
        %v520 = vld [vmem:[#allocation5 + $0x7a8] sm:$0xff]
        %v521 = vld [vmem:[#allocation5 + $0x7b0] sm:$0xff]
        %v522 = vld [vmem:[#allocation5 + $0x7b8] sm:$0xff]
        %v523 = vld [vmem:[#allocation5 + $0x7c0] sm:$0xff]
        %v524 = vld [vmem:[#allocation5 + $0x7c8] sm:$0xff]
        %v525 = vld [vmem:[#allocation5 + $0x7d0] sm:$0xff]
        %v526 = vld [vmem:[#allocation5 + $0x7d8] sm:$0xff]
        %v527 = vld [vmem:[#allocation5 + $0x7e0] sm:$0xff]
        %v528 = vld [vmem:[#allocation5 + $0x7e8] sm:$0xff]
        %v529 = vld [vmem:[#allocation5 + $0x7f0] sm:$0xff]
        %v530 = vld [vmem:[#allocation5 + $0x7f8] sm:$0xff]
        %v531 = vld [vmem:[#allocation5 + $0x800] sm:$0xff]
        %v532 = vld [vmem:[#allocation5 + $0x808] sm:$0xff]
        %v533 = vld [vmem:[#allocation5 + $0x810] sm:$0xff]
        %v534 = vld [vmem:[#allocation5 + $0x818] sm:$0xff]
        %v535 = vld [vmem:[#allocation5 + $0x820] sm:$0xff]
        %v536 = vld [vmem:[#allocation5 + $0x828] sm:$0xff]
        %v537 = vld [vmem:[#allocation5 + $0x830] sm:$0xff]
        %v538 = vld [vmem:[#allocation5 + $0x838] sm:$0xff]
        %v539 = vld [vmem:[#allocation5 + $0x840] sm:$0xff]
        %v540 = vld [vmem:[#allocation5 + $0x848] sm:$0xff]
        %v541 = vld [vmem:[#allocation5 + $0x850] sm:$0xff]
        %v542 = vld [vmem:[#allocation5 + $0x858] sm:$0xff]
        %v543 = vld [vmem:[#allocation5 + $0x860] sm:$0xff]
        %v544 = vld [vmem:[#allocation5 + $0x868] sm:$0xff]
        %v545 = vld [vmem:[#allocation5 + $0x870] sm:$0xff]
        %v546 = vld [vmem:[#allocation5 + $0x878] sm:$0xff]
        %v547 = vld [vmem:[#allocation5 + $0x880] sm:$0xff]
        %v548 = vld [vmem:[#allocation5 + $0x888] sm:$0xff]
        %v549 = vld [vmem:[#allocation5 + $0x890] sm:$0xff]
        %v550 = vld [vmem:[#allocation5 + $0x898] sm:$0xff]
        %v551 = vld [vmem:[#allocation5 + $0x8a0] sm:$0xff]
        %v552 = vld [vmem:[#allocation5 + $0x8a8] sm:$0xff]
        %v553 = vld [vmem:[#allocation5 + $0x8b0] sm:$0xff]
        %v554 = vld [vmem:[#allocation5 + $0x8b8] sm:$0xff]
        %v555 = vld [vmem:[#allocation5 + $0x8c0] sm:$0xff]
        %v556 = vld [vmem:[#allocation5 + $0x8c8] sm:$0xff]
        %v557 = vld [vmem:[#allocation5 + $0x8d0] sm:$0xff]
        %v558 = vld [vmem:[#allocation5 + $0x8d8] sm:$0xff]
        %v559 = vld [vmem:[#allocation5 + $0x8e0] sm:$0xff]
        %v560 = vld [vmem:[#allocation5 + $0x8e8] sm:$0xff]
        %v561 = vld [vmem:[#allocation5 + $0x8f0] sm:$0xff]
        %v562 = vld [vmem:[#allocation5 + $0x8f8] sm:$0xff]
        %v563 = vld [vmem:[#allocation5 + $0x900] sm:$0xff]
        %v564 = vld [vmem:[#allocation5 + $0x908] sm:$0xff]
        %v565 = vld [vmem:[#allocation5 + $0x910] sm:$0xff]
        %v566 = vld [vmem:[#allocation5 + $0x918] sm:$0xff]
        %v567 = vld [vmem:[#allocation5 + $0x920] sm:$0xff]
        %v568 = vld [vmem:[#allocation5 + $0x928] sm:$0xff]
        %v569 = vld [vmem:[#allocation5 + $0x930] sm:$0xff]
        %v570 = vld [vmem:[#allocation5 + $0x938] sm:$0xff]
        %v571 = vld [vmem:[#allocation5 + $0x940] sm:$0xff]
        %v572 = vld [vmem:[#allocation5 + $0x948] sm:$0xff]
        %v573 = vld [vmem:[#allocation5 + $0x950] sm:$0xff]
        %v574 = vld [vmem:[#allocation5 + $0x958] sm:$0xff]
        %v575 = vld [vmem:[#allocation5 + $0x960] sm:$0xff]
        %v576 = vld [vmem:[#allocation5 + $0x968] sm:$0xff]
        %v577 = vld [vmem:[#allocation5 + $0x970] sm:$0xff]
        %v578 = vld [vmem:[#allocation5 + $0x978] sm:$0xff]
        %v579 = vld [vmem:[#allocation5 + $0x980] sm:$0xff]
        %v580 = vld [vmem:[#allocation5 + $0x988] sm:$0xff]
        %v581 = vld [vmem:[#allocation5 + $0x990] sm:$0xff]
        %v582 = vld [vmem:[#allocation5 + $0x998] sm:$0xff]
        %v583 = vld [vmem:[#allocation5 + $0x9a0] sm:$0xff]
        %v584 = vld [vmem:[#allocation5 + $0x9a8] sm:$0xff]
        %v585 = vld [vmem:[#allocation5 + $0x9b0] sm:$0xff]
        %v586 = vld [vmem:[#allocation5 + $0x9b8] sm:$0xff]
        %v587 = vld [vmem:[#allocation5 + $0x9c0] sm:$0xff]
        %v588 = vld [vmem:[#allocation5 + $0x9c8] sm:$0xff]
        %v589 = vld [vmem:[#allocation5 + $0x9d0] sm:$0xff]
        %v590 = vld [vmem:[#allocation5 + $0x9d8] sm:$0xff]
        %v591 = vld [vmem:[#allocation5 + $0x9e0] sm:$0xff]
        %v592 = vld [vmem:[#allocation5 + $0x9e8] sm:$0xff]
        %v593 = vld [vmem:[#allocation5 + $0x9f0] sm:$0xff]
        %v594 = vld [vmem:[#allocation5 + $0x9f8] sm:$0xff]
        %v595 = vld [vmem:[#allocation5 + $0xa00] sm:$0xff]
        %v596 = vld [vmem:[#allocation5 + $0xa08] sm:$0xff]
        %v597 = vld [vmem:[#allocation5 + $0xa10] sm:$0xff]
        %v598 = vld [vmem:[#allocation5 + $0xa18] sm:$0xff]
        %v599 = vld [vmem:[#allocation5 + $0xa20] sm:$0xff]
        %v600 = vld [vmem:[#allocation5 + $0xa28] sm:$0xff]
        %v601 = vld [vmem:[#allocation5 + $0xa30] sm:$0xff]
        %v602 = vld [vmem:[#allocation5 + $0xa38] sm:$0xff]
        %v603 = vld [vmem:[#allocation5 + $0xa40] sm:$0xff]
        %v604 = vld [vmem:[#allocation5 + $0xa48] sm:$0xff]
        %v605 = vld [vmem:[#allocation5 + $0xa50] sm:$0xff]
        %v606 = vld [vmem:[#allocation5 + $0xa58] sm:$0xff]
        %v607 = vld [vmem:[#allocation5 + $0xa60] sm:$0xff]
        %v608 = vld [vmem:[#allocation5 + $0xa68] sm:$0xff]
        %v609 = vld [vmem:[#allocation5 + $0xa70] sm:$0xff]
        %v610 = vld [vmem:[#allocation5 + $0xa78] sm:$0xff]
        %v611 = vld [vmem:[#allocation5 + $0xa80] sm:$0xff]
        %v612 = vld [vmem:[#allocation5 + $0xa88] sm:$0xff]
        %v613 = vld [vmem:[#allocation5 + $0xa90] sm:$0xff]
        %v614 = vld [vmem:[#allocation5 + $0xa98] sm:$0xff]
        %v615 = vld [vmem:[#allocation5 + $0xaa0] sm:$0xff]
        %v616 = vld [vmem:[#allocation5 + $0xaa8] sm:$0xff]
        %v617 = vld [vmem:[#allocation5 + $0xab0] sm:$0xff]
        %v618 = vld [vmem:[#allocation5 + $0xab8] sm:$0xff]
        %v619 = vld [vmem:[#allocation5 + $0xac0] sm:$0xff]
        %v620 = vld [vmem:[#allocation5 + $0xac8] sm:$0xff]
        %v621 = vld [vmem:[#allocation5 + $0xad0] sm:$0xff]
        %v622 = vld [vmem:[#allocation5 + $0xad8] sm:$0xff]
        %v623 = vld [vmem:[#allocation5 + $0xae0] sm:$0xff]
        %v624 = vld [vmem:[#allocation5 + $0xae8] sm:$0xff]
        %v625 = vld [vmem:[#allocation5 + $0xaf0] sm:$0xff]
        %v626 = vld [vmem:[#allocation5 + $0xaf8] sm:$0xff]
        %v627 = vld [vmem:[#allocation5 + $0xb00] sm:$0xff]
        %v628 = vld [vmem:[#allocation5 + $0xb08] sm:$0xff]
        %v629 = vld [vmem:[#allocation5 + $0xb10] sm:$0xff]
        %v630 = vld [vmem:[#allocation5 + $0xb18] sm:$0xff]
        %v631 = vld [vmem:[#allocation5 + $0xb20] sm:$0xff]
        %v632 = vld [vmem:[#allocation5 + $0xb28] sm:$0xff]
        %v633 = vld [vmem:[#allocation5 + $0xb30] sm:$0xff]
        %v634 = vld [vmem:[#allocation5 + $0xb38] sm:$0xff]
        %v635 = vld [vmem:[#allocation5 + $0xb40] sm:$0xff]
        %v636 = vld [vmem:[#allocation5 + $0xb48] sm:$0xff]
        %v637 = vld [vmem:[#allocation5 + $0xb50] sm:$0xff]
        %v638 = vld [vmem:[#allocation5 + $0xb58] sm:$0xff]
        %v639 = vld [vmem:[#allocation5 + $0xb60] sm:$0xff]
        %v640 = vld [vmem:[#allocation5 + $0xb68] sm:$0xff]
        %v641 = vld [vmem:[#allocation5 + $0xb70] sm:$0xff]
        %v642 = vld [vmem:[#allocation5 + $0xb78] sm:$0xff]
        %v643 = vld [vmem:[#allocation5 + $0xb80] sm:$0xff]
        %v644 = vld [vmem:[#allocation5 + $0xb88] sm:$0xff]
        %v645 = vld [vmem:[#allocation5 + $0xb90] sm:$0xff]
        %v646 = vld [vmem:[#allocation5 + $0xb98] sm:$0xff]
        %v647 = vld [vmem:[#allocation5 + $0xba0] sm:$0xff]
        %v648 = vld [vmem:[#allocation5 + $0xba8] sm:$0xff]
        %v649 = vld [vmem:[#allocation5 + $0xbb0] sm:$0xff]
        %v650 = vld [vmem:[#allocation5 + $0xbb8] sm:$0xff]
        %v651 = vld [vmem:[#allocation5 + $0xbc0] sm:$0xff]
        %v652 = vld [vmem:[#allocation5 + $0xbc8] sm:$0xff]
        %v653 = vld [vmem:[#allocation5 + $0xbd0] sm:$0xff]
        %v654 = vld [vmem:[#allocation5 + $0xbd8] sm:$0xff]
        %v655 = vld [vmem:[#allocation5 + $0xbe0] sm:$0xff]
        %v656 = vld [vmem:[#allocation5 + $0xbe8] sm:$0xff]
        %v657 = vld [vmem:[#allocation5 + $0xbf0] sm:$0xff]
        %v658 = vld [vmem:[#allocation5 + $0xbf8] sm:$0xff]
        %v675 = vunpack.c.l.b16 %v259
        %v676 = vunpack.c.h.b16 %v259
        %v677 = vunpack.c.l.b16 %v260
        %v678 = vunpack.c.h.b16 %v260
        %v679 = vunpack.c.l.b16 %v261
        %v680 = vunpack.c.h.b16 %v261
        %v681 = vunpack.c.l.b16 %v262
        %v682 = vunpack.c.h.b16 %v262
        %v683 = vunpack.c.l.b16 %v263
        %v684 = vunpack.c.h.b16 %v263
        %v685 = vunpack.c.l.b16 %v264
        %v686 = vunpack.c.h.b16 %v264
        %v687 = vunpack.c.l.b16 %v265
        %v688 = vunpack.c.h.b16 %v265
        %v689 = vunpack.c.l.b16 %v266
        %v690 = vunpack.c.h.b16 %v266
        %v691 = vunpack.c.l.b16 %v267
        %v692 = vunpack.c.h.b16 %v267
        %v693 = vunpack.c.l.b16 %v268
        %v694 = vunpack.c.h.b16 %v268
        %v695 = vunpack.c.l.b16 %v269
        %v696 = vunpack.c.h.b16 %v269
        %v697 = vunpack.c.l.b16 %v270
        %v698 = vunpack.c.h.b16 %v270
        %v699 = vunpack.c.l.b16 %v271
        %v700 = vunpack.c.h.b16 %v271
        %v701 = vunpack.c.l.b16 %v272
        %v702 = vunpack.c.h.b16 %v272
        %v703 = vunpack.c.l.b16 %v273
        %v704 = vunpack.c.h.b16 %v273
        %v705 = vunpack.c.l.b16 %v274
        %v706 = vunpack.c.h.b16 %v274
        %v707 = vpack.c.b16 %v679, %v675
        %v708 = vpack.c.b16 %v680, %v676
        %v709 = vpack.c.b16 %v681, %v677
        %v710 = vpack.c.b16 %v682, %v678
        %v711 = vpack.c.b16 %v687, %v683
        %v712 = vpack.c.b16 %v688, %v684
        %v713 = vpack.c.b16 %v689, %v685
        %v714 = vpack.c.b16 %v690, %v686
        %v715 = vpack.c.b16 %v695, %v691
        %v716 = vpack.c.b16 %v696, %v692
        %v717 = vpack.c.b16 %v697, %v693
        %v718 = vpack.c.b16 %v698, %v694
        %v719 = vpack.c.b16 %v703, %v699
        %v720 = vpack.c.b16 %v704, %v700
        %v721 = vpack.c.b16 %v705, %v701
        %v722 = vpack.c.b16 %v706, %v702
        %v1123 = vunpack.c.l.b16 %v275
        %v1124 = vunpack.c.h.b16 %v275
        %v1125 = vunpack.c.l.b16 %v276
        %v1126 = vunpack.c.h.b16 %v276
        %v1127 = vunpack.c.l.b16 %v277
        %v1128 = vunpack.c.h.b16 %v277
        %v1129 = vunpack.c.l.b16 %v278
        %v1130 = vunpack.c.h.b16 %v278
        %v1131 = vunpack.c.l.b16 %v279
        %v1132 = vunpack.c.h.b16 %v279
        %v1133 = vunpack.c.l.b16 %v280
        %v1134 = vunpack.c.h.b16 %v280
        %v1135 = vunpack.c.l.b16 %v281
        %v1136 = vunpack.c.h.b16 %v281
        %v1137 = vunpack.c.l.b16 %v282
        %v1138 = vunpack.c.h.b16 %v282
        %v1139 = vunpack.c.l.b16 %v283
        %v1140 = vunpack.c.h.b16 %v283
        %v1141 = vunpack.c.l.b16 %v284
        %v1142 = vunpack.c.h.b16 %v284
        %v1143 = vunpack.c.l.b16 %v285
        %v1144 = vunpack.c.h.b16 %v285
        %v1145 = vunpack.c.l.b16 %v286
        %v1146 = vunpack.c.h.b16 %v286
        %v1147 = vunpack.c.l.b16 %v287
        %v1148 = vunpack.c.h.b16 %v287
        %v1149 = vunpack.c.l.b16 %v288
        %v1150 = vunpack.c.h.b16 %v288
        %v1151 = vunpack.c.l.b16 %v289
        %v1152 = vunpack.c.h.b16 %v289
        %v1153 = vunpack.c.l.b16 %v290
        %v1154 = vunpack.c.h.b16 %v290
        %v1155 = vunpack.c.l.b16 %v291
        %v1156 = vunpack.c.h.b16 %v291
        %v1157 = vunpack.c.l.b16 %v292
        %v1158 = vunpack.c.h.b16 %v292
        %v1159 = vunpack.c.l.b16 %v293
        %v1160 = vunpack.c.h.b16 %v293
        %v1161 = vunpack.c.l.b16 %v294
        %v1162 = vunpack.c.h.b16 %v294
        %v1163 = vunpack.c.l.b16 %v295
        %v1164 = vunpack.c.h.b16 %v295
        %v1165 = vunpack.c.l.b16 %v296
        %v1166 = vunpack.c.h.b16 %v296
        %v1167 = vunpack.c.l.b16 %v297
        %v1168 = vunpack.c.h.b16 %v297
        %v1169 = vunpack.c.l.b16 %v298
        %v1170 = vunpack.c.h.b16 %v298
        %v1171 = vunpack.c.l.b16 %v299
        %v1172 = vunpack.c.h.b16 %v299
        %v1173 = vunpack.c.l.b16 %v300
        %v1174 = vunpack.c.h.b16 %v300
        %v1175 = vunpack.c.l.b16 %v301
        %v1176 = vunpack.c.h.b16 %v301
        %v1177 = vunpack.c.l.b16 %v302
        %v1178 = vunpack.c.h.b16 %v302
        %v1179 = vunpack.c.l.b16 %v303
        %v1180 = vunpack.c.h.b16 %v303
        %v1181 = vunpack.c.l.b16 %v304
        %v1182 = vunpack.c.h.b16 %v304
        %v1183 = vunpack.c.l.b16 %v305
        %v1184 = vunpack.c.h.b16 %v305
        %v1185 = vunpack.c.l.b16 %v306
        %v1186 = vunpack.c.h.b16 %v306
        %v1187 = vunpack.c.l.b16 %v307
        %v1188 = vunpack.c.h.b16 %v307
        %v1189 = vunpack.c.l.b16 %v308
        %v1190 = vunpack.c.h.b16 %v308
        %v1191 = vunpack.c.l.b16 %v309
        %v1192 = vunpack.c.h.b16 %v309
        %v1193 = vunpack.c.l.b16 %v310
        %v1194 = vunpack.c.h.b16 %v310
        %v1195 = vunpack.c.l.b16 %v311
        %v1196 = vunpack.c.h.b16 %v311
        %v1197 = vunpack.c.l.b16 %v312
        %v1198 = vunpack.c.h.b16 %v312
        %v1199 = vunpack.c.l.b16 %v313
        %v1200 = vunpack.c.h.b16 %v313
        %v1201 = vunpack.c.l.b16 %v314
        %v1202 = vunpack.c.h.b16 %v314
        %v1203 = vunpack.c.l.b16 %v315
        %v1204 = vunpack.c.h.b16 %v315
        %v1205 = vunpack.c.l.b16 %v316
        %v1206 = vunpack.c.h.b16 %v316
        %v1207 = vunpack.c.l.b16 %v317
        %v1208 = vunpack.c.h.b16 %v317
        %v1209 = vunpack.c.l.b16 %v318
        %v1210 = vunpack.c.h.b16 %v318
        %v1211 = vunpack.c.l.b16 %v319
        %v1212 = vunpack.c.h.b16 %v319
        %v1213 = vunpack.c.l.b16 %v320
        %v1214 = vunpack.c.h.b16 %v320
        %v1215 = vunpack.c.l.b16 %v321
        %v1216 = vunpack.c.h.b16 %v321
        %v1217 = vunpack.c.l.b16 %v322
        %v1218 = vunpack.c.h.b16 %v322
        %v1219 = vunpack.c.l.b16 %v323
        %v1220 = vunpack.c.h.b16 %v323
        %v1221 = vunpack.c.l.b16 %v324
        %v1222 = vunpack.c.h.b16 %v324
        %v1223 = vunpack.c.l.b16 %v325
        %v1224 = vunpack.c.h.b16 %v325
        %v1225 = vunpack.c.l.b16 %v326
        %v1226 = vunpack.c.h.b16 %v326
        %v1227 = vunpack.c.l.b16 %v327
        %v1228 = vunpack.c.h.b16 %v327
        %v1229 = vunpack.c.l.b16 %v328
        %v1230 = vunpack.c.h.b16 %v328
        %v1231 = vunpack.c.l.b16 %v329
        %v1232 = vunpack.c.h.b16 %v329
        %v1233 = vunpack.c.l.b16 %v330
        %v1234 = vunpack.c.h.b16 %v330
        %v1235 = vunpack.c.l.b16 %v331
        %v1236 = vunpack.c.h.b16 %v331
        %v1237 = vunpack.c.l.b16 %v332
        %v1238 = vunpack.c.h.b16 %v332
        %v1239 = vunpack.c.l.b16 %v333
        %v1240 = vunpack.c.h.b16 %v333
        %v1241 = vunpack.c.l.b16 %v334
        %v1242 = vunpack.c.h.b16 %v334
        %v1243 = vunpack.c.l.b16 %v335
        %v1244 = vunpack.c.h.b16 %v335
        %v1245 = vunpack.c.l.b16 %v336
        %v1246 = vunpack.c.h.b16 %v336
        %v1247 = vunpack.c.l.b16 %v337
        %v1248 = vunpack.c.h.b16 %v337
        %v1249 = vunpack.c.l.b16 %v338
        %v1250 = vunpack.c.h.b16 %v338
        %v1251 = vunpack.c.l.b16 %v339
        %v1252 = vunpack.c.h.b16 %v339
        %v1253 = vunpack.c.l.b16 %v340
        %v1254 = vunpack.c.h.b16 %v340
        %v1255 = vunpack.c.l.b16 %v341
        %v1256 = vunpack.c.h.b16 %v341
        %v1257 = vunpack.c.l.b16 %v342
        %v1258 = vunpack.c.h.b16 %v342
        %v1259 = vunpack.c.l.b16 %v343
        %v1260 = vunpack.c.h.b16 %v343
        %v1261 = vunpack.c.l.b16 %v344
        %v1262 = vunpack.c.h.b16 %v344
        %v1263 = vunpack.c.l.b16 %v345
        %v1264 = vunpack.c.h.b16 %v345
        %v1265 = vunpack.c.l.b16 %v346
        %v1266 = vunpack.c.h.b16 %v346
        %v1267 = vunpack.c.l.b16 %v347
        %v1268 = vunpack.c.h.b16 %v347
        %v1269 = vunpack.c.l.b16 %v348
        %v1270 = vunpack.c.h.b16 %v348
        %v1271 = vunpack.c.l.b16 %v349
        %v1272 = vunpack.c.h.b16 %v349
        %v1273 = vunpack.c.l.b16 %v350
        %v1274 = vunpack.c.h.b16 %v350
        %v1275 = vunpack.c.l.b16 %v351
        %v1276 = vunpack.c.h.b16 %v351
        %v1277 = vunpack.c.l.b16 %v352
        %v1278 = vunpack.c.h.b16 %v352
        %v1279 = vunpack.c.l.b16 %v353
        %v1280 = vunpack.c.h.b16 %v353
        %v1281 = vunpack.c.l.b16 %v354
        %v1282 = vunpack.c.h.b16 %v354
        %v1283 = vunpack.c.l.b16 %v355
        %v1284 = vunpack.c.h.b16 %v355
        %v1285 = vunpack.c.l.b16 %v356
        %v1286 = vunpack.c.h.b16 %v356
        %v1287 = vunpack.c.l.b16 %v357
        %v1288 = vunpack.c.h.b16 %v357
        %v1289 = vunpack.c.l.b16 %v358
        %v1290 = vunpack.c.h.b16 %v358
        %v1291 = vunpack.c.l.b16 %v359
        %v1292 = vunpack.c.h.b16 %v359
        %v1293 = vunpack.c.l.b16 %v360
        %v1294 = vunpack.c.h.b16 %v360
        %v1295 = vunpack.c.l.b16 %v361
        %v1296 = vunpack.c.h.b16 %v361
        %v1297 = vunpack.c.l.b16 %v362
        %v1298 = vunpack.c.h.b16 %v362
        %v1299 = vunpack.c.l.b16 %v363
        %v1300 = vunpack.c.h.b16 %v363
        %v1301 = vunpack.c.l.b16 %v364
        %v1302 = vunpack.c.h.b16 %v364
        %v1303 = vunpack.c.l.b16 %v365
        %v1304 = vunpack.c.h.b16 %v365
        %v1305 = vunpack.c.l.b16 %v366
        %v1306 = vunpack.c.h.b16 %v366
        %v1307 = vunpack.c.l.b16 %v367
        %v1308 = vunpack.c.h.b16 %v367
        %v1309 = vunpack.c.l.b16 %v368
        %v1310 = vunpack.c.h.b16 %v368
        %v1311 = vunpack.c.l.b16 %v369
        %v1312 = vunpack.c.h.b16 %v369
        %v1313 = vunpack.c.l.b16 %v370
        %v1314 = vunpack.c.h.b16 %v370
        %v1315 = vunpack.c.l.b16 %v371
        %v1316 = vunpack.c.h.b16 %v371
        %v1317 = vunpack.c.l.b16 %v372
        %v1318 = vunpack.c.h.b16 %v372
        %v1319 = vunpack.c.l.b16 %v373
        %v1320 = vunpack.c.h.b16 %v373
        %v1321 = vunpack.c.l.b16 %v374
        %v1322 = vunpack.c.h.b16 %v374
        %v1323 = vunpack.c.l.b16 %v375
        %v1324 = vunpack.c.h.b16 %v375
        %v1325 = vunpack.c.l.b16 %v376
        %v1326 = vunpack.c.h.b16 %v376
        %v1327 = vunpack.c.l.b16 %v377
        %v1328 = vunpack.c.h.b16 %v377
        %v1329 = vunpack.c.l.b16 %v378
        %v1330 = vunpack.c.h.b16 %v378
        %v1331 = vunpack.c.l.b16 %v379
        %v1332 = vunpack.c.h.b16 %v379
        %v1333 = vunpack.c.l.b16 %v380
        %v1334 = vunpack.c.h.b16 %v380
        %v1335 = vunpack.c.l.b16 %v381
        %v1336 = vunpack.c.h.b16 %v381
        %v1337 = vunpack.c.l.b16 %v382
        %v1338 = vunpack.c.h.b16 %v382
        %v1339 = vunpack.c.l.b16 %v383
        %v1340 = vunpack.c.h.b16 %v383
        %v1341 = vunpack.c.l.b16 %v384
        %v1342 = vunpack.c.h.b16 %v384
        %v1343 = vunpack.c.l.b16 %v385
        %v1344 = vunpack.c.h.b16 %v385
        %v1345 = vunpack.c.l.b16 %v386
        %v1346 = vunpack.c.h.b16 %v386
        %v1347 = vunpack.c.l.b16 %v387
        %v1348 = vunpack.c.h.b16 %v387
        %v1349 = vunpack.c.l.b16 %v388
        %v1350 = vunpack.c.h.b16 %v388
        %v1351 = vunpack.c.l.b16 %v389
        %v1352 = vunpack.c.h.b16 %v389
        %v1353 = vunpack.c.l.b16 %v390
        %v1354 = vunpack.c.h.b16 %v390
        %v1355 = vunpack.c.l.b16 %v391
        %v1356 = vunpack.c.h.b16 %v391
        %v1357 = vunpack.c.l.b16 %v392
        %v1358 = vunpack.c.h.b16 %v392
        %v1359 = vunpack.c.l.b16 %v393
        %v1360 = vunpack.c.h.b16 %v393
        %v1361 = vunpack.c.l.b16 %v394
        %v1362 = vunpack.c.h.b16 %v394
        %v1363 = vunpack.c.l.b16 %v395
        %v1364 = vunpack.c.h.b16 %v395
        %v1365 = vunpack.c.l.b16 %v396
        %v1366 = vunpack.c.h.b16 %v396
        %v1367 = vunpack.c.l.b16 %v397
        %v1368 = vunpack.c.h.b16 %v397
        %v1369 = vunpack.c.l.b16 %v398
        %v1370 = vunpack.c.h.b16 %v398
        %v1371 = vunpack.c.l.b16 %v399
        %v1372 = vunpack.c.h.b16 %v399
        %v1373 = vunpack.c.l.b16 %v400
        %v1374 = vunpack.c.h.b16 %v400
        %v1375 = vunpack.c.l.b16 %v401
        %v1376 = vunpack.c.h.b16 %v401
        %v1377 = vunpack.c.l.b16 %v402
        %v1378 = vunpack.c.h.b16 %v402
        %v1379 = vunpack.c.l.b16 %v403
        %v1380 = vunpack.c.h.b16 %v403
        %v1381 = vunpack.c.l.b16 %v404
        %v1382 = vunpack.c.h.b16 %v404
        %v1383 = vunpack.c.l.b16 %v405
        %v1384 = vunpack.c.h.b16 %v405
        %v1385 = vunpack.c.l.b16 %v406
        %v1386 = vunpack.c.h.b16 %v406
        %v1387 = vunpack.c.l.b16 %v407
        %v1388 = vunpack.c.h.b16 %v407
        %v1389 = vunpack.c.l.b16 %v408
        %v1390 = vunpack.c.h.b16 %v408
        %v1391 = vunpack.c.l.b16 %v409
        %v1392 = vunpack.c.h.b16 %v409
        %v1393 = vunpack.c.l.b16 %v410
        %v1394 = vunpack.c.h.b16 %v410
        %v1395 = vunpack.c.l.b16 %v411
        %v1396 = vunpack.c.h.b16 %v411
        %v1397 = vunpack.c.l.b16 %v412
        %v1398 = vunpack.c.h.b16 %v412
        %v1399 = vunpack.c.l.b16 %v413
        %v1400 = vunpack.c.h.b16 %v413
        %v1401 = vunpack.c.l.b16 %v414
        %v1402 = vunpack.c.h.b16 %v414
        %v1403 = vunpack.c.l.b16 %v415
        %v1404 = vunpack.c.h.b16 %v415
        %v1405 = vunpack.c.l.b16 %v416
        %v1406 = vunpack.c.h.b16 %v416
        %v1407 = vunpack.c.l.b16 %v417
        %v1408 = vunpack.c.h.b16 %v417
        %v1409 = vunpack.c.l.b16 %v418
        %v1410 = vunpack.c.h.b16 %v418
        %v1411 = vunpack.c.l.b16 %v419
        %v1412 = vunpack.c.h.b16 %v419
        %v1413 = vunpack.c.l.b16 %v420
        %v1414 = vunpack.c.h.b16 %v420
        %v1415 = vunpack.c.l.b16 %v421
        %v1416 = vunpack.c.h.b16 %v421
        %v1417 = vunpack.c.l.b16 %v422
        %v1418 = vunpack.c.h.b16 %v422
        %v1419 = vunpack.c.l.b16 %v423
        %v1420 = vunpack.c.h.b16 %v423
        %v1421 = vunpack.c.l.b16 %v424
        %v1422 = vunpack.c.h.b16 %v424
        %v1423 = vunpack.c.l.b16 %v425
        %v1424 = vunpack.c.h.b16 %v425
        %v1425 = vunpack.c.l.b16 %v426
        %v1426 = vunpack.c.h.b16 %v426
        %v1427 = vunpack.c.l.b16 %v427
        %v1428 = vunpack.c.h.b16 %v427
        %v1429 = vunpack.c.l.b16 %v428
        %v1430 = vunpack.c.h.b16 %v428
        %v1431 = vunpack.c.l.b16 %v429
        %v1432 = vunpack.c.h.b16 %v429
        %v1433 = vunpack.c.l.b16 %v430
        %v1434 = vunpack.c.h.b16 %v430
        %v1435 = vunpack.c.l.b16 %v431
        %v1436 = vunpack.c.h.b16 %v431
        %v1437 = vunpack.c.l.b16 %v432
        %v1438 = vunpack.c.h.b16 %v432
        %v1439 = vunpack.c.l.b16 %v433
        %v1440 = vunpack.c.h.b16 %v433
        %v1441 = vunpack.c.l.b16 %v434
        %v1442 = vunpack.c.h.b16 %v434
        %v1443 = vunpack.c.l.b16 %v435
        %v1444 = vunpack.c.h.b16 %v435
        %v1445 = vunpack.c.l.b16 %v436
        %v1446 = vunpack.c.h.b16 %v436
        %v1447 = vunpack.c.l.b16 %v437
        %v1448 = vunpack.c.h.b16 %v437
        %v1449 = vunpack.c.l.b16 %v438
        %v1450 = vunpack.c.h.b16 %v438
        %v1451 = vunpack.c.l.b16 %v439
        %v1452 = vunpack.c.h.b16 %v439
        %v1453 = vunpack.c.l.b16 %v440
        %v1454 = vunpack.c.h.b16 %v440
        %v1455 = vunpack.c.l.b16 %v441
        %v1456 = vunpack.c.h.b16 %v441
        %v1457 = vunpack.c.l.b16 %v442
        %v1458 = vunpack.c.h.b16 %v442
        %v1459 = vunpack.c.l.b16 %v443
        %v1460 = vunpack.c.h.b16 %v443
        %v1461 = vunpack.c.l.b16 %v444
        %v1462 = vunpack.c.h.b16 %v444
        %v1463 = vunpack.c.l.b16 %v445
        %v1464 = vunpack.c.h.b16 %v445
        %v1465 = vunpack.c.l.b16 %v446
        %v1466 = vunpack.c.h.b16 %v446
        %v1467 = vunpack.c.l.b16 %v447
        %v1468 = vunpack.c.h.b16 %v447
        %v1469 = vunpack.c.l.b16 %v448
        %v1470 = vunpack.c.h.b16 %v448
        %v1471 = vunpack.c.l.b16 %v449
        %v1472 = vunpack.c.h.b16 %v449
        %v1473 = vunpack.c.l.b16 %v450
        %v1474 = vunpack.c.h.b16 %v450
        %v1475 = vunpack.c.l.b16 %v451
        %v1476 = vunpack.c.h.b16 %v451
        %v1477 = vunpack.c.l.b16 %v452
        %v1478 = vunpack.c.h.b16 %v452
        %v1479 = vunpack.c.l.b16 %v453
        %v1480 = vunpack.c.h.b16 %v453
        %v1481 = vunpack.c.l.b16 %v454
        %v1482 = vunpack.c.h.b16 %v454
        %v1483 = vunpack.c.l.b16 %v455
        %v1484 = vunpack.c.h.b16 %v455
        %v1485 = vunpack.c.l.b16 %v456
        %v1486 = vunpack.c.h.b16 %v456
        %v1487 = vunpack.c.l.b16 %v457
        %v1488 = vunpack.c.h.b16 %v457
        %v1489 = vunpack.c.l.b16 %v458
        %v1490 = vunpack.c.h.b16 %v458
        %v1491 = vunpack.c.l.b16 %v459
        %v1492 = vunpack.c.h.b16 %v459
        %v1493 = vunpack.c.l.b16 %v460
        %v1494 = vunpack.c.h.b16 %v460
        %v1495 = vunpack.c.l.b16 %v461
        %v1496 = vunpack.c.h.b16 %v461
        %v1497 = vunpack.c.l.b16 %v462
        %v1498 = vunpack.c.h.b16 %v462
        %v1499 = vunpack.c.l.b16 %v463
        %v1500 = vunpack.c.h.b16 %v463
        %v1501 = vunpack.c.l.b16 %v464
        %v1502 = vunpack.c.h.b16 %v464
        %v1503 = vunpack.c.l.b16 %v465
        %v1504 = vunpack.c.h.b16 %v465
        %v1505 = vunpack.c.l.b16 %v466
        %v1506 = vunpack.c.h.b16 %v466
        %v1507 = vunpack.c.l.b16 %v467
        %v1508 = vunpack.c.h.b16 %v467
        %v1509 = vunpack.c.l.b16 %v468
        %v1510 = vunpack.c.h.b16 %v468
        %v1511 = vunpack.c.l.b16 %v469
        %v1512 = vunpack.c.h.b16 %v469
        %v1513 = vunpack.c.l.b16 %v470
        %v1514 = vunpack.c.h.b16 %v470
        %v1515 = vunpack.c.l.b16 %v471
        %v1516 = vunpack.c.h.b16 %v471
        %v1517 = vunpack.c.l.b16 %v472
        %v1518 = vunpack.c.h.b16 %v472
        %v1519 = vunpack.c.l.b16 %v473
        %v1520 = vunpack.c.h.b16 %v473
        %v1521 = vunpack.c.l.b16 %v474
        %v1522 = vunpack.c.h.b16 %v474
        %v1523 = vunpack.c.l.b16 %v475
        %v1524 = vunpack.c.h.b16 %v475
        %v1525 = vunpack.c.l.b16 %v476
        %v1526 = vunpack.c.h.b16 %v476
        %v1527 = vunpack.c.l.b16 %v477
        %v1528 = vunpack.c.h.b16 %v477
        %v1529 = vunpack.c.l.b16 %v478
        %v1530 = vunpack.c.h.b16 %v478
        %v1531 = vunpack.c.l.b16 %v479
        %v1532 = vunpack.c.h.b16 %v479
        %v1533 = vunpack.c.l.b16 %v480
        %v1534 = vunpack.c.h.b16 %v480
        %v1535 = vunpack.c.l.b16 %v481
        %v1536 = vunpack.c.h.b16 %v481
        %v1537 = vunpack.c.l.b16 %v482
        %v1538 = vunpack.c.h.b16 %v482
        %v1539 = vunpack.c.l.b16 %v483
        %v1540 = vunpack.c.h.b16 %v483
        %v1541 = vunpack.c.l.b16 %v484
        %v1542 = vunpack.c.h.b16 %v484
        %v1543 = vunpack.c.l.b16 %v485
        %v1544 = vunpack.c.h.b16 %v485
        %v1545 = vunpack.c.l.b16 %v486
        %v1546 = vunpack.c.h.b16 %v486
        %v1547 = vunpack.c.l.b16 %v487
        %v1548 = vunpack.c.h.b16 %v487
        %v1549 = vunpack.c.l.b16 %v488
        %v1550 = vunpack.c.h.b16 %v488
        %v1551 = vunpack.c.l.b16 %v489
        %v1552 = vunpack.c.h.b16 %v489
        %v1553 = vunpack.c.l.b16 %v490
        %v1554 = vunpack.c.h.b16 %v490
        %v1555 = vunpack.c.l.b16 %v491
        %v1556 = vunpack.c.h.b16 %v491
        %v1557 = vunpack.c.l.b16 %v492
        %v1558 = vunpack.c.h.b16 %v492
        %v1559 = vunpack.c.l.b16 %v493
        %v1560 = vunpack.c.h.b16 %v493
        %v1561 = vunpack.c.l.b16 %v494
        %v1562 = vunpack.c.h.b16 %v494
        %v1563 = vunpack.c.l.b16 %v495
        %v1564 = vunpack.c.h.b16 %v495
        %v1565 = vunpack.c.l.b16 %v496
        %v1566 = vunpack.c.h.b16 %v496
        %v1567 = vunpack.c.l.b16 %v497
        %v1568 = vunpack.c.h.b16 %v497
        %v1569 = vunpack.c.l.b16 %v498
        %v1570 = vunpack.c.h.b16 %v498
        %v1571 = vunpack.c.l.b16 %v499
        %v1572 = vunpack.c.h.b16 %v499
        %v1573 = vunpack.c.l.b16 %v500
        %v1574 = vunpack.c.h.b16 %v500
        %v1575 = vunpack.c.l.b16 %v501
        %v1576 = vunpack.c.h.b16 %v501
        %v1577 = vunpack.c.l.b16 %v502
        %v1578 = vunpack.c.h.b16 %v502
        %v1579 = vunpack.c.l.b16 %v503
        %v1580 = vunpack.c.h.b16 %v503
        %v1581 = vunpack.c.l.b16 %v504
        %v1582 = vunpack.c.h.b16 %v504
        %v1583 = vunpack.c.l.b16 %v505
        %v1584 = vunpack.c.h.b16 %v505
        %v1585 = vunpack.c.l.b16 %v506
        %v1586 = vunpack.c.h.b16 %v506
        %v1587 = vunpack.c.l.b16 %v507
        %v1588 = vunpack.c.h.b16 %v507
        %v1589 = vunpack.c.l.b16 %v508
        %v1590 = vunpack.c.h.b16 %v508
        %v1591 = vunpack.c.l.b16 %v509
        %v1592 = vunpack.c.h.b16 %v509
        %v1593 = vunpack.c.l.b16 %v510
        %v1594 = vunpack.c.h.b16 %v510
        %v1595 = vunpack.c.l.b16 %v511
        %v1596 = vunpack.c.h.b16 %v511
        %v1597 = vunpack.c.l.b16 %v512
        %v1598 = vunpack.c.h.b16 %v512
        %v1599 = vunpack.c.l.b16 %v513
        %v1600 = vunpack.c.h.b16 %v513
        %v1601 = vunpack.c.l.b16 %v514
        %v1602 = vunpack.c.h.b16 %v514
        %v1603 = vunpack.c.l.b16 %v515
        %v1604 = vunpack.c.h.b16 %v515
        %v1605 = vunpack.c.l.b16 %v516
        %v1606 = vunpack.c.h.b16 %v516
        %v1607 = vunpack.c.l.b16 %v517
        %v1608 = vunpack.c.h.b16 %v517
        %v1609 = vunpack.c.l.b16 %v518
        %v1610 = vunpack.c.h.b16 %v518
        %v1611 = vunpack.c.l.b16 %v519
        %v1612 = vunpack.c.h.b16 %v519
        %v1613 = vunpack.c.l.b16 %v520
        %v1614 = vunpack.c.h.b16 %v520
        %v1615 = vunpack.c.l.b16 %v521
        %v1616 = vunpack.c.h.b16 %v521
        %v1617 = vunpack.c.l.b16 %v522
        %v1618 = vunpack.c.h.b16 %v522
        %v1619 = vunpack.c.l.b16 %v523
        %v1620 = vunpack.c.h.b16 %v523
        %v1621 = vunpack.c.l.b16 %v524
        %v1622 = vunpack.c.h.b16 %v524
        %v1623 = vunpack.c.l.b16 %v525
        %v1624 = vunpack.c.h.b16 %v525
        %v1625 = vunpack.c.l.b16 %v526
        %v1626 = vunpack.c.h.b16 %v526
        %v1627 = vunpack.c.l.b16 %v527
        %v1628 = vunpack.c.h.b16 %v527
        %v1629 = vunpack.c.l.b16 %v528
        %v1630 = vunpack.c.h.b16 %v528
        %v1631 = vunpack.c.l.b16 %v529
        %v1632 = vunpack.c.h.b16 %v529
        %v1633 = vunpack.c.l.b16 %v530
        %v1634 = vunpack.c.h.b16 %v530
        %v1635 = vunpack.c.l.b16 %v531
        %v1636 = vunpack.c.h.b16 %v531
        %v1637 = vunpack.c.l.b16 %v532
        %v1638 = vunpack.c.h.b16 %v532
        %v1639 = vunpack.c.l.b16 %v533
        %v1640 = vunpack.c.h.b16 %v533
        %v1641 = vunpack.c.l.b16 %v534
        %v1642 = vunpack.c.h.b16 %v534
        %v1643 = vunpack.c.l.b16 %v535
        %v1644 = vunpack.c.h.b16 %v535
        %v1645 = vunpack.c.l.b16 %v536
        %v1646 = vunpack.c.h.b16 %v536
        %v1647 = vunpack.c.l.b16 %v537
        %v1648 = vunpack.c.h.b16 %v537
        %v1649 = vunpack.c.l.b16 %v538
        %v1650 = vunpack.c.h.b16 %v538
        %v1651 = vunpack.c.l.b16 %v539
        %v1652 = vunpack.c.h.b16 %v539
        %v1653 = vunpack.c.l.b16 %v540
        %v1654 = vunpack.c.h.b16 %v540
        %v1655 = vunpack.c.l.b16 %v541
        %v1656 = vunpack.c.h.b16 %v541
        %v1657 = vunpack.c.l.b16 %v542
        %v1658 = vunpack.c.h.b16 %v542
        %v1659 = vunpack.c.l.b16 %v543
        %v1660 = vunpack.c.h.b16 %v543
        %v1661 = vunpack.c.l.b16 %v544
        %v1662 = vunpack.c.h.b16 %v544
        %v1663 = vunpack.c.l.b16 %v545
        %v1664 = vunpack.c.h.b16 %v545
        %v1665 = vunpack.c.l.b16 %v546
        %v1666 = vunpack.c.h.b16 %v546
        %v1667 = vunpack.c.l.b16 %v547
        %v1668 = vunpack.c.h.b16 %v547
        %v1669 = vunpack.c.l.b16 %v548
        %v1670 = vunpack.c.h.b16 %v548
        %v1671 = vunpack.c.l.b16 %v549
        %v1672 = vunpack.c.h.b16 %v549
        %v1673 = vunpack.c.l.b16 %v550
        %v1674 = vunpack.c.h.b16 %v550
        %v1675 = vunpack.c.l.b16 %v551
        %v1676 = vunpack.c.h.b16 %v551
        %v1677 = vunpack.c.l.b16 %v552
        %v1678 = vunpack.c.h.b16 %v552
        %v1679 = vunpack.c.l.b16 %v553
        %v1680 = vunpack.c.h.b16 %v553
        %v1681 = vunpack.c.l.b16 %v554
        %v1682 = vunpack.c.h.b16 %v554
        %v1683 = vunpack.c.l.b16 %v555
        %v1684 = vunpack.c.h.b16 %v555
        %v1685 = vunpack.c.l.b16 %v556
        %v1686 = vunpack.c.h.b16 %v556
        %v1687 = vunpack.c.l.b16 %v557
        %v1688 = vunpack.c.h.b16 %v557
        %v1689 = vunpack.c.l.b16 %v558
        %v1690 = vunpack.c.h.b16 %v558
        %v1691 = vunpack.c.l.b16 %v559
        %v1692 = vunpack.c.h.b16 %v559
        %v1693 = vunpack.c.l.b16 %v560
        %v1694 = vunpack.c.h.b16 %v560
        %v1695 = vunpack.c.l.b16 %v561
        %v1696 = vunpack.c.h.b16 %v561
        %v1697 = vunpack.c.l.b16 %v562
        %v1698 = vunpack.c.h.b16 %v562
        %v1699 = vunpack.c.l.b16 %v563
        %v1700 = vunpack.c.h.b16 %v563
        %v1701 = vunpack.c.l.b16 %v564
        %v1702 = vunpack.c.h.b16 %v564
        %v1703 = vunpack.c.l.b16 %v565
        %v1704 = vunpack.c.h.b16 %v565
        %v1705 = vunpack.c.l.b16 %v566
        %v1706 = vunpack.c.h.b16 %v566
        %v1707 = vunpack.c.l.b16 %v567
        %v1708 = vunpack.c.h.b16 %v567
        %v1709 = vunpack.c.l.b16 %v568
        %v1710 = vunpack.c.h.b16 %v568
        %v1711 = vunpack.c.l.b16 %v569
        %v1712 = vunpack.c.h.b16 %v569
        %v1713 = vunpack.c.l.b16 %v570
        %v1714 = vunpack.c.h.b16 %v570
        %v1715 = vunpack.c.l.b16 %v571
        %v1716 = vunpack.c.h.b16 %v571
        %v1717 = vunpack.c.l.b16 %v572
        %v1718 = vunpack.c.h.b16 %v572
        %v1719 = vunpack.c.l.b16 %v573
        %v1720 = vunpack.c.h.b16 %v573
        %v1721 = vunpack.c.l.b16 %v574
        %v1722 = vunpack.c.h.b16 %v574
        %v1723 = vunpack.c.l.b16 %v575
        %v1724 = vunpack.c.h.b16 %v575
        %v1725 = vunpack.c.l.b16 %v576
        %v1726 = vunpack.c.h.b16 %v576
        %v1727 = vunpack.c.l.b16 %v577
        %v1728 = vunpack.c.h.b16 %v577
        %v1729 = vunpack.c.l.b16 %v578
        %v1730 = vunpack.c.h.b16 %v578
        %v1731 = vunpack.c.l.b16 %v579
        %v1732 = vunpack.c.h.b16 %v579
        %v1733 = vunpack.c.l.b16 %v580
        %v1734 = vunpack.c.h.b16 %v580
        %v1735 = vunpack.c.l.b16 %v581
        %v1736 = vunpack.c.h.b16 %v581
        %v1737 = vunpack.c.l.b16 %v582
        %v1738 = vunpack.c.h.b16 %v582
        %v1739 = vunpack.c.l.b16 %v583
        %v1740 = vunpack.c.h.b16 %v583
        %v1741 = vunpack.c.l.b16 %v584
        %v1742 = vunpack.c.h.b16 %v584
        %v1743 = vunpack.c.l.b16 %v585
        %v1744 = vunpack.c.h.b16 %v585
        %v1745 = vunpack.c.l.b16 %v586
        %v1746 = vunpack.c.h.b16 %v586
        %v1747 = vunpack.c.l.b16 %v587
        %v1748 = vunpack.c.h.b16 %v587
        %v1749 = vunpack.c.l.b16 %v588
        %v1750 = vunpack.c.h.b16 %v588
        %v1751 = vunpack.c.l.b16 %v589
        %v1752 = vunpack.c.h.b16 %v589
        %v1753 = vunpack.c.l.b16 %v590
        %v1754 = vunpack.c.h.b16 %v590
        %v1755 = vunpack.c.l.b16 %v591
        %v1756 = vunpack.c.h.b16 %v591
        %v1757 = vunpack.c.l.b16 %v592
        %v1758 = vunpack.c.h.b16 %v592
        %v1759 = vunpack.c.l.b16 %v593
        %v1760 = vunpack.c.h.b16 %v593
        %v1761 = vunpack.c.l.b16 %v594
        %v1762 = vunpack.c.h.b16 %v594
        %v1763 = vunpack.c.l.b16 %v595
        %v1764 = vunpack.c.h.b16 %v595
        %v1765 = vunpack.c.l.b16 %v596
        %v1766 = vunpack.c.h.b16 %v596
        %v1767 = vunpack.c.l.b16 %v597
        %v1768 = vunpack.c.h.b16 %v597
        %v1769 = vunpack.c.l.b16 %v598
        %v1770 = vunpack.c.h.b16 %v598
        %v1771 = vunpack.c.l.b16 %v599
        %v1772 = vunpack.c.h.b16 %v599
        %v1773 = vunpack.c.l.b16 %v600
        %v1774 = vunpack.c.h.b16 %v600
        %v1775 = vunpack.c.l.b16 %v601
        %v1776 = vunpack.c.h.b16 %v601
        %v1777 = vunpack.c.l.b16 %v602
        %v1778 = vunpack.c.h.b16 %v602
        %v1779 = vunpack.c.l.b16 %v603
        %v1780 = vunpack.c.h.b16 %v603
        %v1781 = vunpack.c.l.b16 %v604
        %v1782 = vunpack.c.h.b16 %v604
        %v1783 = vunpack.c.l.b16 %v605
        %v1784 = vunpack.c.h.b16 %v605
        %v1785 = vunpack.c.l.b16 %v606
        %v1786 = vunpack.c.h.b16 %v606
        %v1787 = vunpack.c.l.b16 %v607
        %v1788 = vunpack.c.h.b16 %v607
        %v1789 = vunpack.c.l.b16 %v608
        %v1790 = vunpack.c.h.b16 %v608
        %v1791 = vunpack.c.l.b16 %v609
        %v1792 = vunpack.c.h.b16 %v609
        %v1793 = vunpack.c.l.b16 %v610
        %v1794 = vunpack.c.h.b16 %v610
        %v1795 = vunpack.c.l.b16 %v611
        %v1796 = vunpack.c.h.b16 %v611
        %v1797 = vunpack.c.l.b16 %v612
        %v1798 = vunpack.c.h.b16 %v612
        %v1799 = vunpack.c.l.b16 %v613
        %v1800 = vunpack.c.h.b16 %v613
        %v1801 = vunpack.c.l.b16 %v614
        %v1802 = vunpack.c.h.b16 %v614
        %v1803 = vunpack.c.l.b16 %v615
        %v1804 = vunpack.c.h.b16 %v615
        %v1805 = vunpack.c.l.b16 %v616
        %v1806 = vunpack.c.h.b16 %v616
        %v1807 = vunpack.c.l.b16 %v617
        %v1808 = vunpack.c.h.b16 %v617
        %v1809 = vunpack.c.l.b16 %v618
        %v1810 = vunpack.c.h.b16 %v618
        %v1811 = vunpack.c.l.b16 %v619
        %v1812 = vunpack.c.h.b16 %v619
        %v1813 = vunpack.c.l.b16 %v620
        %v1814 = vunpack.c.h.b16 %v620
        %v1815 = vunpack.c.l.b16 %v621
        %v1816 = vunpack.c.h.b16 %v621
        %v1817 = vunpack.c.l.b16 %v622
        %v1818 = vunpack.c.h.b16 %v622
        %v1819 = vunpack.c.l.b16 %v623
        %v1820 = vunpack.c.h.b16 %v623
        %v1821 = vunpack.c.l.b16 %v624
        %v1822 = vunpack.c.h.b16 %v624
        %v1823 = vunpack.c.l.b16 %v625
        %v1824 = vunpack.c.h.b16 %v625
        %v1825 = vunpack.c.l.b16 %v626
        %v1826 = vunpack.c.h.b16 %v626
        %v1827 = vunpack.c.l.b16 %v627
        %v1828 = vunpack.c.h.b16 %v627
        %v1829 = vunpack.c.l.b16 %v628
        %v1830 = vunpack.c.h.b16 %v628
        %v1831 = vunpack.c.l.b16 %v629
        %v1832 = vunpack.c.h.b16 %v629
        %v1833 = vunpack.c.l.b16 %v630
        %v1834 = vunpack.c.h.b16 %v630
        %v1835 = vunpack.c.l.b16 %v631
        %v1836 = vunpack.c.h.b16 %v631
        %v1837 = vunpack.c.l.b16 %v632
        %v1838 = vunpack.c.h.b16 %v632
        %v1839 = vunpack.c.l.b16 %v633
        %v1840 = vunpack.c.h.b16 %v633
        %v1841 = vunpack.c.l.b16 %v634
        %v1842 = vunpack.c.h.b16 %v634
        %v1843 = vunpack.c.l.b16 %v635
        %v1844 = vunpack.c.h.b16 %v635
        %v1845 = vunpack.c.l.b16 %v636
        %v1846 = vunpack.c.h.b16 %v636
        %v1847 = vunpack.c.l.b16 %v637
        %v1848 = vunpack.c.h.b16 %v637
        %v1849 = vunpack.c.l.b16 %v638
        %v1850 = vunpack.c.h.b16 %v638
        %v1851 = vunpack.c.l.b16 %v639
        %v1852 = vunpack.c.h.b16 %v639
        %v1853 = vunpack.c.l.b16 %v640
        %v1854 = vunpack.c.h.b16 %v640
        %v1855 = vunpack.c.l.b16 %v641
        %v1856 = vunpack.c.h.b16 %v641
        %v1857 = vunpack.c.l.b16 %v642
        %v1858 = vunpack.c.h.b16 %v642
        %v1859 = vunpack.c.l.b16 %v643
        %v1860 = vunpack.c.h.b16 %v643
        %v1861 = vunpack.c.l.b16 %v644
        %v1862 = vunpack.c.h.b16 %v644
        %v1863 = vunpack.c.l.b16 %v645
        %v1864 = vunpack.c.h.b16 %v645
        %v1865 = vunpack.c.l.b16 %v646
        %v1866 = vunpack.c.h.b16 %v646
        %v1867 = vunpack.c.l.b16 %v647
        %v1868 = vunpack.c.h.b16 %v647
        %v1869 = vunpack.c.l.b16 %v648
        %v1870 = vunpack.c.h.b16 %v648
        %v1871 = vunpack.c.l.b16 %v649
        %v1872 = vunpack.c.h.b16 %v649
        %v1873 = vunpack.c.l.b16 %v650
        %v1874 = vunpack.c.h.b16 %v650
        %v1875 = vunpack.c.l.b16 %v651
        %v1876 = vunpack.c.h.b16 %v651
        %v1877 = vunpack.c.l.b16 %v652
        %v1878 = vunpack.c.h.b16 %v652
        %v1879 = vunpack.c.l.b16 %v653
        %v1880 = vunpack.c.h.b16 %v653
        %v1881 = vunpack.c.l.b16 %v654
        %v1882 = vunpack.c.h.b16 %v654
        %v1883 = vunpack.c.l.b16 %v655
        %v1884 = vunpack.c.h.b16 %v655
        %v1885 = vunpack.c.l.b16 %v656
        %v1886 = vunpack.c.h.b16 %v656
        %v1887 = vunpack.c.l.b16 %v657
        %v1888 = vunpack.c.h.b16 %v657
        %v1889 = vunpack.c.l.b16 %v658
        %v1890 = vunpack.c.h.b16 %v658
        %v1891 = vpack.c.b16 %v1135, %v1123
        %v1892 = vpack.c.b16 %v1136, %v1124
        %v1893 = vpack.c.b16 %v1137, %v1125
        %v1894 = vpack.c.b16 %v1138, %v1126
        %v1895 = vpack.c.b16 %v1139, %v1127
        %v1896 = vpack.c.b16 %v1140, %v1128
        %v1897 = vpack.c.b16 %v1141, %v1129
        %v1898 = vpack.c.b16 %v1142, %v1130
        %v1899 = vpack.c.b16 %v1143, %v1131
        %v1900 = vpack.c.b16 %v1144, %v1132
        %v1901 = vpack.c.b16 %v1145, %v1133
        %v1902 = vpack.c.b16 %v1146, %v1134
        %v1903 = vpack.c.b16 %v1159, %v1147
        %v1904 = vpack.c.b16 %v1160, %v1148
        %v1905 = vpack.c.b16 %v1161, %v1149
        %v1906 = vpack.c.b16 %v1162, %v1150
        %v1907 = vpack.c.b16 %v1163, %v1151
        %v1908 = vpack.c.b16 %v1164, %v1152
        %v1909 = vpack.c.b16 %v1165, %v1153
        %v1910 = vpack.c.b16 %v1166, %v1154
        %v1911 = vpack.c.b16 %v1167, %v1155
        %v1912 = vpack.c.b16 %v1168, %v1156
        %v1913 = vpack.c.b16 %v1169, %v1157
        %v1914 = vpack.c.b16 %v1170, %v1158
        %v1915 = vpack.c.b16 %v1183, %v1171
        %v1916 = vpack.c.b16 %v1184, %v1172
        %v1917 = vpack.c.b16 %v1185, %v1173
        %v1918 = vpack.c.b16 %v1186, %v1174
        %v1919 = vpack.c.b16 %v1187, %v1175
        %v1920 = vpack.c.b16 %v1188, %v1176
        %v1921 = vpack.c.b16 %v1189, %v1177
        %v1922 = vpack.c.b16 %v1190, %v1178
        %v1923 = vpack.c.b16 %v1191, %v1179
        %v1924 = vpack.c.b16 %v1192, %v1180
        %v1925 = vpack.c.b16 %v1193, %v1181
        %v1926 = vpack.c.b16 %v1194, %v1182
        %v1927 = vpack.c.b16 %v1207, %v1195
        %v1928 = vpack.c.b16 %v1208, %v1196
        %v1929 = vpack.c.b16 %v1209, %v1197
        %v1930 = vpack.c.b16 %v1210, %v1198
        %v1931 = vpack.c.b16 %v1211, %v1199
        %v1932 = vpack.c.b16 %v1212, %v1200
        %v1933 = vpack.c.b16 %v1213, %v1201
        %v1934 = vpack.c.b16 %v1214, %v1202
        %v1935 = vpack.c.b16 %v1215, %v1203
        %v1936 = vpack.c.b16 %v1216, %v1204
        %v1937 = vpack.c.b16 %v1217, %v1205
        %v1938 = vpack.c.b16 %v1218, %v1206
        %v1939 = vpack.c.b16 %v1231, %v1219
        %v1940 = vpack.c.b16 %v1232, %v1220
        %v1941 = vpack.c.b16 %v1233, %v1221
        %v1942 = vpack.c.b16 %v1234, %v1222
        %v1943 = vpack.c.b16 %v1235, %v1223
        %v1944 = vpack.c.b16 %v1236, %v1224
        %v1945 = vpack.c.b16 %v1237, %v1225
        %v1946 = vpack.c.b16 %v1238, %v1226
        %v1947 = vpack.c.b16 %v1239, %v1227
        %v1948 = vpack.c.b16 %v1240, %v1228
        %v1949 = vpack.c.b16 %v1241, %v1229
        %v1950 = vpack.c.b16 %v1242, %v1230
        %v1951 = vpack.c.b16 %v1255, %v1243
        %v1952 = vpack.c.b16 %v1256, %v1244
        %v1953 = vpack.c.b16 %v1257, %v1245
        %v1954 = vpack.c.b16 %v1258, %v1246
        %v1955 = vpack.c.b16 %v1259, %v1247
        %v1956 = vpack.c.b16 %v1260, %v1248
        %v1957 = vpack.c.b16 %v1261, %v1249
        %v1958 = vpack.c.b16 %v1262, %v1250
        %v1959 = vpack.c.b16 %v1263, %v1251
        %v1960 = vpack.c.b16 %v1264, %v1252
        %v1961 = vpack.c.b16 %v1265, %v1253
        %v1962 = vpack.c.b16 %v1266, %v1254
        %v1963 = vpack.c.b16 %v1279, %v1267
        %v1964 = vpack.c.b16 %v1280, %v1268
        %v1965 = vpack.c.b16 %v1281, %v1269
        %v1966 = vpack.c.b16 %v1282, %v1270
        %v1967 = vpack.c.b16 %v1283, %v1271
        %v1968 = vpack.c.b16 %v1284, %v1272
        %v1969 = vpack.c.b16 %v1285, %v1273
        %v1970 = vpack.c.b16 %v1286, %v1274
        %v1971 = vpack.c.b16 %v1287, %v1275
        %v1972 = vpack.c.b16 %v1288, %v1276
        %v1973 = vpack.c.b16 %v1289, %v1277
        %v1974 = vpack.c.b16 %v1290, %v1278
        %v1975 = vpack.c.b16 %v1303, %v1291
        %v1976 = vpack.c.b16 %v1304, %v1292
        %v1977 = vpack.c.b16 %v1305, %v1293
        %v1978 = vpack.c.b16 %v1306, %v1294
        %v1979 = vpack.c.b16 %v1307, %v1295
        %v1980 = vpack.c.b16 %v1308, %v1296
        %v1981 = vpack.c.b16 %v1309, %v1297
        %v1982 = vpack.c.b16 %v1310, %v1298
        %v1983 = vpack.c.b16 %v1311, %v1299
        %v1984 = vpack.c.b16 %v1312, %v1300
        %v1985 = vpack.c.b16 %v1313, %v1301
        %v1986 = vpack.c.b16 %v1314, %v1302
        %v1987 = vpack.c.b16 %v1327, %v1315
        %v1988 = vpack.c.b16 %v1328, %v1316
        %v1989 = vpack.c.b16 %v1329, %v1317
        %v1990 = vpack.c.b16 %v1330, %v1318
        %v1991 = vpack.c.b16 %v1331, %v1319
        %v1992 = vpack.c.b16 %v1332, %v1320
        %v1993 = vpack.c.b16 %v1333, %v1321
        %v1994 = vpack.c.b16 %v1334, %v1322
        %v1995 = vpack.c.b16 %v1335, %v1323
        %v1996 = vpack.c.b16 %v1336, %v1324
        %v1997 = vpack.c.b16 %v1337, %v1325
        %v1998 = vpack.c.b16 %v1338, %v1326
        %v1999 = vpack.c.b16 %v1351, %v1339
        %v2000 = vpack.c.b16 %v1352, %v1340
        %v2001 = vpack.c.b16 %v1353, %v1341
        %v2002 = vpack.c.b16 %v1354, %v1342
        %v2003 = vpack.c.b16 %v1355, %v1343
        %v2004 = vpack.c.b16 %v1356, %v1344
        %v2005 = vpack.c.b16 %v1357, %v1345
        %v2006 = vpack.c.b16 %v1358, %v1346
        %v2007 = vpack.c.b16 %v1359, %v1347
        %v2008 = vpack.c.b16 %v1360, %v1348
        %v2009 = vpack.c.b16 %v1361, %v1349
        %v2010 = vpack.c.b16 %v1362, %v1350
        %v2011 = vpack.c.b16 %v1375, %v1363
        %v2012 = vpack.c.b16 %v1376, %v1364
        %v2013 = vpack.c.b16 %v1377, %v1365
        %v2014 = vpack.c.b16 %v1378, %v1366
        %v2015 = vpack.c.b16 %v1379, %v1367
        %v2016 = vpack.c.b16 %v1380, %v1368
        %v2017 = vpack.c.b16 %v1381, %v1369
        %v2018 = vpack.c.b16 %v1382, %v1370
        %v2019 = vpack.c.b16 %v1383, %v1371
        %v2020 = vpack.c.b16 %v1384, %v1372
        %v2021 = vpack.c.b16 %v1385, %v1373
        %v2022 = vpack.c.b16 %v1386, %v1374
        %v2023 = vpack.c.b16 %v1399, %v1387
        %v2024 = vpack.c.b16 %v1400, %v1388
        %v2025 = vpack.c.b16 %v1401, %v1389
        %v2026 = vpack.c.b16 %v1402, %v1390
        %v2027 = vpack.c.b16 %v1403, %v1391
        %v2028 = vpack.c.b16 %v1404, %v1392
        %v2029 = vpack.c.b16 %v1405, %v1393
        %v2030 = vpack.c.b16 %v1406, %v1394
        %v2031 = vpack.c.b16 %v1407, %v1395
        %v2032 = vpack.c.b16 %v1408, %v1396
        %v2033 = vpack.c.b16 %v1409, %v1397
        %v2034 = vpack.c.b16 %v1410, %v1398
        %v2035 = vpack.c.b16 %v1423, %v1411
        %v2036 = vpack.c.b16 %v1424, %v1412
        %v2037 = vpack.c.b16 %v1425, %v1413
        %v2038 = vpack.c.b16 %v1426, %v1414
        %v2039 = vpack.c.b16 %v1427, %v1415
        %v2040 = vpack.c.b16 %v1428, %v1416
        %v2041 = vpack.c.b16 %v1429, %v1417
        %v2042 = vpack.c.b16 %v1430, %v1418
        %v2043 = vpack.c.b16 %v1431, %v1419
        %v2044 = vpack.c.b16 %v1432, %v1420
        %v2045 = vpack.c.b16 %v1433, %v1421
        %v2046 = vpack.c.b16 %v1434, %v1422
        %v2047 = vpack.c.b16 %v1447, %v1435
        %v2048 = vpack.c.b16 %v1448, %v1436
        %v2049 = vpack.c.b16 %v1449, %v1437
        %v2050 = vpack.c.b16 %v1450, %v1438
        %v2051 = vpack.c.b16 %v1451, %v1439
        %v2052 = vpack.c.b16 %v1452, %v1440
        %v2053 = vpack.c.b16 %v1453, %v1441
        %v2054 = vpack.c.b16 %v1454, %v1442
        %v2055 = vpack.c.b16 %v1455, %v1443
        %v2056 = vpack.c.b16 %v1456, %v1444
        %v2057 = vpack.c.b16 %v1457, %v1445
        %v2058 = vpack.c.b16 %v1458, %v1446
        %v2059 = vpack.c.b16 %v1471, %v1459
        %v2060 = vpack.c.b16 %v1472, %v1460
        %v2061 = vpack.c.b16 %v1473, %v1461
        %v2062 = vpack.c.b16 %v1474, %v1462
        %v2063 = vpack.c.b16 %v1475, %v1463
        %v2064 = vpack.c.b16 %v1476, %v1464
        %v2065 = vpack.c.b16 %v1477, %v1465
        %v2066 = vpack.c.b16 %v1478, %v1466
        %v2067 = vpack.c.b16 %v1479, %v1467
        %v2068 = vpack.c.b16 %v1480, %v1468
        %v2069 = vpack.c.b16 %v1481, %v1469
        %v2070 = vpack.c.b16 %v1482, %v1470
        %v2071 = vpack.c.b16 %v1495, %v1483
        %v2072 = vpack.c.b16 %v1496, %v1484
        %v2073 = vpack.c.b16 %v1497, %v1485
        %v2074 = vpack.c.b16 %v1498, %v1486
        %v2075 = vpack.c.b16 %v1499, %v1487
        %v2076 = vpack.c.b16 %v1500, %v1488
        %v2077 = vpack.c.b16 %v1501, %v1489
        %v2078 = vpack.c.b16 %v1502, %v1490
        %v2079 = vpack.c.b16 %v1503, %v1491
        %v2080 = vpack.c.b16 %v1504, %v1492
        %v2081 = vpack.c.b16 %v1505, %v1493
        %v2082 = vpack.c.b16 %v1506, %v1494
        %v2083 = vpack.c.b16 %v1519, %v1507
        %v2084 = vpack.c.b16 %v1520, %v1508
        %v2085 = vpack.c.b16 %v1521, %v1509
        %v2086 = vpack.c.b16 %v1522, %v1510
        %v2087 = vpack.c.b16 %v1523, %v1511
        %v2088 = vpack.c.b16 %v1524, %v1512
        %v2089 = vpack.c.b16 %v1525, %v1513
        %v2090 = vpack.c.b16 %v1526, %v1514
        %v2091 = vpack.c.b16 %v1527, %v1515
        %v2092 = vpack.c.b16 %v1528, %v1516
        %v2093 = vpack.c.b16 %v1529, %v1517
        %v2094 = vpack.c.b16 %v1530, %v1518
        %v2095 = vpack.c.b16 %v1543, %v1531
        %v2096 = vpack.c.b16 %v1544, %v1532
        %v2097 = vpack.c.b16 %v1545, %v1533
        %v2098 = vpack.c.b16 %v1546, %v1534
        %v2099 = vpack.c.b16 %v1547, %v1535
        %v2100 = vpack.c.b16 %v1548, %v1536
        %v2101 = vpack.c.b16 %v1549, %v1537
        %v2102 = vpack.c.b16 %v1550, %v1538
        %v2103 = vpack.c.b16 %v1551, %v1539
        %v2104 = vpack.c.b16 %v1552, %v1540
        %v2105 = vpack.c.b16 %v1553, %v1541
        %v2106 = vpack.c.b16 %v1554, %v1542
        %v2107 = vpack.c.b16 %v1567, %v1555
        %v2108 = vpack.c.b16 %v1568, %v1556
        %v2109 = vpack.c.b16 %v1569, %v1557
        %v2110 = vpack.c.b16 %v1570, %v1558
        %v2111 = vpack.c.b16 %v1571, %v1559
        %v2112 = vpack.c.b16 %v1572, %v1560
        %v2113 = vpack.c.b16 %v1573, %v1561
        %v2114 = vpack.c.b16 %v1574, %v1562
        %v2115 = vpack.c.b16 %v1575, %v1563
        %v2116 = vpack.c.b16 %v1576, %v1564
        %v2117 = vpack.c.b16 %v1577, %v1565
        %v2118 = vpack.c.b16 %v1578, %v1566
        %v2119 = vpack.c.b16 %v1591, %v1579
        %v2120 = vpack.c.b16 %v1592, %v1580
        %v2121 = vpack.c.b16 %v1593, %v1581
        %v2122 = vpack.c.b16 %v1594, %v1582
        %v2123 = vpack.c.b16 %v1595, %v1583
        %v2124 = vpack.c.b16 %v1596, %v1584
        %v2125 = vpack.c.b16 %v1597, %v1585
        %v2126 = vpack.c.b16 %v1598, %v1586
        %v2127 = vpack.c.b16 %v1599, %v1587
        %v2128 = vpack.c.b16 %v1600, %v1588
        %v2129 = vpack.c.b16 %v1601, %v1589
        %v2130 = vpack.c.b16 %v1602, %v1590
        %v2131 = vpack.c.b16 %v1615, %v1603
        %v2132 = vpack.c.b16 %v1616, %v1604
        %v2133 = vpack.c.b16 %v1617, %v1605
        %v2134 = vpack.c.b16 %v1618, %v1606
        %v2135 = vpack.c.b16 %v1619, %v1607
        %v2136 = vpack.c.b16 %v1620, %v1608
        %v2137 = vpack.c.b16 %v1621, %v1609
        %v2138 = vpack.c.b16 %v1622, %v1610
        %v2139 = vpack.c.b16 %v1623, %v1611
        %v2140 = vpack.c.b16 %v1624, %v1612
        %v2141 = vpack.c.b16 %v1625, %v1613
        %v2142 = vpack.c.b16 %v1626, %v1614
        %v2143 = vpack.c.b16 %v1639, %v1627
        %v2144 = vpack.c.b16 %v1640, %v1628
        %v2145 = vpack.c.b16 %v1641, %v1629
        %v2146 = vpack.c.b16 %v1642, %v1630
        %v2147 = vpack.c.b16 %v1643, %v1631
        %v2148 = vpack.c.b16 %v1644, %v1632
        %v2149 = vpack.c.b16 %v1645, %v1633
        %v2150 = vpack.c.b16 %v1646, %v1634
        %v2151 = vpack.c.b16 %v1647, %v1635
        %v2152 = vpack.c.b16 %v1648, %v1636
        %v2153 = vpack.c.b16 %v1649, %v1637
        %v2154 = vpack.c.b16 %v1650, %v1638
        %v2155 = vpack.c.b16 %v1663, %v1651
        %v2156 = vpack.c.b16 %v1664, %v1652
        %v2157 = vpack.c.b16 %v1665, %v1653
        %v2158 = vpack.c.b16 %v1666, %v1654
        %v2159 = vpack.c.b16 %v1667, %v1655
        %v2160 = vpack.c.b16 %v1668, %v1656
        %v2161 = vpack.c.b16 %v1669, %v1657
        %v2162 = vpack.c.b16 %v1670, %v1658
        %v2163 = vpack.c.b16 %v1671, %v1659
        %v2164 = vpack.c.b16 %v1672, %v1660
        %v2165 = vpack.c.b16 %v1673, %v1661
        %v2166 = vpack.c.b16 %v1674, %v1662
        %v2167 = vpack.c.b16 %v1687, %v1675
        %v2168 = vpack.c.b16 %v1688, %v1676
        %v2169 = vpack.c.b16 %v1689, %v1677
        %v2170 = vpack.c.b16 %v1690, %v1678
        %v2171 = vpack.c.b16 %v1691, %v1679
        %v2172 = vpack.c.b16 %v1692, %v1680
        %v2173 = vpack.c.b16 %v1693, %v1681
        %v2174 = vpack.c.b16 %v1694, %v1682
        %v2175 = vpack.c.b16 %v1695, %v1683
        %v2176 = vpack.c.b16 %v1696, %v1684
        %v2177 = vpack.c.b16 %v1697, %v1685
        %v2178 = vpack.c.b16 %v1698, %v1686
        %v2179 = vpack.c.b16 %v1711, %v1699
        %v2180 = vpack.c.b16 %v1712, %v1700
        %v2181 = vpack.c.b16 %v1713, %v1701
        %v2182 = vpack.c.b16 %v1714, %v1702
        %v2183 = vpack.c.b16 %v1715, %v1703
        %v2184 = vpack.c.b16 %v1716, %v1704
        %v2185 = vpack.c.b16 %v1717, %v1705
        %v2186 = vpack.c.b16 %v1718, %v1706
        %v2187 = vpack.c.b16 %v1719, %v1707
        %v2188 = vpack.c.b16 %v1720, %v1708
        %v2189 = vpack.c.b16 %v1721, %v1709
        %v2190 = vpack.c.b16 %v1722, %v1710
        %v2191 = vpack.c.b16 %v1735, %v1723
        %v2192 = vpack.c.b16 %v1736, %v1724
        %v2193 = vpack.c.b16 %v1737, %v1725
        %v2194 = vpack.c.b16 %v1738, %v1726
        %v2195 = vpack.c.b16 %v1739, %v1727
        %v2196 = vpack.c.b16 %v1740, %v1728
        %v2197 = vpack.c.b16 %v1741, %v1729
        %v2198 = vpack.c.b16 %v1742, %v1730
        %v2199 = vpack.c.b16 %v1743, %v1731
        %v2200 = vpack.c.b16 %v1744, %v1732
        %v2201 = vpack.c.b16 %v1745, %v1733
        %v2202 = vpack.c.b16 %v1746, %v1734
        %v2203 = vpack.c.b16 %v1759, %v1747
        %v2204 = vpack.c.b16 %v1760, %v1748
        %v2205 = vpack.c.b16 %v1761, %v1749
        %v2206 = vpack.c.b16 %v1762, %v1750
        %v2207 = vpack.c.b16 %v1763, %v1751
        %v2208 = vpack.c.b16 %v1764, %v1752
        %v2209 = vpack.c.b16 %v1765, %v1753
        %v2210 = vpack.c.b16 %v1766, %v1754
        %v2211 = vpack.c.b16 %v1767, %v1755
        %v2212 = vpack.c.b16 %v1768, %v1756
        %v2213 = vpack.c.b16 %v1769, %v1757
        %v2214 = vpack.c.b16 %v1770, %v1758
        %v2215 = vpack.c.b16 %v1783, %v1771
        %v2216 = vpack.c.b16 %v1784, %v1772
        %v2217 = vpack.c.b16 %v1785, %v1773
        %v2218 = vpack.c.b16 %v1786, %v1774
        %v2219 = vpack.c.b16 %v1787, %v1775
        %v2220 = vpack.c.b16 %v1788, %v1776
        %v2221 = vpack.c.b16 %v1789, %v1777
        %v2222 = vpack.c.b16 %v1790, %v1778
        %v2223 = vpack.c.b16 %v1791, %v1779
        %v2224 = vpack.c.b16 %v1792, %v1780
        %v2225 = vpack.c.b16 %v1793, %v1781
        %v2226 = vpack.c.b16 %v1794, %v1782
        %v2227 = vpack.c.b16 %v1807, %v1795
        %v2228 = vpack.c.b16 %v1808, %v1796
        %v2229 = vpack.c.b16 %v1809, %v1797
        %v2230 = vpack.c.b16 %v1810, %v1798
        %v2231 = vpack.c.b16 %v1811, %v1799
        %v2232 = vpack.c.b16 %v1812, %v1800
        %v2233 = vpack.c.b16 %v1813, %v1801
        %v2234 = vpack.c.b16 %v1814, %v1802
        %v2235 = vpack.c.b16 %v1815, %v1803
        %v2236 = vpack.c.b16 %v1816, %v1804
        %v2237 = vpack.c.b16 %v1817, %v1805
        %v2238 = vpack.c.b16 %v1818, %v1806
        %v2239 = vpack.c.b16 %v1831, %v1819
        %v2240 = vpack.c.b16 %v1832, %v1820
        %v2241 = vpack.c.b16 %v1833, %v1821
        %v2242 = vpack.c.b16 %v1834, %v1822
        %v2243 = vpack.c.b16 %v1835, %v1823
        %v2244 = vpack.c.b16 %v1836, %v1824
        %v2245 = vpack.c.b16 %v1837, %v1825
        %v2246 = vpack.c.b16 %v1838, %v1826
        %v2247 = vpack.c.b16 %v1839, %v1827
        %v2248 = vpack.c.b16 %v1840, %v1828
        %v2249 = vpack.c.b16 %v1841, %v1829
        %v2250 = vpack.c.b16 %v1842, %v1830
        %v2251 = vpack.c.b16 %v1855, %v1843
        %v2252 = vpack.c.b16 %v1856, %v1844
        %v2253 = vpack.c.b16 %v1857, %v1845
        %v2254 = vpack.c.b16 %v1858, %v1846
        %v2255 = vpack.c.b16 %v1859, %v1847
        %v2256 = vpack.c.b16 %v1860, %v1848
        %v2257 = vpack.c.b16 %v1861, %v1849
        %v2258 = vpack.c.b16 %v1862, %v1850
        %v2259 = vpack.c.b16 %v1863, %v1851
        %v2260 = vpack.c.b16 %v1864, %v1852
        %v2261 = vpack.c.b16 %v1865, %v1853
        %v2262 = vpack.c.b16 %v1866, %v1854
        %v2263 = vpack.c.b16 %v1879, %v1867
        %v2264 = vpack.c.b16 %v1880, %v1868
        %v2265 = vpack.c.b16 %v1881, %v1869
        %v2266 = vpack.c.b16 %v1882, %v1870
        %v2267 = vpack.c.b16 %v1883, %v1871
        %v2268 = vpack.c.b16 %v1884, %v1872
        %v2269 = vpack.c.b16 %v1885, %v1873
        %v2270 = vpack.c.b16 %v1886, %v1874
        %v2271 = vpack.c.b16 %v1887, %v1875
        %v2272 = vpack.c.b16 %v1888, %v1876
        %v2273 = vpack.c.b16 %v1889, %v1877
        %v2274 = vpack.c.b16 %v1890, %v1878
        %2659 = vmatprep.subr.bf16.mxu0 %v1976
        %2660 = vmatpush1.bf16.msra.mxu0 %v1975
        %2661 = vmatprep.subr.bf16.mxu0 %v1964
        %2662 = vmatpush1.bf16.msra.mxu0 %v1963
        %2663 = vmatprep.subr.bf16.mxu0 %v1952
        %2664 = vmatpush1.bf16.msra.mxu0 %v1951
        %2665 = vmatprep.subr.bf16.mxu0 %v1940
        %2666 = vmatpush1.bf16.msra.mxu0 %v1939
        %2667 = vmatprep.subr.bf16.mxu0 %v1928
        %2668 = vmatpush1.bf16.msra.mxu0 %v1927
        %2669 = vmatprep.subr.bf16.mxu0 %v1916
        %2670 = vmatpush1.bf16.msra.mxu0 %v1915
        %2671 = vmatprep.subr.bf16.mxu0 %v1904
        %2672 = vmatpush1.bf16.msra.mxu0 %v1903
        %2673 = vmatprep.subr.bf16.mxu0 %v1892
        %2674 = vmatpush1.bf16.msra.mxu0 %v1891
        %2675 = vmatprep.subr.bf16.mxu0 %v2072
        %2676 = vmatpush2.bf16.msra.mxu0 %v2071
        %2677 = vmatprep.subr.bf16.mxu0 %v2060
        %2678 = vmatpush2.bf16.msra.mxu0 %v2059
        %2679 = vmatprep.subr.bf16.mxu0 %v2048
        %2680 = vmatpush2.bf16.msra.mxu0 %v2047
        %2681 = vmatprep.subr.bf16.mxu0 %v2036
        %2682 = vmatpush2.bf16.msra.mxu0 %v2035
        %2683 = vmatprep.subr.bf16.mxu0 %v2024
        %2684 = vmatpush2.bf16.msra.mxu0 %v2023
        %2685 = vmatprep.subr.bf16.mxu0 %v2012
        %2686 = vmatpush2.bf16.msra.mxu0 %v2011
        %2687 = vmatprep.subr.bf16.mxu0 %v2000
        %2688 = vmatpush2.bf16.msra.mxu0 %v1999
        %2689 = vmatprep.subr.bf16.mxu0 %v1988
        %2690 = vmatpush2.bf16.msra.mxu0 %v1987
        %2691 = vmatprep.mubr.bf16.mxu0 %v708
        %2692 = vmatmul.mubr.bf16.gmra.mxu0 %v707
        %v2693 = vpop.f32.mrf.mxu0
        %v2694 = vadd.f32 0.0, %v2693
        %v2695 = vpop.f32.mrf.mxu0
        %v2696 = vadd.f32 0.0, %v2695
        %v2697 = vpop.f32.mrf.mxu0
        %v2698 = vadd.f32 0.0, %v2697
        %v2699 = vpop.f32.mrf.mxu0
        %v2700 = vadd.f32 0.0, %v2699
        %2701 = vmatprep.mubr.bf16.mxu0 %v712
        %2702 = vmatmul.mubr.bf16.gmra.mxu0 %v711
        %v2703 = vpop.f32.mrf.mxu0
        %v2704 = vadd.f32 0.0, %v2703
        %v2705 = vpop.f32.mrf.mxu0
        %v2706 = vadd.f32 0.0, %v2705
        %v2707 = vpop.f32.mrf.mxu0
        %v2708 = vadd.f32 0.0, %v2707
        %v2709 = vpop.f32.mrf.mxu0
        %v2710 = vadd.f32 0.0, %v2709
        %2711 = vmatprep.mubr.bf16.mxu0 %v716
        %2712 = vmatmul.mubr.bf16.gmra.mxu0 %v715
        %v2713 = vpop.f32.mrf.mxu0
        %v2714 = vadd.f32 0.0, %v2713
        %v2715 = vpop.f32.mrf.mxu0
        %v2716 = vadd.f32 0.0, %v2715
        %v2717 = vpop.f32.mrf.mxu0
        %v2718 = vadd.f32 0.0, %v2717
        %v2719 = vpop.f32.mrf.mxu0
        %v2720 = vadd.f32 0.0, %v2719
        %2721 = vmatprep.mubr.bf16.mxu0 %v720
        %2722 = vmatmul.mubr.bf16.gmra.mxu0 %v719
        %v2723 = vpop.f32.mrf.mxu0
        %v2724 = vadd.f32 0.0, %v2723
        %v2725 = vpop.f32.mrf.mxu0
        %v2726 = vadd.f32 0.0, %v2725
        %v2727 = vpop.f32.mrf.mxu0
        %v2728 = vadd.f32 0.0, %v2727
        %v2729 = vpop.f32.mrf.mxu0
        %v2730 = vadd.f32 0.0, %v2729
        %2731 = vdwg.mxu0
        %2732 = vmatprep.subr.bf16.mxu0 %v2168
        %2733 = vmatpush1.bf16.msra.mxu0 %v2167
        %2734 = vmatprep.subr.bf16.mxu0 %v2156
        %2735 = vmatpush1.bf16.msra.mxu0 %v2155
        %2736 = vmatprep.subr.bf16.mxu0 %v2144
        %2737 = vmatpush1.bf16.msra.mxu0 %v2143
        %2738 = vmatprep.subr.bf16.mxu0 %v2132
        %2739 = vmatpush1.bf16.msra.mxu0 %v2131
        %2740 = vmatprep.subr.bf16.mxu0 %v2120
        %2741 = vmatpush1.bf16.msra.mxu0 %v2119
        %2742 = vmatprep.subr.bf16.mxu0 %v2108
        %2743 = vmatpush1.bf16.msra.mxu0 %v2107
        %2744 = vmatprep.subr.bf16.mxu0 %v2096
        %2745 = vmatpush1.bf16.msra.mxu0 %v2095
        %2746 = vmatprep.subr.bf16.mxu0 %v2084
        %2747 = vmatpush1.bf16.msra.mxu0 %v2083
        %2748 = vmatprep.subr.bf16.mxu0 %v2264
        %2749 = vmatpush2.bf16.msra.mxu0 %v2263
        %2750 = vmatprep.subr.bf16.mxu0 %v2252
        %2751 = vmatpush2.bf16.msra.mxu0 %v2251
        %2752 = vmatprep.subr.bf16.mxu0 %v2240
        %2753 = vmatpush2.bf16.msra.mxu0 %v2239
        %2754 = vmatprep.subr.bf16.mxu0 %v2228
        %2755 = vmatpush2.bf16.msra.mxu0 %v2227
        %2756 = vmatprep.subr.bf16.mxu0 %v2216
        %2757 = vmatpush2.bf16.msra.mxu0 %v2215
        %2758 = vmatprep.subr.bf16.mxu0 %v2204
        %2759 = vmatpush2.bf16.msra.mxu0 %v2203
        %2760 = vmatprep.subr.bf16.mxu0 %v2192
        %2761 = vmatpush2.bf16.msra.mxu0 %v2191
        %2762 = vmatprep.subr.bf16.mxu0 %v2180
        %2763 = vmatpush2.bf16.msra.mxu0 %v2179
        %2764 = vmatprep.mubr.bf16.mxu0 %v710
        %2765 = vmatmul.mubr.bf16.gmra.mxu0 %v709
        %v2766 = vpop.f32.mrf.mxu0
        %v2767 = vadd.f32 %v2694, %v2766
        %v2768 = vpop.f32.mrf.mxu0
        %v2769 = vadd.f32 %v2696, %v2768
        %v2770 = vpop.f32.mrf.mxu0
        %v2771 = vadd.f32 %v2698, %v2770
        %v2772 = vpop.f32.mrf.mxu0
        %v2773 = vadd.f32 %v2700, %v2772
        %2774 = vmatprep.mubr.bf16.mxu0 %v714
        %2775 = vmatmul.mubr.bf16.gmra.mxu0 %v713
        %v2776 = vpop.f32.mrf.mxu0
        %v2777 = vadd.f32 %v2704, %v2776
        %v2778 = vpop.f32.mrf.mxu0
        %v2779 = vadd.f32 %v2706, %v2778
        %v2780 = vpop.f32.mrf.mxu0
        %v2781 = vadd.f32 %v2708, %v2780
        %v2782 = vpop.f32.mrf.mxu0
        %v2783 = vadd.f32 %v2710, %v2782
        %2784 = vmatprep.mubr.bf16.mxu0 %v718
        %2785 = vmatmul.mubr.bf16.gmra.mxu0 %v717
        %v2786 = vpop.f32.mrf.mxu0
        %v2787 = vadd.f32 %v2714, %v2786
        %v2788 = vpop.f32.mrf.mxu0
        %v2789 = vadd.f32 %v2716, %v2788
        %v2790 = vpop.f32.mrf.mxu0
        %v2791 = vadd.f32 %v2718, %v2790
        %v2792 = vpop.f32.mrf.mxu0
        %v2793 = vadd.f32 %v2720, %v2792
        %2794 = vmatprep.mubr.bf16.mxu0 %v722
        %2795 = vmatmul.mubr.bf16.gmra.mxu0 %v721
        %v2796 = vpop.f32.mrf.mxu0
        %v2797 = vadd.f32 %v2724, %v2796
        %v2798 = vpop.f32.mrf.mxu0
        %v2799 = vadd.f32 %v2726, %v2798
        %v2800 = vpop.f32.mrf.mxu0
        %v2801 = vadd.f32 %v2728, %v2800
        %v2802 = vpop.f32.mrf.mxu0
        %v2803 = vadd.f32 %v2730, %v2802
        %2804 = vdwg.mxu0
        %2805 = vmatprep.subr.bf16.mxu0 %v1978
        %2806 = vmatpush1.bf16.msra.mxu0 %v1977
        %2807 = vmatprep.subr.bf16.mxu0 %v1966
        %2808 = vmatpush1.bf16.msra.mxu0 %v1965
        %2809 = vmatprep.subr.bf16.mxu0 %v1954
        %2810 = vmatpush1.bf16.msra.mxu0 %v1953
        %2811 = vmatprep.subr.bf16.mxu0 %v1942
        %2812 = vmatpush1.bf16.msra.mxu0 %v1941
        %2813 = vmatprep.subr.bf16.mxu0 %v1930
        %2814 = vmatpush1.bf16.msra.mxu0 %v1929
        %2815 = vmatprep.subr.bf16.mxu0 %v1918
        %2816 = vmatpush1.bf16.msra.mxu0 %v1917
        %2817 = vmatprep.subr.bf16.mxu0 %v1906
        %2818 = vmatpush1.bf16.msra.mxu0 %v1905
        %2819 = vmatprep.subr.bf16.mxu0 %v1894
        %2820 = vmatpush1.bf16.msra.mxu0 %v1893
        %2821 = vmatprep.subr.bf16.mxu0 %v2074
        %2822 = vmatpush2.bf16.msra.mxu0 %v2073
        %2823 = vmatprep.subr.bf16.mxu0 %v2062
        %2824 = vmatpush2.bf16.msra.mxu0 %v2061
        %2825 = vmatprep.subr.bf16.mxu0 %v2050
        %2826 = vmatpush2.bf16.msra.mxu0 %v2049
        %2827 = vmatprep.subr.bf16.mxu0 %v2038
        %2828 = vmatpush2.bf16.msra.mxu0 %v2037
        %2829 = vmatprep.subr.bf16.mxu0 %v2026
        %2830 = vmatpush2.bf16.msra.mxu0 %v2025
        %2831 = vmatprep.subr.bf16.mxu0 %v2014
        %2832 = vmatpush2.bf16.msra.mxu0 %v2013
        %2833 = vmatprep.subr.bf16.mxu0 %v2002
        %2834 = vmatpush2.bf16.msra.mxu0 %v2001
        %2835 = vmatprep.subr.bf16.mxu0 %v1990
        %2836 = vmatpush2.bf16.msra.mxu0 %v1989
        %2837 = vmatprep.mubr.bf16.mxu0 %v708
        %2838 = vmatmul.mubr.bf16.gmra.mxu0 %v707
        %v2839 = vpop.f32.mrf.mxu0
        %v2840 = vadd.f32 0.0, %v2839
        %v2841 = vpop.f32.mrf.mxu0
        %v2842 = vadd.f32 0.0, %v2841
        %v2843 = vpop.f32.mrf.mxu0
        %v2844 = vadd.f32 0.0, %v2843
        %v2845 = vpop.f32.mrf.mxu0
        %v2846 = vadd.f32 0.0, %v2845
        %2847 = vmatprep.mubr.bf16.mxu0 %v712
        %2848 = vmatmul.mubr.bf16.gmra.mxu0 %v711
        %v2849 = vpop.f32.mrf.mxu0
        %v2850 = vadd.f32 0.0, %v2849
        %v2851 = vpop.f32.mrf.mxu0
        %v2852 = vadd.f32 0.0, %v2851
        %v2853 = vpop.f32.mrf.mxu0
        %v2854 = vadd.f32 0.0, %v2853
        %v2855 = vpop.f32.mrf.mxu0
        %v2856 = vadd.f32 0.0, %v2855
        %2857 = vmatprep.mubr.bf16.mxu0 %v716
        %2858 = vmatmul.mubr.bf16.gmra.mxu0 %v715
        %v2859 = vpop.f32.mrf.mxu0
        %v2860 = vadd.f32 0.0, %v2859
        %v2861 = vpop.f32.mrf.mxu0
        %v2862 = vadd.f32 0.0, %v2861
        %v2863 = vpop.f32.mrf.mxu0
        %v2864 = vadd.f32 0.0, %v2863
        %v2865 = vpop.f32.mrf.mxu0
        %v2866 = vadd.f32 0.0, %v2865
        %2867 = vmatprep.mubr.bf16.mxu0 %v720
        %2868 = vmatmul.mubr.bf16.gmra.mxu0 %v719
        %v2869 = vpop.f32.mrf.mxu0
        %v2870 = vadd.f32 0.0, %v2869
        %v2871 = vpop.f32.mrf.mxu0
        %v2872 = vadd.f32 0.0, %v2871
        %v2873 = vpop.f32.mrf.mxu0
        %v2874 = vadd.f32 0.0, %v2873
        %v2875 = vpop.f32.mrf.mxu0
        %v2876 = vadd.f32 0.0, %v2875
        %2877 = vdwg.mxu0
        %2878 = vmatprep.subr.bf16.mxu0 %v2170
        %2879 = vmatpush1.bf16.msra.mxu0 %v2169
        %2880 = vmatprep.subr.bf16.mxu0 %v2158
        %2881 = vmatpush1.bf16.msra.mxu0 %v2157
        %2882 = vmatprep.subr.bf16.mxu0 %v2146
        %2883 = vmatpush1.bf16.msra.mxu0 %v2145
        %2884 = vmatprep.subr.bf16.mxu0 %v2134
        %2885 = vmatpush1.bf16.msra.mxu0 %v2133
        %2886 = vmatprep.subr.bf16.mxu0 %v2122
        %2887 = vmatpush1.bf16.msra.mxu0 %v2121
        %2888 = vmatprep.subr.bf16.mxu0 %v2110
        %2889 = vmatpush1.bf16.msra.mxu0 %v2109
        %2890 = vmatprep.subr.bf16.mxu0 %v2098
        %2891 = vmatpush1.bf16.msra.mxu0 %v2097
        %2892 = vmatprep.subr.bf16.mxu0 %v2086
        %2893 = vmatpush1.bf16.msra.mxu0 %v2085
        %2894 = vmatprep.subr.bf16.mxu0 %v2266
        %2895 = vmatpush2.bf16.msra.mxu0 %v2265
        %2896 = vmatprep.subr.bf16.mxu0 %v2254
        %2897 = vmatpush2.bf16.msra.mxu0 %v2253
        %2898 = vmatprep.subr.bf16.mxu0 %v2242
        %2899 = vmatpush2.bf16.msra.mxu0 %v2241
        %2900 = vmatprep.subr.bf16.mxu0 %v2230
        %2901 = vmatpush2.bf16.msra.mxu0 %v2229
        %2902 = vmatprep.subr.bf16.mxu0 %v2218
        %2903 = vmatpush2.bf16.msra.mxu0 %v2217
        %2904 = vmatprep.subr.bf16.mxu0 %v2206
        %2905 = vmatpush2.bf16.msra.mxu0 %v2205
        %2906 = vmatprep.subr.bf16.mxu0 %v2194
        %2907 = vmatpush2.bf16.msra.mxu0 %v2193
        %2908 = vmatprep.subr.bf16.mxu0 %v2182
        %2909 = vmatpush2.bf16.msra.mxu0 %v2181
        %2910 = vmatprep.mubr.bf16.mxu0 %v710
        %2911 = vmatmul.mubr.bf16.gmra.mxu0 %v709
        %v2912 = vpop.f32.mrf.mxu0
        %v2913 = vadd.f32 %v2840, %v2912
        %v2914 = vpop.f32.mrf.mxu0
        %v2915 = vadd.f32 %v2842, %v2914
        %v2916 = vpop.f32.mrf.mxu0
        %v2917 = vadd.f32 %v2844, %v2916
        %v2918 = vpop.f32.mrf.mxu0
        %v2919 = vadd.f32 %v2846, %v2918
        %2920 = vmatprep.mubr.bf16.mxu0 %v714
        %2921 = vmatmul.mubr.bf16.gmra.mxu0 %v713
        %v2922 = vpop.f32.mrf.mxu0
        %v2923 = vadd.f32 %v2850, %v2922
        %v2924 = vpop.f32.mrf.mxu0
        %v2925 = vadd.f32 %v2852, %v2924
        %v2926 = vpop.f32.mrf.mxu0
        %v2927 = vadd.f32 %v2854, %v2926
        %v2928 = vpop.f32.mrf.mxu0
        %v2929 = vadd.f32 %v2856, %v2928
        %2930 = vmatprep.mubr.bf16.mxu0 %v718
        %2931 = vmatmul.mubr.bf16.gmra.mxu0 %v717
        %v2932 = vpop.f32.mrf.mxu0
        %v2933 = vadd.f32 %v2860, %v2932
        %v2934 = vpop.f32.mrf.mxu0
        %v2935 = vadd.f32 %v2862, %v2934
        %v2936 = vpop.f32.mrf.mxu0
        %v2937 = vadd.f32 %v2864, %v2936
        %v2938 = vpop.f32.mrf.mxu0
        %v2939 = vadd.f32 %v2866, %v2938
        %2940 = vmatprep.mubr.bf16.mxu0 %v722
        %2941 = vmatmul.mubr.bf16.gmra.mxu0 %v721
        %v2942 = vpop.f32.mrf.mxu0
        %v2943 = vadd.f32 %v2870, %v2942
        %v2944 = vpop.f32.mrf.mxu0
        %v2945 = vadd.f32 %v2872, %v2944
        %v2946 = vpop.f32.mrf.mxu0
        %v2947 = vadd.f32 %v2874, %v2946
        %v2948 = vpop.f32.mrf.mxu0
        %v2949 = vadd.f32 %v2876, %v2948
        %2950 = vdwg.mxu0
        %2951 = vmatprep.subr.bf16.mxu0 %v1980
        %2952 = vmatpush1.bf16.msra.mxu0 %v1979
        %2953 = vmatprep.subr.bf16.mxu0 %v1968
        %2954 = vmatpush1.bf16.msra.mxu0 %v1967
        %2955 = vmatprep.subr.bf16.mxu0 %v1956
        %2956 = vmatpush1.bf16.msra.mxu0 %v1955
        %2957 = vmatprep.subr.bf16.mxu0 %v1944
        %2958 = vmatpush1.bf16.msra.mxu0 %v1943
        %2959 = vmatprep.subr.bf16.mxu0 %v1932
        %2960 = vmatpush1.bf16.msra.mxu0 %v1931
        %2961 = vmatprep.subr.bf16.mxu0 %v1920
        %2962 = vmatpush1.bf16.msra.mxu0 %v1919
        %2963 = vmatprep.subr.bf16.mxu0 %v1908
        %2964 = vmatpush1.bf16.msra.mxu0 %v1907
        %2965 = vmatprep.subr.bf16.mxu0 %v1896
        %2966 = vmatpush1.bf16.msra.mxu0 %v1895
        %2967 = vmatprep.subr.bf16.mxu0 %v2076
        %2968 = vmatpush2.bf16.msra.mxu0 %v2075
        %2969 = vmatprep.subr.bf16.mxu0 %v2064
        %2970 = vmatpush2.bf16.msra.mxu0 %v2063
        %2971 = vmatprep.subr.bf16.mxu0 %v2052
        %2972 = vmatpush2.bf16.msra.mxu0 %v2051
        %2973 = vmatprep.subr.bf16.mxu0 %v2040
        %2974 = vmatpush2.bf16.msra.mxu0 %v2039
        %2975 = vmatprep.subr.bf16.mxu0 %v2028
        %2976 = vmatpush2.bf16.msra.mxu0 %v2027
        %2977 = vmatprep.subr.bf16.mxu0 %v2016
        %2978 = vmatpush2.bf16.msra.mxu0 %v2015
        %2979 = vmatprep.subr.bf16.mxu0 %v2004
        %2980 = vmatpush2.bf16.msra.mxu0 %v2003
        %2981 = vmatprep.subr.bf16.mxu0 %v1992
        %2982 = vmatpush2.bf16.msra.mxu0 %v1991
        %2983 = vmatprep.mubr.bf16.mxu0 %v708
        %2984 = vmatmul.mubr.bf16.gmra.mxu0 %v707
        %v2985 = vpop.f32.mrf.mxu0
        %v2986 = vadd.f32 0.0, %v2985
        %v2987 = vpop.f32.mrf.mxu0
        %v2988 = vadd.f32 0.0, %v2987
        %v2989 = vpop.f32.mrf.mxu0
        %v2990 = vadd.f32 0.0, %v2989
        %v2991 = vpop.f32.mrf.mxu0
        %v2992 = vadd.f32 0.0, %v2991
        %2993 = vmatprep.mubr.bf16.mxu0 %v712
        %2994 = vmatmul.mubr.bf16.gmra.mxu0 %v711
        %v2995 = vpop.f32.mrf.mxu0
        %v2996 = vadd.f32 0.0, %v2995
        %v2997 = vpop.f32.mrf.mxu0
        %v2998 = vadd.f32 0.0, %v2997
        %v2999 = vpop.f32.mrf.mxu0
        %v3000 = vadd.f32 0.0, %v2999
        %v3001 = vpop.f32.mrf.mxu0
        %v3002 = vadd.f32 0.0, %v3001
        %3003 = vmatprep.mubr.bf16.mxu0 %v716
        %3004 = vmatmul.mubr.bf16.gmra.mxu0 %v715
        %v3005 = vpop.f32.mrf.mxu0
        %v3006 = vadd.f32 0.0, %v3005
        %v3007 = vpop.f32.mrf.mxu0
        %v3008 = vadd.f32 0.0, %v3007
        %v3009 = vpop.f32.mrf.mxu0
        %v3010 = vadd.f32 0.0, %v3009
        %v3011 = vpop.f32.mrf.mxu0
        %v3012 = vadd.f32 0.0, %v3011
        %3013 = vmatprep.mubr.bf16.mxu0 %v720
        %3014 = vmatmul.mubr.bf16.gmra.mxu0 %v719
        %v3015 = vpop.f32.mrf.mxu0
        %v3016 = vadd.f32 0.0, %v3015
        %v3017 = vpop.f32.mrf.mxu0
        %v3018 = vadd.f32 0.0, %v3017
        %v3019 = vpop.f32.mrf.mxu0
        %v3020 = vadd.f32 0.0, %v3019
        %v3021 = vpop.f32.mrf.mxu0
        %v3022 = vadd.f32 0.0, %v3021
        %3023 = vdwg.mxu0
        %3024 = vmatprep.subr.bf16.mxu0 %v2172
        %3025 = vmatpush1.bf16.msra.mxu0 %v2171
        %3026 = vmatprep.subr.bf16.mxu0 %v2160
        %3027 = vmatpush1.bf16.msra.mxu0 %v2159
        %3028 = vmatprep.subr.bf16.mxu0 %v2148
        %3029 = vmatpush1.bf16.msra.mxu0 %v2147
        %3030 = vmatprep.subr.bf16.mxu0 %v2136
        %3031 = vmatpush1.bf16.msra.mxu0 %v2135
        %3032 = vmatprep.subr.bf16.mxu0 %v2124
        %3033 = vmatpush1.bf16.msra.mxu0 %v2123
        %3034 = vmatprep.subr.bf16.mxu0 %v2112
        %3035 = vmatpush1.bf16.msra.mxu0 %v2111
        %3036 = vmatprep.subr.bf16.mxu0 %v2100
        %3037 = vmatpush1.bf16.msra.mxu0 %v2099
        %3038 = vmatprep.subr.bf16.mxu0 %v2088
        %3039 = vmatpush1.bf16.msra.mxu0 %v2087
        %3040 = vmatprep.subr.bf16.mxu0 %v2268
        %3041 = vmatpush2.bf16.msra.mxu0 %v2267
        %3042 = vmatprep.subr.bf16.mxu0 %v2256
        %3043 = vmatpush2.bf16.msra.mxu0 %v2255
        %3044 = vmatprep.subr.bf16.mxu0 %v2244
        %3045 = vmatpush2.bf16.msra.mxu0 %v2243
        %3046 = vmatprep.subr.bf16.mxu0 %v2232
        %3047 = vmatpush2.bf16.msra.mxu0 %v2231
        %3048 = vmatprep.subr.bf16.mxu0 %v2220
        %3049 = vmatpush2.bf16.msra.mxu0 %v2219
        %3050 = vmatprep.subr.bf16.mxu0 %v2208
        %3051 = vmatpush2.bf16.msra.mxu0 %v2207
        %3052 = vmatprep.subr.bf16.mxu0 %v2196
        %3053 = vmatpush2.bf16.msra.mxu0 %v2195
        %3054 = vmatprep.subr.bf16.mxu0 %v2184
        %3055 = vmatpush2.bf16.msra.mxu0 %v2183
        %3056 = vmatprep.mubr.bf16.mxu0 %v710
        %3057 = vmatmul.mubr.bf16.gmra.mxu0 %v709
        %v3058 = vpop.f32.mrf.mxu0
        %v3059 = vadd.f32 %v2986, %v3058
        %v3060 = vpop.f32.mrf.mxu0
        %v3061 = vadd.f32 %v2988, %v3060
        %v3062 = vpop.f32.mrf.mxu0
        %v3063 = vadd.f32 %v2990, %v3062
        %v3064 = vpop.f32.mrf.mxu0
        %v3065 = vadd.f32 %v2992, %v3064
        %3066 = vmatprep.mubr.bf16.mxu0 %v714
        %3067 = vmatmul.mubr.bf16.gmra.mxu0 %v713
        %v3068 = vpop.f32.mrf.mxu0
        %v3069 = vadd.f32 %v2996, %v3068
        %v3070 = vpop.f32.mrf.mxu0
        %v3071 = vadd.f32 %v2998, %v3070
        %v3072 = vpop.f32.mrf.mxu0
        %v3073 = vadd.f32 %v3000, %v3072
        %v3074 = vpop.f32.mrf.mxu0
        %v3075 = vadd.f32 %v3002, %v3074
        %3076 = vmatprep.mubr.bf16.mxu0 %v718
        %3077 = vmatmul.mubr.bf16.gmra.mxu0 %v717
        %v3078 = vpop.f32.mrf.mxu0
        %v3079 = vadd.f32 %v3006, %v3078
        %v3080 = vpop.f32.mrf.mxu0
        %v3081 = vadd.f32 %v3008, %v3080
        %v3082 = vpop.f32.mrf.mxu0
        %v3083 = vadd.f32 %v3010, %v3082
        %v3084 = vpop.f32.mrf.mxu0
        %v3085 = vadd.f32 %v3012, %v3084
        %3086 = vmatprep.mubr.bf16.mxu0 %v722
        %3087 = vmatmul.mubr.bf16.gmra.mxu0 %v721
        %v3088 = vpop.f32.mrf.mxu0
        %v3089 = vadd.f32 %v3016, %v3088
        %v3090 = vpop.f32.mrf.mxu0
        %v3091 = vadd.f32 %v3018, %v3090
        %v3092 = vpop.f32.mrf.mxu0
        %v3093 = vadd.f32 %v3020, %v3092
        %v3094 = vpop.f32.mrf.mxu0
        %v3095 = vadd.f32 %v3022, %v3094
        %3096 = vdwg.mxu0
        %3097 = vmatprep.subr.bf16.mxu0 %v1982
        %3098 = vmatpush1.bf16.msra.mxu0 %v1981
        %3099 = vmatprep.subr.bf16.mxu0 %v1970
        %3100 = vmatpush1.bf16.msra.mxu0 %v1969
        %3101 = vmatprep.subr.bf16.mxu0 %v1958
        %3102 = vmatpush1.bf16.msra.mxu0 %v1957
        %3103 = vmatprep.subr.bf16.mxu0 %v1946
        %3104 = vmatpush1.bf16.msra.mxu0 %v1945
        %3105 = vmatprep.subr.bf16.mxu0 %v1934
        %3106 = vmatpush1.bf16.msra.mxu0 %v1933
        %3107 = vmatprep.subr.bf16.mxu0 %v1922
        %3108 = vmatpush1.bf16.msra.mxu0 %v1921
        %3109 = vmatprep.subr.bf16.mxu0 %v1910
        %3110 = vmatpush1.bf16.msra.mxu0 %v1909
        %3111 = vmatprep.subr.bf16.mxu0 %v1898
        %3112 = vmatpush1.bf16.msra.mxu0 %v1897
        %3113 = vmatprep.subr.bf16.mxu0 %v2078
        %3114 = vmatpush2.bf16.msra.mxu0 %v2077
        %3115 = vmatprep.subr.bf16.mxu0 %v2066
        %3116 = vmatpush2.bf16.msra.mxu0 %v2065
        %3117 = vmatprep.subr.bf16.mxu0 %v2054
        %3118 = vmatpush2.bf16.msra.mxu0 %v2053
        %3119 = vmatprep.subr.bf16.mxu0 %v2042
        %3120 = vmatpush2.bf16.msra.mxu0 %v2041
        %3121 = vmatprep.subr.bf16.mxu0 %v2030
        %3122 = vmatpush2.bf16.msra.mxu0 %v2029
        %3123 = vmatprep.subr.bf16.mxu0 %v2018
        %3124 = vmatpush2.bf16.msra.mxu0 %v2017
        %3125 = vmatprep.subr.bf16.mxu0 %v2006
        %3126 = vmatpush2.bf16.msra.mxu0 %v2005
        %3127 = vmatprep.subr.bf16.mxu0 %v1994
        %3128 = vmatpush2.bf16.msra.mxu0 %v1993
        %3129 = vmatprep.mubr.bf16.mxu0 %v708
        %3130 = vmatmul.mubr.bf16.gmra.mxu0 %v707
        %v3131 = vpop.f32.mrf.mxu0
        %v3132 = vadd.f32 0.0, %v3131
        %v3133 = vpop.f32.mrf.mxu0
        %v3134 = vadd.f32 0.0, %v3133
        %v3135 = vpop.f32.mrf.mxu0
        %v3136 = vadd.f32 0.0, %v3135
        %v3137 = vpop.f32.mrf.mxu0
        %v3138 = vadd.f32 0.0, %v3137
        %3139 = vmatprep.mubr.bf16.mxu0 %v712
        %3140 = vmatmul.mubr.bf16.gmra.mxu0 %v711
        %v3141 = vpop.f32.mrf.mxu0
        %v3142 = vadd.f32 0.0, %v3141
        %v3143 = vpop.f32.mrf.mxu0
        %v3144 = vadd.f32 0.0, %v3143
        %v3145 = vpop.f32.mrf.mxu0
        %v3146 = vadd.f32 0.0, %v3145
        %v3147 = vpop.f32.mrf.mxu0
        %v3148 = vadd.f32 0.0, %v3147
        %3149 = vmatprep.mubr.bf16.mxu0 %v716
        %3150 = vmatmul.mubr.bf16.gmra.mxu0 %v715
        %v3151 = vpop.f32.mrf.mxu0
        %v3152 = vadd.f32 0.0, %v3151
        %v3153 = vpop.f32.mrf.mxu0
        %v3154 = vadd.f32 0.0, %v3153
        %v3155 = vpop.f32.mrf.mxu0
        %v3156 = vadd.f32 0.0, %v3155
        %v3157 = vpop.f32.mrf.mxu0
        %v3158 = vadd.f32 0.0, %v3157
        %3159 = vmatprep.mubr.bf16.mxu0 %v720
        %3160 = vmatmul.mubr.bf16.gmra.mxu0 %v719
        %v3161 = vpop.f32.mrf.mxu0
        %v3162 = vadd.f32 0.0, %v3161
        %v3163 = vpop.f32.mrf.mxu0
        %v3164 = vadd.f32 0.0, %v3163
        %v3165 = vpop.f32.mrf.mxu0
        %v3166 = vadd.f32 0.0, %v3165
        %v3167 = vpop.f32.mrf.mxu0
        %v3168 = vadd.f32 0.0, %v3167
        %3169 = vdwg.mxu0
        %3170 = vmatprep.subr.bf16.mxu0 %v2174
        %3171 = vmatpush1.bf16.msra.mxu0 %v2173
        %3172 = vmatprep.subr.bf16.mxu0 %v2162
        %3173 = vmatpush1.bf16.msra.mxu0 %v2161
        %3174 = vmatprep.subr.bf16.mxu0 %v2150
        %3175 = vmatpush1.bf16.msra.mxu0 %v2149
        %3176 = vmatprep.subr.bf16.mxu0 %v2138
        %3177 = vmatpush1.bf16.msra.mxu0 %v2137
        %3178 = vmatprep.subr.bf16.mxu0 %v2126
        %3179 = vmatpush1.bf16.msra.mxu0 %v2125
        %3180 = vmatprep.subr.bf16.mxu0 %v2114
        %3181 = vmatpush1.bf16.msra.mxu0 %v2113
        %3182 = vmatprep.subr.bf16.mxu0 %v2102
        %3183 = vmatpush1.bf16.msra.mxu0 %v2101
        %3184 = vmatprep.subr.bf16.mxu0 %v2090
        %3185 = vmatpush1.bf16.msra.mxu0 %v2089
        %3186 = vmatprep.subr.bf16.mxu0 %v2270
        %3187 = vmatpush2.bf16.msra.mxu0 %v2269
        %3188 = vmatprep.subr.bf16.mxu0 %v2258
        %3189 = vmatpush2.bf16.msra.mxu0 %v2257
        %3190 = vmatprep.subr.bf16.mxu0 %v2246
        %3191 = vmatpush2.bf16.msra.mxu0 %v2245
        %3192 = vmatprep.subr.bf16.mxu0 %v2234
        %3193 = vmatpush2.bf16.msra.mxu0 %v2233
        %3194 = vmatprep.subr.bf16.mxu0 %v2222
        %3195 = vmatpush2.bf16.msra.mxu0 %v2221
        %3196 = vmatprep.subr.bf16.mxu0 %v2210
        %3197 = vmatpush2.bf16.msra.mxu0 %v2209
        %3198 = vmatprep.subr.bf16.mxu0 %v2198
        %3199 = vmatpush2.bf16.msra.mxu0 %v2197
        %3200 = vmatprep.subr.bf16.mxu0 %v2186
        %3201 = vmatpush2.bf16.msra.mxu0 %v2185
        %3202 = vmatprep.mubr.bf16.mxu0 %v710
        %3203 = vmatmul.mubr.bf16.gmra.mxu0 %v709
        %v3204 = vpop.f32.mrf.mxu0
        %v3205 = vadd.f32 %v3132, %v3204
        %v3206 = vpop.f32.mrf.mxu0
        %v3207 = vadd.f32 %v3134, %v3206
        %v3208 = vpop.f32.mrf.mxu0
        %v3209 = vadd.f32 %v3136, %v3208
        %v3210 = vpop.f32.mrf.mxu0
        %v3211 = vadd.f32 %v3138, %v3210
        %3212 = vmatprep.mubr.bf16.mxu0 %v714
        %3213 = vmatmul.mubr.bf16.gmra.mxu0 %v713
        %v3214 = vpop.f32.mrf.mxu0
        %v3215 = vadd.f32 %v3142, %v3214
        %v3216 = vpop.f32.mrf.mxu0
        %v3217 = vadd.f32 %v3144, %v3216
        %v3218 = vpop.f32.mrf.mxu0
        %v3219 = vadd.f32 %v3146, %v3218
        %v3220 = vpop.f32.mrf.mxu0
        %v3221 = vadd.f32 %v3148, %v3220
        %3222 = vmatprep.mubr.bf16.mxu0 %v718
        %3223 = vmatmul.mubr.bf16.gmra.mxu0 %v717
        %v3224 = vpop.f32.mrf.mxu0
        %v3225 = vadd.f32 %v3152, %v3224
        %v3226 = vpop.f32.mrf.mxu0
        %v3227 = vadd.f32 %v3154, %v3226
        %v3228 = vpop.f32.mrf.mxu0
        %v3229 = vadd.f32 %v3156, %v3228
        %v3230 = vpop.f32.mrf.mxu0
        %v3231 = vadd.f32 %v3158, %v3230
        %3232 = vmatprep.mubr.bf16.mxu0 %v722
        %3233 = vmatmul.mubr.bf16.gmra.mxu0 %v721
        %v3234 = vpop.f32.mrf.mxu0
        %v3235 = vadd.f32 %v3162, %v3234
        %v3236 = vpop.f32.mrf.mxu0
        %v3237 = vadd.f32 %v3164, %v3236
        %v3238 = vpop.f32.mrf.mxu0
        %v3239 = vadd.f32 %v3166, %v3238
        %v3240 = vpop.f32.mrf.mxu0
        %v3241 = vadd.f32 %v3168, %v3240
        %3242 = vdwg.mxu0
        %3243 = vmatprep.subr.bf16.mxu0 %v1984
        %3244 = vmatpush1.bf16.msra.mxu0 %v1983
        %3245 = vmatprep.subr.bf16.mxu0 %v1972
        %3246 = vmatpush1.bf16.msra.mxu0 %v1971
        %3247 = vmatprep.subr.bf16.mxu0 %v1960
        %3248 = vmatpush1.bf16.msra.mxu0 %v1959
        %3249 = vmatprep.subr.bf16.mxu0 %v1948
        %3250 = vmatpush1.bf16.msra.mxu0 %v1947
        %3251 = vmatprep.subr.bf16.mxu0 %v1936
        %3252 = vmatpush1.bf16.msra.mxu0 %v1935
        %3253 = vmatprep.subr.bf16.mxu0 %v1924
        %3254 = vmatpush1.bf16.msra.mxu0 %v1923
        %3255 = vmatprep.subr.bf16.mxu0 %v1912
        %3256 = vmatpush1.bf16.msra.mxu0 %v1911
        %3257 = vmatprep.subr.bf16.mxu0 %v1900
        %3258 = vmatpush1.bf16.msra.mxu0 %v1899
        %3259 = vmatprep.subr.bf16.mxu0 %v2080
        %3260 = vmatpush2.bf16.msra.mxu0 %v2079
        %3261 = vmatprep.subr.bf16.mxu0 %v2068
        %3262 = vmatpush2.bf16.msra.mxu0 %v2067
        %3263 = vmatprep.subr.bf16.mxu0 %v2056
        %3264 = vmatpush2.bf16.msra.mxu0 %v2055
        %3265 = vmatprep.subr.bf16.mxu0 %v2044
        %3266 = vmatpush2.bf16.msra.mxu0 %v2043
        %3267 = vmatprep.subr.bf16.mxu0 %v2032
        %3268 = vmatpush2.bf16.msra.mxu0 %v2031
        %3269 = vmatprep.subr.bf16.mxu0 %v2020
        %3270 = vmatpush2.bf16.msra.mxu0 %v2019
        %3271 = vmatprep.subr.bf16.mxu0 %v2008
        %3272 = vmatpush2.bf16.msra.mxu0 %v2007
        %3273 = vmatprep.subr.bf16.mxu0 %v1996
        %3274 = vmatpush2.bf16.msra.mxu0 %v1995
        %3275 = vmatprep.mubr.bf16.mxu0 %v708
        %3276 = vmatmul.mubr.bf16.gmra.mxu0 %v707
        %v3277 = vpop.f32.mrf.mxu0
        %v3278 = vadd.f32 0.0, %v3277
        %v3279 = vpop.f32.mrf.mxu0
        %v3280 = vadd.f32 0.0, %v3279
        %v3281 = vpop.f32.mrf.mxu0
        %v3282 = vadd.f32 0.0, %v3281
        %v3283 = vpop.f32.mrf.mxu0
        %v3284 = vadd.f32 0.0, %v3283
        %3285 = vmatprep.mubr.bf16.mxu0 %v712
        %3286 = vmatmul.mubr.bf16.gmra.mxu0 %v711
        %v3287 = vpop.f32.mrf.mxu0
        %v3288 = vadd.f32 0.0, %v3287
        %v3289 = vpop.f32.mrf.mxu0
        %v3290 = vadd.f32 0.0, %v3289
        %v3291 = vpop.f32.mrf.mxu0
        %v3292 = vadd.f32 0.0, %v3291
        %v3293 = vpop.f32.mrf.mxu0
        %v3294 = vadd.f32 0.0, %v3293
        %3295 = vmatprep.mubr.bf16.mxu0 %v716
        %3296 = vmatmul.mubr.bf16.gmra.mxu0 %v715
        %v3297 = vpop.f32.mrf.mxu0
        %v3298 = vadd.f32 0.0, %v3297
        %v3299 = vpop.f32.mrf.mxu0
        %v3300 = vadd.f32 0.0, %v3299
        %v3301 = vpop.f32.mrf.mxu0
        %v3302 = vadd.f32 0.0, %v3301
        %v3303 = vpop.f32.mrf.mxu0
        %v3304 = vadd.f32 0.0, %v3303
        %3305 = vmatprep.mubr.bf16.mxu0 %v720
        %3306 = vmatmul.mubr.bf16.gmra.mxu0 %v719
        %v3307 = vpop.f32.mrf.mxu0
        %v3308 = vadd.f32 0.0, %v3307
        %v3309 = vpop.f32.mrf.mxu0
        %v3310 = vadd.f32 0.0, %v3309
        %v3311 = vpop.f32.mrf.mxu0
        %v3312 = vadd.f32 0.0, %v3311
        %v3313 = vpop.f32.mrf.mxu0
        %v3314 = vadd.f32 0.0, %v3313
        %3315 = vdwg.mxu0
        %3316 = vmatprep.subr.bf16.mxu0 %v2176
        %3317 = vmatpush1.bf16.msra.mxu0 %v2175
        %3318 = vmatprep.subr.bf16.mxu0 %v2164
        %3319 = vmatpush1.bf16.msra.mxu0 %v2163
        %3320 = vmatprep.subr.bf16.mxu0 %v2152
        %3321 = vmatpush1.bf16.msra.mxu0 %v2151
        %3322 = vmatprep.subr.bf16.mxu0 %v2140
        %3323 = vmatpush1.bf16.msra.mxu0 %v2139
        %3324 = vmatprep.subr.bf16.mxu0 %v2128
        %3325 = vmatpush1.bf16.msra.mxu0 %v2127
        %3326 = vmatprep.subr.bf16.mxu0 %v2116
        %3327 = vmatpush1.bf16.msra.mxu0 %v2115
        %3328 = vmatprep.subr.bf16.mxu0 %v2104
        %3329 = vmatpush1.bf16.msra.mxu0 %v2103
        %3330 = vmatprep.subr.bf16.mxu0 %v2092
        %3331 = vmatpush1.bf16.msra.mxu0 %v2091
        %3332 = vmatprep.subr.bf16.mxu0 %v2272
        %3333 = vmatpush2.bf16.msra.mxu0 %v2271
        %3334 = vmatprep.subr.bf16.mxu0 %v2260
        %3335 = vmatpush2.bf16.msra.mxu0 %v2259
        %3336 = vmatprep.subr.bf16.mxu0 %v2248
        %3337 = vmatpush2.bf16.msra.mxu0 %v2247
        %3338 = vmatprep.subr.bf16.mxu0 %v2236
        %3339 = vmatpush2.bf16.msra.mxu0 %v2235
        %3340 = vmatprep.subr.bf16.mxu0 %v2224
        %3341 = vmatpush2.bf16.msra.mxu0 %v2223
        %3342 = vmatprep.subr.bf16.mxu0 %v2212
        %3343 = vmatpush2.bf16.msra.mxu0 %v2211
        %3344 = vmatprep.subr.bf16.mxu0 %v2200
        %3345 = vmatpush2.bf16.msra.mxu0 %v2199
        %3346 = vmatprep.subr.bf16.mxu0 %v2188
        %3347 = vmatpush2.bf16.msra.mxu0 %v2187
        %3348 = vmatprep.mubr.bf16.mxu0 %v710
        %3349 = vmatmul.mubr.bf16.gmra.mxu0 %v709
        %v3350 = vpop.f32.mrf.mxu0
        %v3351 = vadd.f32 %v3278, %v3350
        %v3352 = vpop.f32.mrf.mxu0
        %v3353 = vadd.f32 %v3280, %v3352
        %v3354 = vpop.f32.mrf.mxu0
        %v3355 = vadd.f32 %v3282, %v3354
        %v3356 = vpop.f32.mrf.mxu0
        %v3357 = vadd.f32 %v3284, %v3356
        %3358 = vmatprep.mubr.bf16.mxu0 %v714
        %3359 = vmatmul.mubr.bf16.gmra.mxu0 %v713
        %v3360 = vpop.f32.mrf.mxu0
        %v3361 = vadd.f32 %v3288, %v3360
        %v3362 = vpop.f32.mrf.mxu0
        %v3363 = vadd.f32 %v3290, %v3362
        %v3364 = vpop.f32.mrf.mxu0
        %v3365 = vadd.f32 %v3292, %v3364
        %v3366 = vpop.f32.mrf.mxu0
        %v3367 = vadd.f32 %v3294, %v3366
        %3368 = vmatprep.mubr.bf16.mxu0 %v718
        %3369 = vmatmul.mubr.bf16.gmra.mxu0 %v717
        %v3370 = vpop.f32.mrf.mxu0
        %v3371 = vadd.f32 %v3298, %v3370
        %v3372 = vpop.f32.mrf.mxu0
        %v3373 = vadd.f32 %v3300, %v3372
        %v3374 = vpop.f32.mrf.mxu0
        %v3375 = vadd.f32 %v3302, %v3374
        %v3376 = vpop.f32.mrf.mxu0
        %v3377 = vadd.f32 %v3304, %v3376
        %3378 = vmatprep.mubr.bf16.mxu0 %v722
        %3379 = vmatmul.mubr.bf16.gmra.mxu0 %v721
        %v3380 = vpop.f32.mrf.mxu0
        %v3381 = vadd.f32 %v3308, %v3380
        %v3382 = vpop.f32.mrf.mxu0
        %v3383 = vadd.f32 %v3310, %v3382
        %v3384 = vpop.f32.mrf.mxu0
        %v3385 = vadd.f32 %v3312, %v3384
        %v3386 = vpop.f32.mrf.mxu0
        %v3387 = vadd.f32 %v3314, %v3386
        %3388 = vdwg.mxu0
        %3389 = vmatprep.subr.bf16.mxu0 %v1986
        %3390 = vmatpush1.bf16.msra.mxu0 %v1985
        %3391 = vmatprep.subr.bf16.mxu0 %v1974
        %3392 = vmatpush1.bf16.msra.mxu0 %v1973
        %3393 = vmatprep.subr.bf16.mxu0 %v1962
        %3394 = vmatpush1.bf16.msra.mxu0 %v1961
        %3395 = vmatprep.subr.bf16.mxu0 %v1950
        %3396 = vmatpush1.bf16.msra.mxu0 %v1949
        %3397 = vmatprep.subr.bf16.mxu0 %v1938
        %3398 = vmatpush1.bf16.msra.mxu0 %v1937
        %3399 = vmatprep.subr.bf16.mxu0 %v1926
        %3400 = vmatpush1.bf16.msra.mxu0 %v1925
        %3401 = vmatprep.subr.bf16.mxu0 %v1914
        %3402 = vmatpush1.bf16.msra.mxu0 %v1913
        %3403 = vmatprep.subr.bf16.mxu0 %v1902
        %3404 = vmatpush1.bf16.msra.mxu0 %v1901
        %3405 = vmatprep.subr.bf16.mxu0 %v2082
        %3406 = vmatpush2.bf16.msra.mxu0 %v2081
        %3407 = vmatprep.subr.bf16.mxu0 %v2070
        %3408 = vmatpush2.bf16.msra.mxu0 %v2069
        %3409 = vmatprep.subr.bf16.mxu0 %v2058
        %3410 = vmatpush2.bf16.msra.mxu0 %v2057
        %3411 = vmatprep.subr.bf16.mxu0 %v2046
        %3412 = vmatpush2.bf16.msra.mxu0 %v2045
        %3413 = vmatprep.subr.bf16.mxu0 %v2034
        %3414 = vmatpush2.bf16.msra.mxu0 %v2033
        %3415 = vmatprep.subr.bf16.mxu0 %v2022
        %3416 = vmatpush2.bf16.msra.mxu0 %v2021
        %3417 = vmatprep.subr.bf16.mxu0 %v2010
        %3418 = vmatpush2.bf16.msra.mxu0 %v2009
        %3419 = vmatprep.subr.bf16.mxu0 %v1998
        %3420 = vmatpush2.bf16.msra.mxu0 %v1997
        %3421 = vmatprep.mubr.bf16.mxu0 %v708
        %3422 = vmatmul.mubr.bf16.gmra.mxu0 %v707
        %v3423 = vpop.f32.mrf.mxu0
        %v3424 = vadd.f32 0.0, %v3423
        %v3425 = vpop.f32.mrf.mxu0
        %v3426 = vadd.f32 0.0, %v3425
        %v3427 = vpop.f32.mrf.mxu0
        %v3428 = vadd.f32 0.0, %v3427
        %v3429 = vpop.f32.mrf.mxu0
        %v3430 = vadd.f32 0.0, %v3429
        %3431 = vmatprep.mubr.bf16.mxu0 %v712
        %3432 = vmatmul.mubr.bf16.gmra.mxu0 %v711
        %v3433 = vpop.f32.mrf.mxu0
        %v3434 = vadd.f32 0.0, %v3433
        %v3435 = vpop.f32.mrf.mxu0
        %v3436 = vadd.f32 0.0, %v3435
        %v3437 = vpop.f32.mrf.mxu0
        %v3438 = vadd.f32 0.0, %v3437
        %v3439 = vpop.f32.mrf.mxu0
        %v3440 = vadd.f32 0.0, %v3439
        %3441 = vmatprep.mubr.bf16.mxu0 %v716
        %3442 = vmatmul.mubr.bf16.gmra.mxu0 %v715
        %v3443 = vpop.f32.mrf.mxu0
        %v3444 = vadd.f32 0.0, %v3443
        %v3445 = vpop.f32.mrf.mxu0
        %v3446 = vadd.f32 0.0, %v3445
        %v3447 = vpop.f32.mrf.mxu0
        %v3448 = vadd.f32 0.0, %v3447
        %v3449 = vpop.f32.mrf.mxu0
        %v3450 = vadd.f32 0.0, %v3449
        %3451 = vmatprep.mubr.bf16.mxu0 %v720
        %3452 = vmatmul.mubr.bf16.gmra.mxu0 %v719
        %v3453 = vpop.f32.mrf.mxu0
        %v3454 = vadd.f32 0.0, %v3453
        %v3455 = vpop.f32.mrf.mxu0
        %v3456 = vadd.f32 0.0, %v3455
        %v3457 = vpop.f32.mrf.mxu0
        %v3458 = vadd.f32 0.0, %v3457
        %v3459 = vpop.f32.mrf.mxu0
        %v3460 = vadd.f32 0.0, %v3459
        %3461 = vdwg.mxu0
        %3462 = vmatprep.subr.bf16.mxu0 %v2178
        %3463 = vmatpush1.bf16.msra.mxu0 %v2177
        %3464 = vmatprep.subr.bf16.mxu0 %v2166
        %3465 = vmatpush1.bf16.msra.mxu0 %v2165
        %3466 = vmatprep.subr.bf16.mxu0 %v2154
        %3467 = vmatpush1.bf16.msra.mxu0 %v2153
        %3468 = vmatprep.subr.bf16.mxu0 %v2142
        %3469 = vmatpush1.bf16.msra.mxu0 %v2141
        %3470 = vmatprep.subr.bf16.mxu0 %v2130
        %3471 = vmatpush1.bf16.msra.mxu0 %v2129
        %3472 = vmatprep.subr.bf16.mxu0 %v2118
        %3473 = vmatpush1.bf16.msra.mxu0 %v2117
        %3474 = vmatprep.subr.bf16.mxu0 %v2106
        %3475 = vmatpush1.bf16.msra.mxu0 %v2105
        %3476 = vmatprep.subr.bf16.mxu0 %v2094
        %3477 = vmatpush1.bf16.msra.mxu0 %v2093
        %3478 = vmatprep.subr.bf16.mxu0 %v2274
        %3479 = vmatpush2.bf16.msra.mxu0 %v2273
        %3480 = vmatprep.subr.bf16.mxu0 %v2262
        %3481 = vmatpush2.bf16.msra.mxu0 %v2261
        %3482 = vmatprep.subr.bf16.mxu0 %v2250
        %3483 = vmatpush2.bf16.msra.mxu0 %v2249
        %3484 = vmatprep.subr.bf16.mxu0 %v2238
        %3485 = vmatpush2.bf16.msra.mxu0 %v2237
        %3486 = vmatprep.subr.bf16.mxu0 %v2226
        %3487 = vmatpush2.bf16.msra.mxu0 %v2225
        %3488 = vmatprep.subr.bf16.mxu0 %v2214
        %3489 = vmatpush2.bf16.msra.mxu0 %v2213
        %3490 = vmatprep.subr.bf16.mxu0 %v2202
        %3491 = vmatpush2.bf16.msra.mxu0 %v2201
        %3492 = vmatprep.subr.bf16.mxu0 %v2190
        %3493 = vmatpush2.bf16.msra.mxu0 %v2189
        %3494 = vmatprep.mubr.bf16.mxu0 %v710
        %3495 = vmatmul.mubr.bf16.gmra.mxu0 %v709
        %v3496 = vpop.f32.mrf.mxu0
        %v3497 = vadd.f32 %v3424, %v3496
        %v3498 = vpop.f32.mrf.mxu0
        %v3499 = vadd.f32 %v3426, %v3498
        %v3500 = vpop.f32.mrf.mxu0
        %v3501 = vadd.f32 %v3428, %v3500
        %v3502 = vpop.f32.mrf.mxu0
        %v3503 = vadd.f32 %v3430, %v3502
        %3504 = vmatprep.mubr.bf16.mxu0 %v714
        %3505 = vmatmul.mubr.bf16.gmra.mxu0 %v713
        %v3506 = vpop.f32.mrf.mxu0
        %v3507 = vadd.f32 %v3434, %v3506
        %v3508 = vpop.f32.mrf.mxu0
        %v3509 = vadd.f32 %v3436, %v3508
        %v3510 = vpop.f32.mrf.mxu0
        %v3511 = vadd.f32 %v3438, %v3510
        %v3512 = vpop.f32.mrf.mxu0
        %v3513 = vadd.f32 %v3440, %v3512
        %3514 = vmatprep.mubr.bf16.mxu0 %v718
        %3515 = vmatmul.mubr.bf16.gmra.mxu0 %v717
        %v3516 = vpop.f32.mrf.mxu0
        %v3517 = vadd.f32 %v3444, %v3516
        %v3518 = vpop.f32.mrf.mxu0
        %v3519 = vadd.f32 %v3446, %v3518
        %v3520 = vpop.f32.mrf.mxu0
        %v3521 = vadd.f32 %v3448, %v3520
        %v3522 = vpop.f32.mrf.mxu0
        %v3523 = vadd.f32 %v3450, %v3522
        %3524 = vmatprep.mubr.bf16.mxu0 %v722
        %3525 = vmatmul.mubr.bf16.gmra.mxu0 %v721
        %v3526 = vpop.f32.mrf.mxu0
        %v3527 = vadd.f32 %v3454, %v3526
        %v3528 = vpop.f32.mrf.mxu0
        %v3529 = vadd.f32 %v3456, %v3528
        %v3530 = vpop.f32.mrf.mxu0
        %v3531 = vadd.f32 %v3458, %v3530
        %v3532 = vpop.f32.mrf.mxu0
        %v3533 = vadd.f32 %v3460, %v3532
        %3534 = vdwg.mxu0
        %v3535 = vmul.f32 %v2767, 0.088388346
        %v3536 = vmul.f32 %v2769, 0.088388346
        %v3537 = vmul.f32 %v2913, 0.088388346
        %v3538 = vmul.f32 %v2915, 0.088388346
        %v3539 = vmul.f32 %v2771, 0.088388346
        %v3540 = vmul.f32 %v2773, 0.088388346
        %v3541 = vmul.f32 %v2917, 0.088388346
        %v3542 = vmul.f32 %v2919, 0.088388346
        %v3543 = vmul.f32 %v2777, 0.088388346
        %v3544 = vmul.f32 %v2779, 0.088388346
        %v3545 = vmul.f32 %v2923, 0.088388346
        %v3546 = vmul.f32 %v2925, 0.088388346
        %v3547 = vmul.f32 %v2781, 0.088388346
        %v3548 = vmul.f32 %v2783, 0.088388346
        %v3549 = vmul.f32 %v2927, 0.088388346
        %v3550 = vmul.f32 %v2929, 0.088388346
        %v3551 = vmul.f32 %v2787, 0.088388346
        %v3552 = vmul.f32 %v2789, 0.088388346
        %v3553 = vmul.f32 %v2933, 0.088388346
        %v3554 = vmul.f32 %v2935, 0.088388346
        %v3555 = vmul.f32 %v2791, 0.088388346
        %v3556 = vmul.f32 %v2793, 0.088388346
        %v3557 = vmul.f32 %v2937, 0.088388346
        %v3558 = vmul.f32 %v2939, 0.088388346
        %v3559 = vmul.f32 %v2797, 0.088388346
        %v3560 = vmul.f32 %v2799, 0.088388346
        %v3561 = vmul.f32 %v2943, 0.088388346
        %v3562 = vmul.f32 %v2945, 0.088388346
        %v3563 = vmul.f32 %v2801, 0.088388346
        %v3564 = vmul.f32 %v2803, 0.088388346
        %v3565 = vmul.f32 %v2947, 0.088388346
        %v3566 = vmul.f32 %v2949, 0.088388346
        %v3567 = vpack.c.bf16 %v3539, %v3535
        %v3568 = vpack.c.bf16 %v3540, %v3536
        %v3569 = vpack.c.bf16 %v3541, %v3537
        %v3570 = vpack.c.bf16 %v3542, %v3538
        %v3571 = vpack.c.bf16 %v3547, %v3543
        %v3572 = vpack.c.bf16 %v3548, %v3544
        %v3573 = vpack.c.bf16 %v3549, %v3545
        %v3574 = vpack.c.bf16 %v3550, %v3546
        %v3575 = vpack.c.bf16 %v3555, %v3551
        %v3576 = vpack.c.bf16 %v3556, %v3552
        %v3577 = vpack.c.bf16 %v3557, %v3553
        %v3578 = vpack.c.bf16 %v3558, %v3554
        %v3579 = vpack.c.bf16 %v3563, %v3559
        %v3580 = vpack.c.bf16 %v3564, %v3560
        %v3581 = vpack.c.bf16 %v3565, %v3561
        %v3582 = vpack.c.bf16 %v3566, %v3562
        %v3583 = vpack.c.bf16 %v3063, %v3059
        %v3584 = vpack.c.bf16 %v3065, %v3061
        %v3585 = vpack.c.bf16 %v3209, %v3205
        %v3586 = vpack.c.bf16 %v3211, %v3207
        %v3587 = vpack.c.bf16 %v3073, %v3069
        %v3588 = vpack.c.bf16 %v3075, %v3071
        %v3589 = vpack.c.bf16 %v3219, %v3215
        %v3590 = vpack.c.bf16 %v3221, %v3217
        %v3591 = vpack.c.bf16 %v3083, %v3079
        %v3592 = vpack.c.bf16 %v3085, %v3081
        %v3593 = vpack.c.bf16 %v3229, %v3225
        %v3594 = vpack.c.bf16 %v3231, %v3227
        %v3595 = vpack.c.bf16 %v3093, %v3089
        %v3596 = vpack.c.bf16 %v3095, %v3091
        %v3597 = vpack.c.bf16 %v3239, %v3235
        %v3598 = vpack.c.bf16 %v3241, %v3237
        %v3599 = vpack.c.bf16 %v3355, %v3351
        %v3600 = vpack.c.bf16 %v3357, %v3353
        %v3601 = vpack.c.bf16 %v3501, %v3497
        %v3602 = vpack.c.bf16 %v3503, %v3499
        %v3603 = vpack.c.bf16 %v3365, %v3361
        %v3604 = vpack.c.bf16 %v3367, %v3363
        %v3605 = vpack.c.bf16 %v3511, %v3507
        %v3606 = vpack.c.bf16 %v3513, %v3509
        %v3607 = vpack.c.bf16 %v3375, %v3371
        %v3608 = vpack.c.bf16 %v3377, %v3373
        %v3609 = vpack.c.bf16 %v3521, %v3517
        %v3610 = vpack.c.bf16 %v3523, %v3519
        %v3611 = vpack.c.bf16 %v3385, %v3381
        %v3612 = vpack.c.bf16 %v3387, %v3383
        %v3613 = vpack.c.bf16 %v3531, %v3527
        %v3614 = vpack.c.bf16 %v3533, %v3529
        %3615 = vmatprep.subr.bf16.mxu0 0
        %3616 = vmatpush1.bf16.xpose.msra.mxu0 0
        %3617 = vmatprep.subr.bf16.mxu0 0
        %3618 = vmatpush1.bf16.xpose.msra.mxu0 0
        %3619 = vmatprep.subr.bf16.mxu0 0
        %3620 = vmatpush1.bf16.xpose.msra.mxu0 0
        %3621 = vmatprep.subr.bf16.mxu0 0
        %3622 = vmatpush1.bf16.xpose.msra.mxu0 0
        %3623 = vmatprep.subr.bf16.mxu0 0
        %3624 = vmatpush1.bf16.xpose.msra.mxu0 %v3595
        %3625 = vmatprep.subr.bf16.mxu0 0
        %3626 = vmatpush1.bf16.xpose.msra.mxu0 %v3591
        %3627 = vmatprep.subr.bf16.mxu0 0
        %3628 = vmatpush1.bf16.xpose.msra.mxu0 %v3587
        %3629 = vmatprep.subr.bf16.mxu0 0
        %3630 = vmatpush1.bf16.xpose.msra.mxu0 %v3583
        %3631 = vmatprep.subr.bf16.mxu0 0
        %3632 = vmatpush2.bf16.xpose.msra.mxu0 0
        %3633 = vmatprep.subr.bf16.mxu0 0
        %3634 = vmatpush2.bf16.xpose.msra.mxu0 0
        %3635 = vmatprep.subr.bf16.mxu0 0
        %3636 = vmatpush2.bf16.xpose.msra.mxu0 0
        %3637 = vmatprep.subr.bf16.mxu0 0
        %3638 = vmatpush2.bf16.xpose.msra.mxu0 0
        %3639 = vmatprep.subr.bf16.mxu0 0
        %3640 = vmatpush2.bf16.xpose.msra.mxu0 0
        %3641 = vmatprep.subr.bf16.mxu0 0
        %3642 = vmatpush2.bf16.xpose.msra.mxu0 0
        %3643 = vmatprep.subr.bf16.mxu0 0
        %3644 = vmatpush2.bf16.xpose.msra.mxu0 0
        %3645 = vmatprep.subr.bf16.mxu0 0
        %3646 = vmatpush2.bf16.xpose.msra.mxu0 0
        %3647 = vmatprep.mubr.bf16.mxu0 0
        %3648 = vmatmul.mubr.bf16.gmra.mxu0 %v3567
        %v3649 = vpop.f32.mrf.mxu0
        %v3650 = vadd.f32 0.0, %v3649
        %v3651 = vpop.f32.mrf.mxu0
        %v3652 = vpop.f32.mrf.mxu0
        %v3653 = vadd.f32 0.0, %v3652
        %v3654 = vpop.f32.mrf.mxu0
        %3655 = vmatprep.mubr.bf16.mxu0 0
        %3656 = vmatmul.mubr.bf16.gmra.mxu0 %v3571
        %v3657 = vpop.f32.mrf.mxu0
        %v3658 = vadd.f32 0.0, %v3657
        %v3659 = vpop.f32.mrf.mxu0
        %v3660 = vpop.f32.mrf.mxu0
        %v3661 = vadd.f32 0.0, %v3660
        %v3662 = vpop.f32.mrf.mxu0
        %3663 = vmatprep.mubr.bf16.mxu0 0
        %3664 = vmatmul.mubr.bf16.gmra.mxu0 %v3575
        %v3665 = vpop.f32.mrf.mxu0
        %v3666 = vadd.f32 0.0, %v3665
        %v3667 = vpop.f32.mrf.mxu0
        %v3668 = vpop.f32.mrf.mxu0
        %v3669 = vadd.f32 0.0, %v3668
        %v3670 = vpop.f32.mrf.mxu0
        %3671 = vmatprep.mubr.bf16.mxu0 0
        %3672 = vmatmul.mubr.bf16.gmra.mxu0 %v3579
        %v3673 = vpop.f32.mrf.mxu0
        %v3674 = vadd.f32 0.0, %v3673
        %v3675 = vpop.f32.mrf.mxu0
        %v3676 = vpop.f32.mrf.mxu0
        %v3677 = vadd.f32 0.0, %v3676
        %v3678 = vpop.f32.mrf.mxu0
        %3679 = vdwg.mxu0
        %vm3680 = vcmask 523264
        %v3681 = vsel %vm3680, %v3650, -inf
        %3682 = vmax.xlane.f32.xlu0 %v3681
        %v3683 = vpop.xlane.xlu0 %3682
        %v3684 = vsel %vm3680, %v3653, -inf
        %3685 = vmax.xlane.f32.xlu0 %v3684
        %v3686 = vpop.xlane.xlu0 %3685
        %v3687 = vsel %vm3680, %v3658, -inf
        %3688 = vmax.xlane.f32.xlu0 %v3687
        %v3689 = vpop.xlane.xlu0 %3688
        %v3690 = vsel %vm3680, %v3661, -inf
        %3691 = vmax.xlane.f32.xlu0 %v3690
        %v3692 = vpop.xlane.xlu0 %3691
        %v3693 = vsel %vm3680, %v3666, -inf
        %3694 = vmax.xlane.f32.xlu0 %v3693
        %v3695 = vpop.xlane.xlu0 %3694
        %v3696 = vsel %vm3680, %v3669, -inf
        %3697 = vmax.xlane.f32.xlu0 %v3696
        %v3698 = vpop.xlane.xlu0 %3697
        %v3699 = vsel %vm3680, %v3674, -inf
        %3700 = vmax.xlane.f32.xlu0 %v3699
        %v3701 = vpop.xlane.xlu0 %3700
        %v3702 = vsel %vm3680, %v3677, -inf
        %3703 = vmax.xlane.f32.xlu0 %v3702
        %v3704 = vpop.xlane.xlu0 %3703
        %v3705 = vsub.f32 %v3650, %v3683
        %v3706 = vsub.f32 %v3653, %v3686
        %v3707 = vsub.f32 %v3658, %v3689
        %v3708 = vsub.f32 %v3661, %v3692
        %v3709 = vsub.f32 %v3666, %v3695
        %v3710 = vsub.f32 %v3669, %v3698
        %v3711 = vsub.f32 %v3674, %v3701
        %v3712 = vsub.f32 %v3677, %v3704
        %v3713 = vmul.f32 %v3705, 1.442695
        %v3714 = vpow.pop %v3713
        %v3715 = vmul.f32 %v3706, 1.442695
        %v3716 = vpow.pop %v3715
        %v3717 = vmul.f32 %v3707, 1.442695
        %v3718 = vpow.pop %v3717
        %v3719 = vmul.f32 %v3708, 1.442695
        %v3720 = vpow.pop %v3719
        %v3721 = vmul.f32 %v3709, 1.442695
        %v3722 = vpow.pop %v3721
        %v3723 = vmul.f32 %v3710, 1.442695
        %v3724 = vpow.pop %v3723
        %v3725 = vmul.f32 %v3711, 1.442695
        %v3726 = vpow.pop %v3725
        %v3727 = vmul.f32 %v3712, 1.442695
        %v3728 = vpow.pop %v3727
        %v3729 = vsel %vm3680, %v3714, 0.0
        %3730 = vadd.xlane.f32.xlu0 %v3729
        %v3731 = vpop.xlane.xlu0 %3730
        %v3732 = vsel %vm3680, %v3716, 0.0
        %3733 = vadd.xlane.f32.xlu0 %v3732
        %v3734 = vpop.xlane.xlu0 %3733
        %v3735 = vsel %vm3680, %v3718, 0.0
        %3736 = vadd.xlane.f32.xlu0 %v3735
        %v3737 = vpop.xlane.xlu0 %3736
        %v3738 = vsel %vm3680, %v3720, 0.0
        %3739 = vadd.xlane.f32.xlu0 %v3738
        %v3740 = vpop.xlane.xlu0 %3739
        %v3741 = vsel %vm3680, %v3722, 0.0
        %3742 = vadd.xlane.f32.xlu0 %v3741
        %v3743 = vpop.xlane.xlu0 %3742
        %v3744 = vsel %vm3680, %v3724, 0.0
        %3745 = vadd.xlane.f32.xlu0 %v3744
        %v3746 = vpop.xlane.xlu0 %3745
        %v3747 = vsel %vm3680, %v3726, 0.0
        %3748 = vadd.xlane.f32.xlu0 %v3747
        %v3749 = vpop.xlane.xlu0 %3748
        %v3750 = vsel %vm3680, %v3728, 0.0
        %3751 = vadd.xlane.f32.xlu0 %v3750
        %v3752 = vpop.xlane.xlu0 %3751
        %v3753 = vrcp.pop %v3731
        %v3754 = vrcp.pop %v3734
        %v3755 = vrcp.pop %v3737
        %v3756 = vrcp.pop %v3740
        %v3757 = vrcp.pop %v3743
        %v3758 = vrcp.pop %v3746
        %v3759 = vrcp.pop %v3749
        %v3760 = vrcp.pop %v3752
        %v3761 = vmul.f32 %v3714, %v3753
        %v3762 = vmul.f32 %v3716, %v3754
        %v3763 = vmul.f32 %v3718, %v3755
        %v3764 = vmul.f32 %v3720, %v3756
        %v3765 = vmul.f32 %v3722, %v3757
        %v3766 = vmul.f32 %v3724, %v3758
        %v3767 = vmul.f32 %v3726, %v3759
        %v3768 = vmul.f32 %v3728, %v3760
        %v3769 = vpack.c.bf16 %v3762, %v3761
        %v3770 = vpack.c.bf16 %v3764, %v3763
        %v3771 = vpack.c.bf16 %v3766, %v3765
        %v3772 = vpack.c.bf16 %v3768, %v3767
        %v3774 = vsel %vm3680, %v3769, 0
        %v3777 = vsel %vm3680, %v3770, 0
        %v3780 = vsel %vm3680, %v3771, 0
        %v3783 = vsel %vm3680, %v3772, 0
        %3785 = vmatprep.subr.bf16.mxu0 0
        %3786 = vmatpush1.bf16.msra.mxu0 0
        %3787 = vmatprep.subr.bf16.mxu0 0
        %3788 = vmatpush1.bf16.msra.mxu0 0
        %3789 = vmatprep.subr.bf16.mxu0 0
        %3790 = vmatpush1.bf16.msra.mxu0 0
        %3791 = vmatprep.subr.bf16.mxu0 0
        %3792 = vmatpush1.bf16.msra.mxu0 0
        %3793 = vmatprep.subr.bf16.mxu0 0
        %3794 = vmatpush1.bf16.msra.mxu0 %v3611
        %3795 = vmatprep.subr.bf16.mxu0 0
        %3796 = vmatpush1.bf16.msra.mxu0 %v3607
        %3797 = vmatprep.subr.bf16.mxu0 0
        %3798 = vmatpush1.bf16.msra.mxu0 %v3603
        %3799 = vmatprep.subr.bf16.mxu0 0
        %3800 = vmatpush1.bf16.msra.mxu0 %v3599
        %3801 = vmatprep.subr.bf16.mxu0 0
        %3802 = vmatpush2.bf16.msra.mxu0 0
        %3803 = vmatprep.subr.bf16.mxu0 0
        %3804 = vmatpush2.bf16.msra.mxu0 0
        %3805 = vmatprep.subr.bf16.mxu0 0
        %3806 = vmatpush2.bf16.msra.mxu0 0
        %3807 = vmatprep.subr.bf16.mxu0 0
        %3808 = vmatpush2.bf16.msra.mxu0 0
        %3809 = vmatprep.subr.bf16.mxu0 0
        %3810 = vmatpush2.bf16.msra.mxu0 0
        %3811 = vmatprep.subr.bf16.mxu0 0
        %3812 = vmatpush2.bf16.msra.mxu0 0
        %3813 = vmatprep.subr.bf16.mxu0 0
        %3814 = vmatpush2.bf16.msra.mxu0 0
        %3815 = vmatprep.subr.bf16.mxu0 0
        %3816 = vmatpush2.bf16.msra.mxu0 0
        %3817 = vmatprep.mubr.bf16.mxu0 0
        %3818 = vmatmul.mubr.bf16.gmra.mxu0 %v3774
        %v3819 = vpop.f32.mrf.mxu0
        %v3820 = vadd.f32 0.0, %v3819
        %v3821 = vpop.f32.mrf.mxu0
        %v3822 = vpop.f32.mrf.mxu0
        %v3823 = vadd.f32 0.0, %v3822
        %v3824 = vpop.f32.mrf.mxu0
        %3825 = vmatprep.mubr.bf16.mxu0 0
        %3826 = vmatmul.mubr.bf16.gmra.mxu0 %v3777
        %v3827 = vpop.f32.mrf.mxu0
        %v3828 = vadd.f32 0.0, %v3827
        %v3829 = vpop.f32.mrf.mxu0
        %v3830 = vpop.f32.mrf.mxu0
        %v3831 = vadd.f32 0.0, %v3830
        %v3832 = vpop.f32.mrf.mxu0
        %3833 = vmatprep.mubr.bf16.mxu0 0
        %3834 = vmatmul.mubr.bf16.gmra.mxu0 %v3780
        %v3835 = vpop.f32.mrf.mxu0
        %v3836 = vadd.f32 0.0, %v3835
        %v3837 = vpop.f32.mrf.mxu0
        %v3838 = vpop.f32.mrf.mxu0
        %v3839 = vadd.f32 0.0, %v3838
        %v3840 = vpop.f32.mrf.mxu0
        %3841 = vmatprep.mubr.bf16.mxu0 0
        %3842 = vmatmul.mubr.bf16.gmra.mxu0 %v3783
        %v3843 = vpop.f32.mrf.mxu0
        %v3844 = vadd.f32 0.0, %v3843
        %v3845 = vpop.f32.mrf.mxu0
        %v3846 = vpop.f32.mrf.mxu0
        %v3847 = vadd.f32 0.0, %v3846
        %v3848 = vpop.f32.mrf.mxu0
        %3849 = vdwg.mxu0
        %3850 = vmatprep.subr.bf16.mxu0 0
        %3851 = vmatpush1.bf16.xpose.msra.mxu0 0
        %3852 = vmatprep.subr.bf16.mxu0 0
        %3853 = vmatpush1.bf16.xpose.msra.mxu0 0
        %3854 = vmatprep.subr.bf16.mxu0 0
        %3855 = vmatpush1.bf16.xpose.msra.mxu0 0
        %3856 = vmatprep.subr.bf16.mxu0 0
        %3857 = vmatpush1.bf16.xpose.msra.mxu0 0
        %3858 = vmatprep.subr.bf16.mxu0 0
        %3859 = vmatpush1.bf16.xpose.msra.mxu0 %v3596
        %3860 = vmatprep.subr.bf16.mxu0 0
        %3861 = vmatpush1.bf16.xpose.msra.mxu0 %v3592
        %3862 = vmatprep.subr.bf16.mxu0 0
        %3863 = vmatpush1.bf16.xpose.msra.mxu0 %v3588
        %3864 = vmatprep.subr.bf16.mxu0 0
        %3865 = vmatpush1.bf16.xpose.msra.mxu0 %v3584
        %3866 = vmatprep.subr.bf16.mxu0 0
        %3867 = vmatpush2.bf16.xpose.msra.mxu0 0
        %3868 = vmatprep.subr.bf16.mxu0 0
        %3869 = vmatpush2.bf16.xpose.msra.mxu0 0
        %3870 = vmatprep.subr.bf16.mxu0 0
        %3871 = vmatpush2.bf16.xpose.msra.mxu0 0
        %3872 = vmatprep.subr.bf16.mxu0 0
        %3873 = vmatpush2.bf16.xpose.msra.mxu0 0
        %3874 = vmatprep.subr.bf16.mxu0 0
        %3875 = vmatpush2.bf16.xpose.msra.mxu0 0
        %3876 = vmatprep.subr.bf16.mxu0 0
        %3877 = vmatpush2.bf16.xpose.msra.mxu0 0
        %3878 = vmatprep.subr.bf16.mxu0 0
        %3879 = vmatpush2.bf16.xpose.msra.mxu0 0
        %3880 = vmatprep.subr.bf16.mxu0 0
        %3881 = vmatpush2.bf16.xpose.msra.mxu0 0
        %3882 = vmatprep.mubr.bf16.mxu0 0
        %3883 = vmatmul.mubr.bf16.gmra.mxu0 %v3568
        %v3884 = vpop.f32.mrf.mxu0
        %v3885 = vadd.f32 0.0, %v3884
        %v3886 = vpop.f32.mrf.mxu0
        %v3887 = vpop.f32.mrf.mxu0
        %v3888 = vadd.f32 0.0, %v3887
        %v3889 = vpop.f32.mrf.mxu0
        %3890 = vmatprep.mubr.bf16.mxu0 0
        %3891 = vmatmul.mubr.bf16.gmra.mxu0 %v3572
        %v3892 = vpop.f32.mrf.mxu0
        %v3893 = vadd.f32 0.0, %v3892
        %v3894 = vpop.f32.mrf.mxu0
        %v3895 = vpop.f32.mrf.mxu0
        %v3896 = vadd.f32 0.0, %v3895
        %v3897 = vpop.f32.mrf.mxu0
        %3898 = vmatprep.mubr.bf16.mxu0 0
        %3899 = vmatmul.mubr.bf16.gmra.mxu0 %v3576
        %v3900 = vpop.f32.mrf.mxu0
        %v3901 = vadd.f32 0.0, %v3900
        %v3902 = vpop.f32.mrf.mxu0
        %v3903 = vpop.f32.mrf.mxu0
        %v3904 = vadd.f32 0.0, %v3903
        %v3905 = vpop.f32.mrf.mxu0
        %3906 = vmatprep.mubr.bf16.mxu0 0
        %3907 = vmatmul.mubr.bf16.gmra.mxu0 %v3580
        %v3908 = vpop.f32.mrf.mxu0
        %v3909 = vadd.f32 0.0, %v3908
        %v3910 = vpop.f32.mrf.mxu0
        %v3911 = vpop.f32.mrf.mxu0
        %v3912 = vadd.f32 0.0, %v3911
        %v3913 = vpop.f32.mrf.mxu0
        %3914 = vdwg.mxu0
        %v3915 = vsel %vm3680, %v3885, -inf
        %3916 = vmax.xlane.f32.xlu0 %v3915
        %v3917 = vpop.xlane.xlu0 %3916
        %v3918 = vsel %vm3680, %v3888, -inf
        %3919 = vmax.xlane.f32.xlu0 %v3918
        %v3920 = vpop.xlane.xlu0 %3919
        %v3921 = vsel %vm3680, %v3893, -inf
        %3922 = vmax.xlane.f32.xlu0 %v3921
        %v3923 = vpop.xlane.xlu0 %3922
        %v3924 = vsel %vm3680, %v3896, -inf
        %3925 = vmax.xlane.f32.xlu0 %v3924
        %v3926 = vpop.xlane.xlu0 %3925
        %v3927 = vsel %vm3680, %v3901, -inf
        %3928 = vmax.xlane.f32.xlu0 %v3927
        %v3929 = vpop.xlane.xlu0 %3928
        %v3930 = vsel %vm3680, %v3904, -inf
        %3931 = vmax.xlane.f32.xlu0 %v3930
        %v3932 = vpop.xlane.xlu0 %3931
        %v3933 = vsel %vm3680, %v3909, -inf
        %3934 = vmax.xlane.f32.xlu0 %v3933
        %v3935 = vpop.xlane.xlu0 %3934
        %v3936 = vsel %vm3680, %v3912, -inf
        %3937 = vmax.xlane.f32.xlu0 %v3936
        %v3938 = vpop.xlane.xlu0 %3937
        %v3939 = vsub.f32 %v3885, %v3917
        %v3940 = vsub.f32 %v3888, %v3920
        %v3941 = vsub.f32 %v3893, %v3923
        %v3942 = vsub.f32 %v3896, %v3926
        %v3943 = vsub.f32 %v3901, %v3929
        %v3944 = vsub.f32 %v3904, %v3932
        %v3945 = vsub.f32 %v3909, %v3935
        %v3946 = vsub.f32 %v3912, %v3938
        %v3947 = vmul.f32 %v3939, 1.442695
        %v3948 = vpow.pop %v3947
        %v3949 = vmul.f32 %v3940, 1.442695
        %v3950 = vpow.pop %v3949
        %v3951 = vmul.f32 %v3941, 1.442695
        %v3952 = vpow.pop %v3951
        %v3953 = vmul.f32 %v3942, 1.442695
        %v3954 = vpow.pop %v3953
        %v3955 = vmul.f32 %v3943, 1.442695
        %v3956 = vpow.pop %v3955
        %v3957 = vmul.f32 %v3944, 1.442695
        %v3958 = vpow.pop %v3957
        %v3959 = vmul.f32 %v3945, 1.442695
        %v3960 = vpow.pop %v3959
        %v3961 = vmul.f32 %v3946, 1.442695
        %v3962 = vpow.pop %v3961
        %v3963 = vsel %vm3680, %v3948, 0.0
        %3964 = vadd.xlane.f32.xlu0 %v3963
        %v3965 = vpop.xlane.xlu0 %3964
        %v3966 = vsel %vm3680, %v3950, 0.0
        %3967 = vadd.xlane.f32.xlu0 %v3966
        %v3968 = vpop.xlane.xlu0 %3967
        %v3969 = vsel %vm3680, %v3952, 0.0
        %3970 = vadd.xlane.f32.xlu0 %v3969
        %v3971 = vpop.xlane.xlu0 %3970
        %v3972 = vsel %vm3680, %v3954, 0.0
        %3973 = vadd.xlane.f32.xlu0 %v3972
        %v3974 = vpop.xlane.xlu0 %3973
        %v3975 = vsel %vm3680, %v3956, 0.0
        %3976 = vadd.xlane.f32.xlu0 %v3975
        %v3977 = vpop.xlane.xlu0 %3976
        %v3978 = vsel %vm3680, %v3958, 0.0
        %3979 = vadd.xlane.f32.xlu0 %v3978
        %v3980 = vpop.xlane.xlu0 %3979
        %v3981 = vsel %vm3680, %v3960, 0.0
        %3982 = vadd.xlane.f32.xlu0 %v3981
        %v3983 = vpop.xlane.xlu0 %3982
        %v3984 = vsel %vm3680, %v3962, 0.0
        %3985 = vadd.xlane.f32.xlu0 %v3984
        %v3986 = vpop.xlane.xlu0 %3985
        %v3987 = vrcp.pop %v3965
        %v3988 = vrcp.pop %v3968
        %v3989 = vrcp.pop %v3971
        %v3990 = vrcp.pop %v3974
        %v3991 = vrcp.pop %v3977
        %v3992 = vrcp.pop %v3980
        %v3993 = vrcp.pop %v3983
        %v3994 = vrcp.pop %v3986
        %v3995 = vmul.f32 %v3948, %v3987
        %v3996 = vmul.f32 %v3950, %v3988
        %v3997 = vmul.f32 %v3952, %v3989
        %v3998 = vmul.f32 %v3954, %v3990
        %v3999 = vmul.f32 %v3956, %v3991
        %v4000 = vmul.f32 %v3958, %v3992
        %v4001 = vmul.f32 %v3960, %v3993
        %v4002 = vmul.f32 %v3962, %v3994
        %v4003 = vpack.c.bf16 %v3996, %v3995
        %v4004 = vpack.c.bf16 %v3998, %v3997
        %v4005 = vpack.c.bf16 %v4000, %v3999
        %v4006 = vpack.c.bf16 %v4002, %v4001
        %v4008 = vsel %vm3680, %v4003, 0
        %v4011 = vsel %vm3680, %v4004, 0
        %v4014 = vsel %vm3680, %v4005, 0
        %v4017 = vsel %vm3680, %v4006, 0
        %4019 = vmatprep.subr.bf16.mxu0 0
        %4020 = vmatpush1.bf16.msra.mxu0 0
        %4021 = vmatprep.subr.bf16.mxu0 0
        %4022 = vmatpush1.bf16.msra.mxu0 0
        %4023 = vmatprep.subr.bf16.mxu0 0
        %4024 = vmatpush1.bf16.msra.mxu0 0
        %4025 = vmatprep.subr.bf16.mxu0 0
        %4026 = vmatpush1.bf16.msra.mxu0 0
        %4027 = vmatprep.subr.bf16.mxu0 0
        %4028 = vmatpush1.bf16.msra.mxu0 %v3612
        %4029 = vmatprep.subr.bf16.mxu0 0
        %4030 = vmatpush1.bf16.msra.mxu0 %v3608
        %4031 = vmatprep.subr.bf16.mxu0 0
        %4032 = vmatpush1.bf16.msra.mxu0 %v3604
        %4033 = vmatprep.subr.bf16.mxu0 0
        %4034 = vmatpush1.bf16.msra.mxu0 %v3600
        %4035 = vmatprep.subr.bf16.mxu0 0
        %4036 = vmatpush2.bf16.msra.mxu0 0
        %4037 = vmatprep.subr.bf16.mxu0 0
        %4038 = vmatpush2.bf16.msra.mxu0 0
        %4039 = vmatprep.subr.bf16.mxu0 0
        %4040 = vmatpush2.bf16.msra.mxu0 0
        %4041 = vmatprep.subr.bf16.mxu0 0
        %4042 = vmatpush2.bf16.msra.mxu0 0
        %4043 = vmatprep.subr.bf16.mxu0 0
        %4044 = vmatpush2.bf16.msra.mxu0 0
        %4045 = vmatprep.subr.bf16.mxu0 0
        %4046 = vmatpush2.bf16.msra.mxu0 0
        %4047 = vmatprep.subr.bf16.mxu0 0
        %4048 = vmatpush2.bf16.msra.mxu0 0
        %4049 = vmatprep.subr.bf16.mxu0 0
        %4050 = vmatpush2.bf16.msra.mxu0 0
        %4051 = vmatprep.mubr.bf16.mxu0 0
        %4052 = vmatmul.mubr.bf16.gmra.mxu0 %v4008
        %v4053 = vpop.f32.mrf.mxu0
        %v4054 = vadd.f32 0.0, %v4053
        %v4055 = vpop.f32.mrf.mxu0
        %v4056 = vpop.f32.mrf.mxu0
        %v4057 = vadd.f32 0.0, %v4056
        %v4058 = vpop.f32.mrf.mxu0
        %4059 = vmatprep.mubr.bf16.mxu0 0
        %4060 = vmatmul.mubr.bf16.gmra.mxu0 %v4011
        %v4061 = vpop.f32.mrf.mxu0
        %v4062 = vadd.f32 0.0, %v4061
        %v4063 = vpop.f32.mrf.mxu0
        %v4064 = vpop.f32.mrf.mxu0
        %v4065 = vadd.f32 0.0, %v4064
        %v4066 = vpop.f32.mrf.mxu0
        %4067 = vmatprep.mubr.bf16.mxu0 0
        %4068 = vmatmul.mubr.bf16.gmra.mxu0 %v4014
        %v4069 = vpop.f32.mrf.mxu0
        %v4070 = vadd.f32 0.0, %v4069
        %v4071 = vpop.f32.mrf.mxu0
        %v4072 = vpop.f32.mrf.mxu0
        %v4073 = vadd.f32 0.0, %v4072
        %v4074 = vpop.f32.mrf.mxu0
        %4075 = vmatprep.mubr.bf16.mxu0 0
        %4076 = vmatmul.mubr.bf16.gmra.mxu0 %v4017
        %v4077 = vpop.f32.mrf.mxu0
        %v4078 = vadd.f32 0.0, %v4077
        %v4079 = vpop.f32.mrf.mxu0
        %v4080 = vpop.f32.mrf.mxu0
        %v4081 = vadd.f32 0.0, %v4080
        %v4082 = vpop.f32.mrf.mxu0
        %4083 = vdwg.mxu0
        %4084 = vmatprep.subr.bf16.mxu0 0
        %4085 = vmatpush1.bf16.xpose.msra.mxu0 0
        %4086 = vmatprep.subr.bf16.mxu0 0
        %4087 = vmatpush1.bf16.xpose.msra.mxu0 0
        %4088 = vmatprep.subr.bf16.mxu0 0
        %4089 = vmatpush1.bf16.xpose.msra.mxu0 0
        %4090 = vmatprep.subr.bf16.mxu0 0
        %4091 = vmatpush1.bf16.xpose.msra.mxu0 0
        %4092 = vmatprep.subr.bf16.mxu0 0
        %4093 = vmatpush1.bf16.xpose.msra.mxu0 %v3597
        %4094 = vmatprep.subr.bf16.mxu0 0
        %4095 = vmatpush1.bf16.xpose.msra.mxu0 %v3593
        %4096 = vmatprep.subr.bf16.mxu0 0
        %4097 = vmatpush1.bf16.xpose.msra.mxu0 %v3589
        %4098 = vmatprep.subr.bf16.mxu0 0
        %4099 = vmatpush1.bf16.xpose.msra.mxu0 %v3585
        %4100 = vmatprep.subr.bf16.mxu0 0
        %4101 = vmatpush2.bf16.xpose.msra.mxu0 0
        %4102 = vmatprep.subr.bf16.mxu0 0
        %4103 = vmatpush2.bf16.xpose.msra.mxu0 0
        %4104 = vmatprep.subr.bf16.mxu0 0
        %4105 = vmatpush2.bf16.xpose.msra.mxu0 0
        %4106 = vmatprep.subr.bf16.mxu0 0
        %4107 = vmatpush2.bf16.xpose.msra.mxu0 0
        %4108 = vmatprep.subr.bf16.mxu0 0
        %4109 = vmatpush2.bf16.xpose.msra.mxu0 0
        %4110 = vmatprep.subr.bf16.mxu0 0
        %4111 = vmatpush2.bf16.xpose.msra.mxu0 0
        %4112 = vmatprep.subr.bf16.mxu0 0
        %4113 = vmatpush2.bf16.xpose.msra.mxu0 0
        %4114 = vmatprep.subr.bf16.mxu0 0
        %4115 = vmatpush2.bf16.xpose.msra.mxu0 0
        %4116 = vmatprep.mubr.bf16.mxu0 0
        %4117 = vmatmul.mubr.bf16.gmra.mxu0 %v3569
        %v4118 = vpop.f32.mrf.mxu0
        %v4119 = vadd.f32 0.0, %v4118
        %v4120 = vpop.f32.mrf.mxu0
        %v4121 = vpop.f32.mrf.mxu0
        %v4122 = vadd.f32 0.0, %v4121
        %v4123 = vpop.f32.mrf.mxu0
        %4124 = vmatprep.mubr.bf16.mxu0 0
        %4125 = vmatmul.mubr.bf16.gmra.mxu0 %v3573
        %v4126 = vpop.f32.mrf.mxu0
        %v4127 = vadd.f32 0.0, %v4126
        %v4128 = vpop.f32.mrf.mxu0
        %v4129 = vpop.f32.mrf.mxu0
        %v4130 = vadd.f32 0.0, %v4129
        %v4131 = vpop.f32.mrf.mxu0
        %4132 = vmatprep.mubr.bf16.mxu0 0
        %4133 = vmatmul.mubr.bf16.gmra.mxu0 %v3577
        %v4134 = vpop.f32.mrf.mxu0
        %v4135 = vadd.f32 0.0, %v4134
        %v4136 = vpop.f32.mrf.mxu0
        %v4137 = vpop.f32.mrf.mxu0
        %v4138 = vadd.f32 0.0, %v4137
        %v4139 = vpop.f32.mrf.mxu0
        %4140 = vmatprep.mubr.bf16.mxu0 0
        %4141 = vmatmul.mubr.bf16.gmra.mxu0 %v3581
        %v4142 = vpop.f32.mrf.mxu0
        %v4143 = vadd.f32 0.0, %v4142
        %v4144 = vpop.f32.mrf.mxu0
        %v4145 = vpop.f32.mrf.mxu0
        %v4146 = vadd.f32 0.0, %v4145
        %v4147 = vpop.f32.mrf.mxu0
        %4148 = vdwg.mxu0
        %v4149 = vsel %vm3680, %v4119, -inf
        %4150 = vmax.xlane.f32.xlu0 %v4149
        %v4151 = vpop.xlane.xlu0 %4150
        %v4152 = vsel %vm3680, %v4122, -inf
        %4153 = vmax.xlane.f32.xlu0 %v4152
        %v4154 = vpop.xlane.xlu0 %4153
        %v4155 = vsel %vm3680, %v4127, -inf
        %4156 = vmax.xlane.f32.xlu0 %v4155
        %v4157 = vpop.xlane.xlu0 %4156
        %v4158 = vsel %vm3680, %v4130, -inf
        %4159 = vmax.xlane.f32.xlu0 %v4158
        %v4160 = vpop.xlane.xlu0 %4159
        %v4161 = vsel %vm3680, %v4135, -inf
        %4162 = vmax.xlane.f32.xlu0 %v4161
        %v4163 = vpop.xlane.xlu0 %4162
        %v4164 = vsel %vm3680, %v4138, -inf
        %4165 = vmax.xlane.f32.xlu0 %v4164
        %v4166 = vpop.xlane.xlu0 %4165
        %v4167 = vsel %vm3680, %v4143, -inf
        %4168 = vmax.xlane.f32.xlu0 %v4167
        %v4169 = vpop.xlane.xlu0 %4168
        %v4170 = vsel %vm3680, %v4146, -inf
        %4171 = vmax.xlane.f32.xlu0 %v4170
        %v4172 = vpop.xlane.xlu0 %4171
        %v4173 = vsub.f32 %v4119, %v4151
        %v4174 = vsub.f32 %v4122, %v4154
        %v4175 = vsub.f32 %v4127, %v4157
        %v4176 = vsub.f32 %v4130, %v4160
        %v4177 = vsub.f32 %v4135, %v4163
        %v4178 = vsub.f32 %v4138, %v4166
        %v4179 = vsub.f32 %v4143, %v4169
        %v4180 = vsub.f32 %v4146, %v4172
        %v4181 = vmul.f32 %v4173, 1.442695
        %v4182 = vpow.pop %v4181
        %v4183 = vmul.f32 %v4174, 1.442695
        %v4184 = vpow.pop %v4183
        %v4185 = vmul.f32 %v4175, 1.442695
        %v4186 = vpow.pop %v4185
        %v4187 = vmul.f32 %v4176, 1.442695
        %v4188 = vpow.pop %v4187
        %v4189 = vmul.f32 %v4177, 1.442695
        %v4190 = vpow.pop %v4189
        %v4191 = vmul.f32 %v4178, 1.442695
        %v4192 = vpow.pop %v4191
        %v4193 = vmul.f32 %v4179, 1.442695
        %v4194 = vpow.pop %v4193
        %v4195 = vmul.f32 %v4180, 1.442695
        %v4196 = vpow.pop %v4195
        %v4197 = vsel %vm3680, %v4182, 0.0
        %4198 = vadd.xlane.f32.xlu0 %v4197
        %v4199 = vpop.xlane.xlu0 %4198
        %v4200 = vsel %vm3680, %v4184, 0.0
        %4201 = vadd.xlane.f32.xlu0 %v4200
        %v4202 = vpop.xlane.xlu0 %4201
        %v4203 = vsel %vm3680, %v4186, 0.0
        %4204 = vadd.xlane.f32.xlu0 %v4203
        %v4205 = vpop.xlane.xlu0 %4204
        %v4206 = vsel %vm3680, %v4188, 0.0
        %4207 = vadd.xlane.f32.xlu0 %v4206
        %v4208 = vpop.xlane.xlu0 %4207
        %v4209 = vsel %vm3680, %v4190, 0.0
        %4210 = vadd.xlane.f32.xlu0 %v4209
        %v4211 = vpop.xlane.xlu0 %4210
        %v4212 = vsel %vm3680, %v4192, 0.0
        %4213 = vadd.xlane.f32.xlu0 %v4212
        %v4214 = vpop.xlane.xlu0 %4213
        %v4215 = vsel %vm3680, %v4194, 0.0
        %4216 = vadd.xlane.f32.xlu0 %v4215
        %v4217 = vpop.xlane.xlu0 %4216
        %v4218 = vsel %vm3680, %v4196, 0.0
        %4219 = vadd.xlane.f32.xlu0 %v4218
        %v4220 = vpop.xlane.xlu0 %4219
        %v4221 = vrcp.pop %v4199
        %v4222 = vrcp.pop %v4202
        %v4223 = vrcp.pop %v4205
        %v4224 = vrcp.pop %v4208
        %v4225 = vrcp.pop %v4211
        %v4226 = vrcp.pop %v4214
        %v4227 = vrcp.pop %v4217
        %v4228 = vrcp.pop %v4220
        %v4229 = vmul.f32 %v4182, %v4221
        %v4230 = vmul.f32 %v4184, %v4222
        %v4231 = vmul.f32 %v4186, %v4223
        %v4232 = vmul.f32 %v4188, %v4224
        %v4233 = vmul.f32 %v4190, %v4225
        %v4234 = vmul.f32 %v4192, %v4226
        %v4235 = vmul.f32 %v4194, %v4227
        %v4236 = vmul.f32 %v4196, %v4228
        %v4237 = vpack.c.bf16 %v4230, %v4229
        %v4238 = vpack.c.bf16 %v4232, %v4231
        %v4239 = vpack.c.bf16 %v4234, %v4233
        %v4240 = vpack.c.bf16 %v4236, %v4235
        %v4242 = vsel %vm3680, %v4237, 0
        %v4245 = vsel %vm3680, %v4238, 0
        %v4248 = vsel %vm3680, %v4239, 0
        %v4251 = vsel %vm3680, %v4240, 0
        %4253 = vmatprep.subr.bf16.mxu0 0
        %4254 = vmatpush1.bf16.msra.mxu0 0
        %4255 = vmatprep.subr.bf16.mxu0 0
        %4256 = vmatpush1.bf16.msra.mxu0 0
        %4257 = vmatprep.subr.bf16.mxu0 0
        %4258 = vmatpush1.bf16.msra.mxu0 0
        %4259 = vmatprep.subr.bf16.mxu0 0
        %4260 = vmatpush1.bf16.msra.mxu0 0
        %4261 = vmatprep.subr.bf16.mxu0 0
        %4262 = vmatpush1.bf16.msra.mxu0 %v3613
        %4263 = vmatprep.subr.bf16.mxu0 0
        %4264 = vmatpush1.bf16.msra.mxu0 %v3609
        %4265 = vmatprep.subr.bf16.mxu0 0
        %4266 = vmatpush1.bf16.msra.mxu0 %v3605
        %4267 = vmatprep.subr.bf16.mxu0 0
        %4268 = vmatpush1.bf16.msra.mxu0 %v3601
        %4269 = vmatprep.subr.bf16.mxu0 0
        %4270 = vmatpush2.bf16.msra.mxu0 0
        %4271 = vmatprep.subr.bf16.mxu0 0
        %4272 = vmatpush2.bf16.msra.mxu0 0
        %4273 = vmatprep.subr.bf16.mxu0 0
        %4274 = vmatpush2.bf16.msra.mxu0 0
        %4275 = vmatprep.subr.bf16.mxu0 0
        %4276 = vmatpush2.bf16.msra.mxu0 0
        %4277 = vmatprep.subr.bf16.mxu0 0
        %4278 = vmatpush2.bf16.msra.mxu0 0
        %4279 = vmatprep.subr.bf16.mxu0 0
        %4280 = vmatpush2.bf16.msra.mxu0 0
        %4281 = vmatprep.subr.bf16.mxu0 0
        %4282 = vmatpush2.bf16.msra.mxu0 0
        %4283 = vmatprep.subr.bf16.mxu0 0
        %4284 = vmatpush2.bf16.msra.mxu0 0
        %4285 = vmatprep.mubr.bf16.mxu0 0
        %4286 = vmatmul.mubr.bf16.gmra.mxu0 %v4242
        %v4287 = vpop.f32.mrf.mxu0
        %v4288 = vadd.f32 0.0, %v4287
        %v4289 = vpop.f32.mrf.mxu0
        %v4290 = vpop.f32.mrf.mxu0
        %v4291 = vadd.f32 0.0, %v4290
        %v4292 = vpop.f32.mrf.mxu0
        %4293 = vmatprep.mubr.bf16.mxu0 0
        %4294 = vmatmul.mubr.bf16.gmra.mxu0 %v4245
        %v4295 = vpop.f32.mrf.mxu0
        %v4296 = vadd.f32 0.0, %v4295
        %v4297 = vpop.f32.mrf.mxu0
        %v4298 = vpop.f32.mrf.mxu0
        %v4299 = vadd.f32 0.0, %v4298
        %v4300 = vpop.f32.mrf.mxu0
        %4301 = vmatprep.mubr.bf16.mxu0 0
        %4302 = vmatmul.mubr.bf16.gmra.mxu0 %v4248
        %v4303 = vpop.f32.mrf.mxu0
        %v4304 = vadd.f32 0.0, %v4303
        %v4305 = vpop.f32.mrf.mxu0
        %v4306 = vpop.f32.mrf.mxu0
        %v4307 = vadd.f32 0.0, %v4306
        %v4308 = vpop.f32.mrf.mxu0
        %4309 = vmatprep.mubr.bf16.mxu0 0
        %4310 = vmatmul.mubr.bf16.gmra.mxu0 %v4251
        %v4311 = vpop.f32.mrf.mxu0
        %v4312 = vadd.f32 0.0, %v4311
        %v4313 = vpop.f32.mrf.mxu0
        %v4314 = vpop.f32.mrf.mxu0
        %v4315 = vadd.f32 0.0, %v4314
        %v4316 = vpop.f32.mrf.mxu0
        %4317 = vdwg.mxu0
        %4318 = vmatprep.subr.bf16.mxu0 0
        %4319 = vmatpush1.bf16.xpose.msra.mxu0 0
        %4320 = vmatprep.subr.bf16.mxu0 0
        %4321 = vmatpush1.bf16.xpose.msra.mxu0 0
        %4322 = vmatprep.subr.bf16.mxu0 0
        %4323 = vmatpush1.bf16.xpose.msra.mxu0 0
        %4324 = vmatprep.subr.bf16.mxu0 0
        %4325 = vmatpush1.bf16.xpose.msra.mxu0 0
        %4326 = vmatprep.subr.bf16.mxu0 0
        %4327 = vmatpush1.bf16.xpose.msra.mxu0 %v3598
        %4328 = vmatprep.subr.bf16.mxu0 0
        %4329 = vmatpush1.bf16.xpose.msra.mxu0 %v3594
        %4330 = vmatprep.subr.bf16.mxu0 0
        %4331 = vmatpush1.bf16.xpose.msra.mxu0 %v3590
        %4332 = vmatprep.subr.bf16.mxu0 0
        %4333 = vmatpush1.bf16.xpose.msra.mxu0 %v3586
        %4334 = vmatprep.subr.bf16.mxu0 0
        %4335 = vmatpush2.bf16.xpose.msra.mxu0 0
        %4336 = vmatprep.subr.bf16.mxu0 0
        %4337 = vmatpush2.bf16.xpose.msra.mxu0 0
        %4338 = vmatprep.subr.bf16.mxu0 0
        %4339 = vmatpush2.bf16.xpose.msra.mxu0 0
        %4340 = vmatprep.subr.bf16.mxu0 0
        %4341 = vmatpush2.bf16.xpose.msra.mxu0 0
        %4342 = vmatprep.subr.bf16.mxu0 0
        %4343 = vmatpush2.bf16.xpose.msra.mxu0 0
        %4344 = vmatprep.subr.bf16.mxu0 0
        %4345 = vmatpush2.bf16.xpose.msra.mxu0 0
        %4346 = vmatprep.subr.bf16.mxu0 0
        %4347 = vmatpush2.bf16.xpose.msra.mxu0 0
        %4348 = vmatprep.subr.bf16.mxu0 0
        %4349 = vmatpush2.bf16.xpose.msra.mxu0 0
        %4350 = vmatprep.mubr.bf16.mxu0 0
        %4351 = vmatmul.mubr.bf16.gmra.mxu0 %v3570
        %v4352 = vpop.f32.mrf.mxu0
        %v4353 = vadd.f32 0.0, %v4352
        %v4354 = vpop.f32.mrf.mxu0
        %v4355 = vpop.f32.mrf.mxu0
        %v4356 = vadd.f32 0.0, %v4355
        %v4357 = vpop.f32.mrf.mxu0
        %4358 = vmatprep.mubr.bf16.mxu0 0
        %4359 = vmatmul.mubr.bf16.gmra.mxu0 %v3574
        %v4360 = vpop.f32.mrf.mxu0
        %v4361 = vadd.f32 0.0, %v4360
        %v4362 = vpop.f32.mrf.mxu0
        %v4363 = vpop.f32.mrf.mxu0
        %v4364 = vadd.f32 0.0, %v4363
        %v4365 = vpop.f32.mrf.mxu0
        %4366 = vmatprep.mubr.bf16.mxu0 0
        %4367 = vmatmul.mubr.bf16.gmra.mxu0 %v3578
        %v4368 = vpop.f32.mrf.mxu0
        %v4369 = vadd.f32 0.0, %v4368
        %v4370 = vpop.f32.mrf.mxu0
        %v4371 = vpop.f32.mrf.mxu0
        %v4372 = vadd.f32 0.0, %v4371
        %v4373 = vpop.f32.mrf.mxu0
        %4374 = vmatprep.mubr.bf16.mxu0 0
        %4375 = vmatmul.mubr.bf16.gmra.mxu0 %v3582
        %v4376 = vpop.f32.mrf.mxu0
        %v4377 = vadd.f32 0.0, %v4376
        %v4378 = vpop.f32.mrf.mxu0
        %v4379 = vpop.f32.mrf.mxu0
        %v4380 = vadd.f32 0.0, %v4379
        %v4381 = vpop.f32.mrf.mxu0
        %4382 = vdwg.mxu0
        %v4383 = vsel %vm3680, %v4353, -inf
        %4384 = vmax.xlane.f32.xlu0 %v4383
        %v4385 = vpop.xlane.xlu0 %4384
        %v4386 = vsel %vm3680, %v4356, -inf
        %4387 = vmax.xlane.f32.xlu0 %v4386
        %v4388 = vpop.xlane.xlu0 %4387
        %v4389 = vsel %vm3680, %v4361, -inf
        %4390 = vmax.xlane.f32.xlu0 %v4389
        %v4391 = vpop.xlane.xlu0 %4390
        %v4392 = vsel %vm3680, %v4364, -inf
        %4393 = vmax.xlane.f32.xlu0 %v4392
        %v4394 = vpop.xlane.xlu0 %4393
        %v4395 = vsel %vm3680, %v4369, -inf
        %4396 = vmax.xlane.f32.xlu0 %v4395
        %v4397 = vpop.xlane.xlu0 %4396
        %v4398 = vsel %vm3680, %v4372, -inf
        %4399 = vmax.xlane.f32.xlu0 %v4398
        %v4400 = vpop.xlane.xlu0 %4399
        %v4401 = vsel %vm3680, %v4377, -inf
        %4402 = vmax.xlane.f32.xlu0 %v4401
        %v4403 = vpop.xlane.xlu0 %4402
        %v4404 = vsel %vm3680, %v4380, -inf
        %4405 = vmax.xlane.f32.xlu0 %v4404
        %v4406 = vpop.xlane.xlu0 %4405
        %v4407 = vsub.f32 %v4353, %v4385
        %v4408 = vsub.f32 %v4356, %v4388
        %v4409 = vsub.f32 %v4361, %v4391
        %v4410 = vsub.f32 %v4364, %v4394
        %v4411 = vsub.f32 %v4369, %v4397
        %v4412 = vsub.f32 %v4372, %v4400
        %v4413 = vsub.f32 %v4377, %v4403
        %v4414 = vsub.f32 %v4380, %v4406
        %v4415 = vmul.f32 %v4407, 1.442695
        %v4416 = vpow.pop %v4415
        %v4417 = vmul.f32 %v4408, 1.442695
        %v4418 = vpow.pop %v4417
        %v4419 = vmul.f32 %v4409, 1.442695
        %v4420 = vpow.pop %v4419
        %v4421 = vmul.f32 %v4410, 1.442695
        %v4422 = vpow.pop %v4421
        %v4423 = vmul.f32 %v4411, 1.442695
        %v4424 = vpow.pop %v4423
        %v4425 = vmul.f32 %v4412, 1.442695
        %v4426 = vpow.pop %v4425
        %v4427 = vmul.f32 %v4413, 1.442695
        %v4428 = vpow.pop %v4427
        %v4429 = vmul.f32 %v4414, 1.442695
        %v4430 = vpow.pop %v4429
        %v4431 = vsel %vm3680, %v4416, 0.0
        %4432 = vadd.xlane.f32.xlu0 %v4431
        %v4433 = vpop.xlane.xlu0 %4432
        %v4434 = vsel %vm3680, %v4418, 0.0
        %4435 = vadd.xlane.f32.xlu0 %v4434
        %v4436 = vpop.xlane.xlu0 %4435
        %v4437 = vsel %vm3680, %v4420, 0.0
        %4438 = vadd.xlane.f32.xlu0 %v4437
        %v4439 = vpop.xlane.xlu0 %4438
        %v4440 = vsel %vm3680, %v4422, 0.0
        %4441 = vadd.xlane.f32.xlu0 %v4440
        %v4442 = vpop.xlane.xlu0 %4441
        %v4443 = vsel %vm3680, %v4424, 0.0
        %4444 = vadd.xlane.f32.xlu0 %v4443
        %v4445 = vpop.xlane.xlu0 %4444
        %v4446 = vsel %vm3680, %v4426, 0.0
        %4447 = vadd.xlane.f32.xlu0 %v4446
        %v4448 = vpop.xlane.xlu0 %4447
        %v4449 = vsel %vm3680, %v4428, 0.0
        %4450 = vadd.xlane.f32.xlu0 %v4449
        %v4451 = vpop.xlane.xlu0 %4450
        %v4452 = vsel %vm3680, %v4430, 0.0
        %4453 = vadd.xlane.f32.xlu0 %v4452
        %v4454 = vpop.xlane.xlu0 %4453
        %v4455 = vrcp.pop %v4433
        %v4456 = vrcp.pop %v4436
        %v4457 = vrcp.pop %v4439
        %v4458 = vrcp.pop %v4442
        %v4459 = vrcp.pop %v4445
        %v4460 = vrcp.pop %v4448
        %v4461 = vrcp.pop %v4451
        %v4462 = vrcp.pop %v4454
        %v4463 = vmul.f32 %v4416, %v4455
        %v4464 = vmul.f32 %v4418, %v4456
        %v4465 = vmul.f32 %v4420, %v4457
        %v4466 = vmul.f32 %v4422, %v4458
        %v4467 = vmul.f32 %v4424, %v4459
        %v4468 = vmul.f32 %v4426, %v4460
        %v4469 = vmul.f32 %v4428, %v4461
        %v4470 = vmul.f32 %v4430, %v4462
        %v4471 = vpack.c.bf16 %v4464, %v4463
        %v4472 = vpack.c.bf16 %v4466, %v4465
        %v4473 = vpack.c.bf16 %v4468, %v4467
        %v4474 = vpack.c.bf16 %v4470, %v4469
        %v4476 = vsel %vm3680, %v4471, 0
        %v4479 = vsel %vm3680, %v4472, 0
        %v4482 = vsel %vm3680, %v4473, 0
        %v4485 = vsel %vm3680, %v4474, 0
        %4487 = vmatprep.subr.bf16.mxu0 0
        %4488 = vmatpush1.bf16.msra.mxu0 0
        %4489 = vmatprep.subr.bf16.mxu0 0
        %4490 = vmatpush1.bf16.msra.mxu0 0
        %4491 = vmatprep.subr.bf16.mxu0 0
        %4492 = vmatpush1.bf16.msra.mxu0 0
        %4493 = vmatprep.subr.bf16.mxu0 0
        %4494 = vmatpush1.bf16.msra.mxu0 0
        %4495 = vmatprep.subr.bf16.mxu0 0
        %4496 = vmatpush1.bf16.msra.mxu0 %v3614
        %4497 = vmatprep.subr.bf16.mxu0 0
        %4498 = vmatpush1.bf16.msra.mxu0 %v3610
        %4499 = vmatprep.subr.bf16.mxu0 0
        %4500 = vmatpush1.bf16.msra.mxu0 %v3606
        %4501 = vmatprep.subr.bf16.mxu0 0
        %4502 = vmatpush1.bf16.msra.mxu0 %v3602
        %4503 = vmatprep.subr.bf16.mxu0 0
        %4504 = vmatpush2.bf16.msra.mxu0 0
        %4505 = vmatprep.subr.bf16.mxu0 0
        %4506 = vmatpush2.bf16.msra.mxu0 0
        %4507 = vmatprep.subr.bf16.mxu0 0
        %4508 = vmatpush2.bf16.msra.mxu0 0
        %4509 = vmatprep.subr.bf16.mxu0 0
        %4510 = vmatpush2.bf16.msra.mxu0 0
        %4511 = vmatprep.subr.bf16.mxu0 0
        %4512 = vmatpush2.bf16.msra.mxu0 0
        %4513 = vmatprep.subr.bf16.mxu0 0
        %4514 = vmatpush2.bf16.msra.mxu0 0
        %4515 = vmatprep.subr.bf16.mxu0 0
        %4516 = vmatpush2.bf16.msra.mxu0 0
        %4517 = vmatprep.subr.bf16.mxu0 0
        %4518 = vmatpush2.bf16.msra.mxu0 0
        %4519 = vmatprep.mubr.bf16.mxu0 0
        %4520 = vmatmul.mubr.bf16.gmra.mxu0 %v4476
        %v4521 = vpop.f32.mrf.mxu0
        %v4522 = vadd.f32 0.0, %v4521
        %v4523 = vpop.f32.mrf.mxu0
        %v4524 = vpop.f32.mrf.mxu0
        %v4525 = vadd.f32 0.0, %v4524
        %v4526 = vpop.f32.mrf.mxu0
        %4527 = vmatprep.mubr.bf16.mxu0 0
        %4528 = vmatmul.mubr.bf16.gmra.mxu0 %v4479
        %v4529 = vpop.f32.mrf.mxu0
        %v4530 = vadd.f32 0.0, %v4529
        %v4531 = vpop.f32.mrf.mxu0
        %v4532 = vpop.f32.mrf.mxu0
        %v4533 = vadd.f32 0.0, %v4532
        %v4534 = vpop.f32.mrf.mxu0
        %4535 = vmatprep.mubr.bf16.mxu0 0
        %4536 = vmatmul.mubr.bf16.gmra.mxu0 %v4482
        %v4537 = vpop.f32.mrf.mxu0
        %v4538 = vadd.f32 0.0, %v4537
        %v4539 = vpop.f32.mrf.mxu0
        %v4540 = vpop.f32.mrf.mxu0
        %v4541 = vadd.f32 0.0, %v4540
        %v4542 = vpop.f32.mrf.mxu0
        %4543 = vmatprep.mubr.bf16.mxu0 0
        %4544 = vmatmul.mubr.bf16.gmra.mxu0 %v4485
        %v4545 = vpop.f32.mrf.mxu0
        %v4546 = vadd.f32 0.0, %v4545
        %v4547 = vpop.f32.mrf.mxu0
        %v4548 = vpop.f32.mrf.mxu0
        %v4549 = vadd.f32 0.0, %v4548
        %v4550 = vpop.f32.mrf.mxu0
        %4551 = vdwg.mxu0
        %v4552 = vpack.c.bf16 %v3823, %v3820
        %v4553 = vpack.c.bf16 %v4057, %v4054
        %v4554 = vpack.c.bf16 %v4291, %v4288
        %v4555 = vpack.c.bf16 %v4525, %v4522
        %v4556 = vpack.c.bf16 %v3831, %v3828
        %v4557 = vpack.c.bf16 %v4065, %v4062
        %v4558 = vpack.c.bf16 %v4299, %v4296
        %v4559 = vpack.c.bf16 %v4533, %v4530
        %v4560 = vpack.c.bf16 %v3839, %v3836
        %v4561 = vpack.c.bf16 %v4073, %v4070
        %v4562 = vpack.c.bf16 %v4307, %v4304
        %v4563 = vpack.c.bf16 %v4541, %v4538
        %v4564 = vpack.c.bf16 %v3847, %v3844
        %v4565 = vpack.c.bf16 %v4081, %v4078
        %v4566 = vpack.c.bf16 %v4315, %v4312
        %v4567 = vpack.c.bf16 %v4549, %v4546
        %v4568 = vld [vmem:[#allocation7] sm:$0xff]
        %v4569 = vld [vmem:[#allocation7 + $0x8] sm:$0xff]
        %v4570 = vld [vmem:[#allocation7 + $0x10] sm:$0xff]
        %v4571 = vld [vmem:[#allocation7 + $0x18] sm:$0xff]
        %v4572 = vld [vmem:[#allocation7 + $0x20] sm:$0xff]
        %v4573 = vld [vmem:[#allocation7 + $0x28] sm:$0xff]
        %v4574 = vld [vmem:[#allocation7 + $0x30] sm:$0xff]
        %v4575 = vld [vmem:[#allocation7 + $0x38] sm:$0xff]
        %v4576 = vld [vmem:[#allocation7 + $0x40] sm:$0xff]
        %v4577 = vld [vmem:[#allocation7 + $0x48] sm:$0xff]
        %v4578 = vld [vmem:[#allocation7 + $0x50] sm:$0xff]
        %v4579 = vld [vmem:[#allocation7 + $0x58] sm:$0xff]
        %v4580 = vld [vmem:[#allocation7 + $0x60] sm:$0xff]
        %v4581 = vld [vmem:[#allocation7 + $0x68] sm:$0xff]
        %v4582 = vld [vmem:[#allocation7 + $0x70] sm:$0xff]
        %v4583 = vld [vmem:[#allocation7 + $0x78] sm:$0xff]
        %v4584 = vld [vmem:[#allocation7 + $0x80] sm:$0xff]
        %v4585 = vld [vmem:[#allocation7 + $0x88] sm:$0xff]
        %v4586 = vld [vmem:[#allocation7 + $0x90] sm:$0xff]
        %v4587 = vld [vmem:[#allocation7 + $0x98] sm:$0xff]
        %v4588 = vld [vmem:[#allocation7 + $0xa0] sm:$0xff]
        %v4589 = vld [vmem:[#allocation7 + $0xa8] sm:$0xff]
        %v4590 = vld [vmem:[#allocation7 + $0xb0] sm:$0xff]
        %v4591 = vld [vmem:[#allocation7 + $0xb8] sm:$0xff]
        %v4592 = vld [vmem:[#allocation7 + $0xc0] sm:$0xff]
        %v4593 = vld [vmem:[#allocation7 + $0xc8] sm:$0xff]
        %v4594 = vld [vmem:[#allocation7 + $0xd0] sm:$0xff]
        %v4595 = vld [vmem:[#allocation7 + $0xd8] sm:$0xff]
        %v4596 = vld [vmem:[#allocation7 + $0xe0] sm:$0xff]
        %v4597 = vld [vmem:[#allocation7 + $0xe8] sm:$0xff]
        %v4598 = vld [vmem:[#allocation7 + $0xf0] sm:$0xff]
        %v4599 = vld [vmem:[#allocation7 + $0xf8] sm:$0xff]
        %v4600 = vld [vmem:[#allocation7 + $0x100] sm:$0xff]
        %v4601 = vld [vmem:[#allocation7 + $0x108] sm:$0xff]
        %v4602 = vld [vmem:[#allocation7 + $0x110] sm:$0xff]
        %v4603 = vld [vmem:[#allocation7 + $0x118] sm:$0xff]
        %v4604 = vld [vmem:[#allocation7 + $0x120] sm:$0xff]
        %v4605 = vld [vmem:[#allocation7 + $0x128] sm:$0xff]
        %v4606 = vld [vmem:[#allocation7 + $0x130] sm:$0xff]
        %v4607 = vld [vmem:[#allocation7 + $0x138] sm:$0xff]
        %v4608 = vld [vmem:[#allocation7 + $0x140] sm:$0xff]
        %v4609 = vld [vmem:[#allocation7 + $0x148] sm:$0xff]
        %v4610 = vld [vmem:[#allocation7 + $0x150] sm:$0xff]
        %v4611 = vld [vmem:[#allocation7 + $0x158] sm:$0xff]
        %v4612 = vld [vmem:[#allocation7 + $0x160] sm:$0xff]
        %v4613 = vld [vmem:[#allocation7 + $0x168] sm:$0xff]
        %v4614 = vld [vmem:[#allocation7 + $0x170] sm:$0xff]
        %v4615 = vld [vmem:[#allocation7 + $0x178] sm:$0xff]
        %v4616 = vld [vmem:[#allocation7 + $0x180] sm:$0xff]
        %v4617 = vld [vmem:[#allocation7 + $0x188] sm:$0xff]
        %v4618 = vld [vmem:[#allocation7 + $0x190] sm:$0xff]
        %v4619 = vld [vmem:[#allocation7 + $0x198] sm:$0xff]
        %v4620 = vld [vmem:[#allocation7 + $0x1a0] sm:$0xff]
        %v4621 = vld [vmem:[#allocation7 + $0x1a8] sm:$0xff]
        %v4622 = vld [vmem:[#allocation7 + $0x1b0] sm:$0xff]
        %v4623 = vld [vmem:[#allocation7 + $0x1b8] sm:$0xff]
        %v4624 = vld [vmem:[#allocation7 + $0x1c0] sm:$0xff]
        %v4625 = vld [vmem:[#allocation7 + $0x1c8] sm:$0xff]
        %v4626 = vld [vmem:[#allocation7 + $0x1d0] sm:$0xff]
        %v4627 = vld [vmem:[#allocation7 + $0x1d8] sm:$0xff]
        %v4628 = vld [vmem:[#allocation7 + $0x1e0] sm:$0xff]
        %v4629 = vld [vmem:[#allocation7 + $0x1e8] sm:$0xff]
        %v4630 = vld [vmem:[#allocation7 + $0x1f0] sm:$0xff]
        %v4631 = vld [vmem:[#allocation7 + $0x1f8] sm:$0xff]
        %v4632 = vld [vmem:[#allocation7 + $0x200] sm:$0xff]
        %v4633 = vld [vmem:[#allocation7 + $0x208] sm:$0xff]
        %v4634 = vld [vmem:[#allocation7 + $0x210] sm:$0xff]
        %v4635 = vld [vmem:[#allocation7 + $0x218] sm:$0xff]
        %v4636 = vld [vmem:[#allocation7 + $0x220] sm:$0xff]
        %v4637 = vld [vmem:[#allocation7 + $0x228] sm:$0xff]
        %v4638 = vld [vmem:[#allocation7 + $0x230] sm:$0xff]
        %v4639 = vld [vmem:[#allocation7 + $0x238] sm:$0xff]
        %v4640 = vld [vmem:[#allocation7 + $0x240] sm:$0xff]
        %v4641 = vld [vmem:[#allocation7 + $0x248] sm:$0xff]
        %v4642 = vld [vmem:[#allocation7 + $0x250] sm:$0xff]
        %v4643 = vld [vmem:[#allocation7 + $0x258] sm:$0xff]
        %v4644 = vld [vmem:[#allocation7 + $0x260] sm:$0xff]
        %v4645 = vld [vmem:[#allocation7 + $0x268] sm:$0xff]
        %v4646 = vld [vmem:[#allocation7 + $0x270] sm:$0xff]
        %v4647 = vld [vmem:[#allocation7 + $0x278] sm:$0xff]
        %v4648 = vld [vmem:[#allocation7 + $0x280] sm:$0xff]
        %v4649 = vld [vmem:[#allocation7 + $0x288] sm:$0xff]
        %v4650 = vld [vmem:[#allocation7 + $0x290] sm:$0xff]
        %v4651 = vld [vmem:[#allocation7 + $0x298] sm:$0xff]
        %v4652 = vld [vmem:[#allocation7 + $0x2a0] sm:$0xff]
        %v4653 = vld [vmem:[#allocation7 + $0x2a8] sm:$0xff]
        %v4654 = vld [vmem:[#allocation7 + $0x2b0] sm:$0xff]
        %v4655 = vld [vmem:[#allocation7 + $0x2b8] sm:$0xff]
        %v4656 = vld [vmem:[#allocation7 + $0x2c0] sm:$0xff]
        %v4657 = vld [vmem:[#allocation7 + $0x2c8] sm:$0xff]
        %v4658 = vld [vmem:[#allocation7 + $0x2d0] sm:$0xff]
        %v4659 = vld [vmem:[#allocation7 + $0x2d8] sm:$0xff]
        %v4660 = vld [vmem:[#allocation7 + $0x2e0] sm:$0xff]
        %v4661 = vld [vmem:[#allocation7 + $0x2e8] sm:$0xff]
        %v4662 = vld [vmem:[#allocation7 + $0x2f0] sm:$0xff]
        %v4663 = vld [vmem:[#allocation7 + $0x2f8] sm:$0xff]
        %v4664 = vld [vmem:[#allocation7 + $0x300] sm:$0xff]
        %v4665 = vld [vmem:[#allocation7 + $0x308] sm:$0xff]
        %v4666 = vld [vmem:[#allocation7 + $0x310] sm:$0xff]
        %v4667 = vld [vmem:[#allocation7 + $0x318] sm:$0xff]
        %v4668 = vld [vmem:[#allocation7 + $0x320] sm:$0xff]
        %v4669 = vld [vmem:[#allocation7 + $0x328] sm:$0xff]
        %v4670 = vld [vmem:[#allocation7 + $0x330] sm:$0xff]
        %v4671 = vld [vmem:[#allocation7 + $0x338] sm:$0xff]
        %v4672 = vld [vmem:[#allocation7 + $0x340] sm:$0xff]
        %v4673 = vld [vmem:[#allocation7 + $0x348] sm:$0xff]
        %v4674 = vld [vmem:[#allocation7 + $0x350] sm:$0xff]
        %v4675 = vld [vmem:[#allocation7 + $0x358] sm:$0xff]
        %v4676 = vld [vmem:[#allocation7 + $0x360] sm:$0xff]
        %v4677 = vld [vmem:[#allocation7 + $0x368] sm:$0xff]
        %v4678 = vld [vmem:[#allocation7 + $0x370] sm:$0xff]
        %v4679 = vld [vmem:[#allocation7 + $0x378] sm:$0xff]
        %v4680 = vld [vmem:[#allocation7 + $0x380] sm:$0xff]
        %v4681 = vld [vmem:[#allocation7 + $0x388] sm:$0xff]
        %v4682 = vld [vmem:[#allocation7 + $0x390] sm:$0xff]
        %v4683 = vld [vmem:[#allocation7 + $0x398] sm:$0xff]
        %v4684 = vld [vmem:[#allocation7 + $0x3a0] sm:$0xff]
        %v4685 = vld [vmem:[#allocation7 + $0x3a8] sm:$0xff]
        %v4686 = vld [vmem:[#allocation7 + $0x3b0] sm:$0xff]
        %v4687 = vld [vmem:[#allocation7 + $0x3b8] sm:$0xff]
        %v4688 = vld [vmem:[#allocation7 + $0x3c0] sm:$0xff]
        %v4689 = vld [vmem:[#allocation7 + $0x3c8] sm:$0xff]
        %v4690 = vld [vmem:[#allocation7 + $0x3d0] sm:$0xff]
        %v4691 = vld [vmem:[#allocation7 + $0x3d8] sm:$0xff]
        %v4692 = vld [vmem:[#allocation7 + $0x3e0] sm:$0xff]
        %v4693 = vld [vmem:[#allocation7 + $0x3e8] sm:$0xff]
        %v4694 = vld [vmem:[#allocation7 + $0x3f0] sm:$0xff]
        %v4695 = vld [vmem:[#allocation7 + $0x3f8] sm:$0xff]
        %v4696 = vld [vmem:[#allocation8] sm:$0xf]
        %v4698 = vlaneseq
        %v4699 = vshrl.u32 %v4698, 7
        %v4700 = vsub.s32 0, %v4699
        %v4701 = vrot.slane %v4696, %v4700
        %v4702 = vlaneseq
        %v4703 = vshrl.u32 %v4702, 7
        %v4704 = vsub.s32 1, %v4703
        %v4705 = vrot.slane %v4696, %v4704
        %v4706 = vlaneseq
        %v4707 = vshrl.u32 %v4706, 7
        %v4708 = vsub.s32 2, %v4707
        %v4709 = vrot.slane %v4696, %v4708
        %v4710 = vlaneseq
        %v4711 = vshrl.u32 %v4710, 7
        %v4712 = vsub.s32 3, %v4711
        %v4713 = vrot.slane %v4696, %v4712
        %v4846 = vunpack.c.l.b16 %v4568
        %v4847 = vunpack.c.h.b16 %v4568
        %v4848 = vunpack.c.l.b16 %v4569
        %v4849 = vunpack.c.h.b16 %v4569
        %v4850 = vunpack.c.l.b16 %v4570
        %v4851 = vunpack.c.h.b16 %v4570
        %v4852 = vunpack.c.l.b16 %v4571
        %v4853 = vunpack.c.h.b16 %v4571
        %v4854 = vunpack.c.l.b16 %v4572
        %v4855 = vunpack.c.h.b16 %v4572
        %v4856 = vunpack.c.l.b16 %v4573
        %v4857 = vunpack.c.h.b16 %v4573
        %v4858 = vunpack.c.l.b16 %v4574
        %v4859 = vunpack.c.h.b16 %v4574
        %v4860 = vunpack.c.l.b16 %v4575
        %v4861 = vunpack.c.h.b16 %v4575
        %v4862 = vunpack.c.l.b16 %v4576
        %v4863 = vunpack.c.h.b16 %v4576
        %v4864 = vunpack.c.l.b16 %v4577
        %v4865 = vunpack.c.h.b16 %v4577
        %v4866 = vunpack.c.l.b16 %v4578
        %v4867 = vunpack.c.h.b16 %v4578
        %v4868 = vunpack.c.l.b16 %v4579
        %v4869 = vunpack.c.h.b16 %v4579
        %v4870 = vunpack.c.l.b16 %v4580
        %v4871 = vunpack.c.h.b16 %v4580
        %v4872 = vunpack.c.l.b16 %v4581
        %v4873 = vunpack.c.h.b16 %v4581
        %v4874 = vunpack.c.l.b16 %v4582
        %v4875 = vunpack.c.h.b16 %v4582
        %v4876 = vunpack.c.l.b16 %v4583
        %v4877 = vunpack.c.h.b16 %v4583
        %v4878 = vunpack.c.l.b16 %v4584
        %v4879 = vunpack.c.h.b16 %v4584
        %v4880 = vunpack.c.l.b16 %v4585
        %v4881 = vunpack.c.h.b16 %v4585
        %v4882 = vunpack.c.l.b16 %v4586
        %v4883 = vunpack.c.h.b16 %v4586
        %v4884 = vunpack.c.l.b16 %v4587
        %v4885 = vunpack.c.h.b16 %v4587
        %v4886 = vunpack.c.l.b16 %v4588
        %v4887 = vunpack.c.h.b16 %v4588
        %v4888 = vunpack.c.l.b16 %v4589
        %v4889 = vunpack.c.h.b16 %v4589
        %v4890 = vunpack.c.l.b16 %v4590
        %v4891 = vunpack.c.h.b16 %v4590
        %v4892 = vunpack.c.l.b16 %v4591
        %v4893 = vunpack.c.h.b16 %v4591
        %v4894 = vunpack.c.l.b16 %v4592
        %v4895 = vunpack.c.h.b16 %v4592
        %v4896 = vunpack.c.l.b16 %v4593
        %v4897 = vunpack.c.h.b16 %v4593
        %v4898 = vunpack.c.l.b16 %v4594
        %v4899 = vunpack.c.h.b16 %v4594
        %v4900 = vunpack.c.l.b16 %v4595
        %v4901 = vunpack.c.h.b16 %v4595
        %v4902 = vunpack.c.l.b16 %v4596
        %v4903 = vunpack.c.h.b16 %v4596
        %v4904 = vunpack.c.l.b16 %v4597
        %v4905 = vunpack.c.h.b16 %v4597
        %v4906 = vunpack.c.l.b16 %v4598
        %v4907 = vunpack.c.h.b16 %v4598
        %v4908 = vunpack.c.l.b16 %v4599
        %v4909 = vunpack.c.h.b16 %v4599
        %v4910 = vunpack.c.l.b16 %v4600
        %v4911 = vunpack.c.h.b16 %v4600
        %v4912 = vunpack.c.l.b16 %v4601
        %v4913 = vunpack.c.h.b16 %v4601
        %v4914 = vunpack.c.l.b16 %v4602
        %v4915 = vunpack.c.h.b16 %v4602
        %v4916 = vunpack.c.l.b16 %v4603
        %v4917 = vunpack.c.h.b16 %v4603
        %v4918 = vunpack.c.l.b16 %v4604
        %v4919 = vunpack.c.h.b16 %v4604
        %v4920 = vunpack.c.l.b16 %v4605
        %v4921 = vunpack.c.h.b16 %v4605
        %v4922 = vunpack.c.l.b16 %v4606
        %v4923 = vunpack.c.h.b16 %v4606
        %v4924 = vunpack.c.l.b16 %v4607
        %v4925 = vunpack.c.h.b16 %v4607
        %v4926 = vunpack.c.l.b16 %v4608
        %v4927 = vunpack.c.h.b16 %v4608
        %v4928 = vunpack.c.l.b16 %v4609
        %v4929 = vunpack.c.h.b16 %v4609
        %v4930 = vunpack.c.l.b16 %v4610
        %v4931 = vunpack.c.h.b16 %v4610
        %v4932 = vunpack.c.l.b16 %v4611
        %v4933 = vunpack.c.h.b16 %v4611
        %v4934 = vunpack.c.l.b16 %v4612
        %v4935 = vunpack.c.h.b16 %v4612
        %v4936 = vunpack.c.l.b16 %v4613
        %v4937 = vunpack.c.h.b16 %v4613
        %v4938 = vunpack.c.l.b16 %v4614
        %v4939 = vunpack.c.h.b16 %v4614
        %v4940 = vunpack.c.l.b16 %v4615
        %v4941 = vunpack.c.h.b16 %v4615
        %v4942 = vunpack.c.l.b16 %v4616
        %v4943 = vunpack.c.h.b16 %v4616
        %v4944 = vunpack.c.l.b16 %v4617
        %v4945 = vunpack.c.h.b16 %v4617
        %v4946 = vunpack.c.l.b16 %v4618
        %v4947 = vunpack.c.h.b16 %v4618
        %v4948 = vunpack.c.l.b16 %v4619
        %v4949 = vunpack.c.h.b16 %v4619
        %v4950 = vunpack.c.l.b16 %v4620
        %v4951 = vunpack.c.h.b16 %v4620
        %v4952 = vunpack.c.l.b16 %v4621
        %v4953 = vunpack.c.h.b16 %v4621
        %v4954 = vunpack.c.l.b16 %v4622
        %v4955 = vunpack.c.h.b16 %v4622
        %v4956 = vunpack.c.l.b16 %v4623
        %v4957 = vunpack.c.h.b16 %v4623
        %v4958 = vunpack.c.l.b16 %v4624
        %v4959 = vunpack.c.h.b16 %v4624
        %v4960 = vunpack.c.l.b16 %v4625
        %v4961 = vunpack.c.h.b16 %v4625
        %v4962 = vunpack.c.l.b16 %v4626
        %v4963 = vunpack.c.h.b16 %v4626
        %v4964 = vunpack.c.l.b16 %v4627
        %v4965 = vunpack.c.h.b16 %v4627
        %v4966 = vunpack.c.l.b16 %v4628
        %v4967 = vunpack.c.h.b16 %v4628
        %v4968 = vunpack.c.l.b16 %v4629
        %v4969 = vunpack.c.h.b16 %v4629
        %v4970 = vunpack.c.l.b16 %v4630
        %v4971 = vunpack.c.h.b16 %v4630
        %v4972 = vunpack.c.l.b16 %v4631
        %v4973 = vunpack.c.h.b16 %v4631
        %v4974 = vunpack.c.l.b16 %v4632
        %v4975 = vunpack.c.h.b16 %v4632
        %v4976 = vunpack.c.l.b16 %v4633
        %v4977 = vunpack.c.h.b16 %v4633
        %v4978 = vunpack.c.l.b16 %v4634
        %v4979 = vunpack.c.h.b16 %v4634
        %v4980 = vunpack.c.l.b16 %v4635
        %v4981 = vunpack.c.h.b16 %v4635
        %v4982 = vunpack.c.l.b16 %v4636
        %v4983 = vunpack.c.h.b16 %v4636
        %v4984 = vunpack.c.l.b16 %v4637
        %v4985 = vunpack.c.h.b16 %v4637
        %v4986 = vunpack.c.l.b16 %v4638
        %v4987 = vunpack.c.h.b16 %v4638
        %v4988 = vunpack.c.l.b16 %v4639
        %v4989 = vunpack.c.h.b16 %v4639
        %v4990 = vunpack.c.l.b16 %v4640
        %v4991 = vunpack.c.h.b16 %v4640
        %v4992 = vunpack.c.l.b16 %v4641
        %v4993 = vunpack.c.h.b16 %v4641
        %v4994 = vunpack.c.l.b16 %v4642
        %v4995 = vunpack.c.h.b16 %v4642
        %v4996 = vunpack.c.l.b16 %v4643
        %v4997 = vunpack.c.h.b16 %v4643
        %v4998 = vunpack.c.l.b16 %v4644
        %v4999 = vunpack.c.h.b16 %v4644
        %v5000 = vunpack.c.l.b16 %v4645
        %v5001 = vunpack.c.h.b16 %v4645
        %v5002 = vunpack.c.l.b16 %v4646
        %v5003 = vunpack.c.h.b16 %v4646
        %v5004 = vunpack.c.l.b16 %v4647
        %v5005 = vunpack.c.h.b16 %v4647
        %v5006 = vunpack.c.l.b16 %v4648
        %v5007 = vunpack.c.h.b16 %v4648
        %v5008 = vunpack.c.l.b16 %v4649
        %v5009 = vunpack.c.h.b16 %v4649
        %v5010 = vunpack.c.l.b16 %v4650
        %v5011 = vunpack.c.h.b16 %v4650
        %v5012 = vunpack.c.l.b16 %v4651
        %v5013 = vunpack.c.h.b16 %v4651
        %v5014 = vunpack.c.l.b16 %v4652
        %v5015 = vunpack.c.h.b16 %v4652
        %v5016 = vunpack.c.l.b16 %v4653
        %v5017 = vunpack.c.h.b16 %v4653
        %v5018 = vunpack.c.l.b16 %v4654
        %v5019 = vunpack.c.h.b16 %v4654
        %v5020 = vunpack.c.l.b16 %v4655
        %v5021 = vunpack.c.h.b16 %v4655
        %v5022 = vunpack.c.l.b16 %v4656
        %v5023 = vunpack.c.h.b16 %v4656
        %v5024 = vunpack.c.l.b16 %v4657
        %v5025 = vunpack.c.h.b16 %v4657
        %v5026 = vunpack.c.l.b16 %v4658
        %v5027 = vunpack.c.h.b16 %v4658
        %v5028 = vunpack.c.l.b16 %v4659
        %v5029 = vunpack.c.h.b16 %v4659
        %v5030 = vunpack.c.l.b16 %v4660
        %v5031 = vunpack.c.h.b16 %v4660
        %v5032 = vunpack.c.l.b16 %v4661
        %v5033 = vunpack.c.h.b16 %v4661
        %v5034 = vunpack.c.l.b16 %v4662
        %v5035 = vunpack.c.h.b16 %v4662
        %v5036 = vunpack.c.l.b16 %v4663
        %v5037 = vunpack.c.h.b16 %v4663
        %v5038 = vunpack.c.l.b16 %v4664
        %v5039 = vunpack.c.h.b16 %v4664
        %v5040 = vunpack.c.l.b16 %v4665
        %v5041 = vunpack.c.h.b16 %v4665
        %v5042 = vunpack.c.l.b16 %v4666
        %v5043 = vunpack.c.h.b16 %v4666
        %v5044 = vunpack.c.l.b16 %v4667
        %v5045 = vunpack.c.h.b16 %v4667
        %v5046 = vunpack.c.l.b16 %v4668
        %v5047 = vunpack.c.h.b16 %v4668
        %v5048 = vunpack.c.l.b16 %v4669
        %v5049 = vunpack.c.h.b16 %v4669
        %v5050 = vunpack.c.l.b16 %v4670
        %v5051 = vunpack.c.h.b16 %v4670
        %v5052 = vunpack.c.l.b16 %v4671
        %v5053 = vunpack.c.h.b16 %v4671
        %v5054 = vunpack.c.l.b16 %v4672
        %v5055 = vunpack.c.h.b16 %v4672
        %v5056 = vunpack.c.l.b16 %v4673
        %v5057 = vunpack.c.h.b16 %v4673
        %v5058 = vunpack.c.l.b16 %v4674
        %v5059 = vunpack.c.h.b16 %v4674
        %v5060 = vunpack.c.l.b16 %v4675
        %v5061 = vunpack.c.h.b16 %v4675
        %v5062 = vunpack.c.l.b16 %v4676
        %v5063 = vunpack.c.h.b16 %v4676
        %v5064 = vunpack.c.l.b16 %v4677
        %v5065 = vunpack.c.h.b16 %v4677
        %v5066 = vunpack.c.l.b16 %v4678
        %v5067 = vunpack.c.h.b16 %v4678
        %v5068 = vunpack.c.l.b16 %v4679
        %v5069 = vunpack.c.h.b16 %v4679
        %v5070 = vunpack.c.l.b16 %v4680
        %v5071 = vunpack.c.h.b16 %v4680
        %v5072 = vunpack.c.l.b16 %v4681
        %v5073 = vunpack.c.h.b16 %v4681
        %v5074 = vunpack.c.l.b16 %v4682
        %v5075 = vunpack.c.h.b16 %v4682
        %v5076 = vunpack.c.l.b16 %v4683
        %v5077 = vunpack.c.h.b16 %v4683
        %v5078 = vunpack.c.l.b16 %v4684
        %v5079 = vunpack.c.h.b16 %v4684
        %v5080 = vunpack.c.l.b16 %v4685
        %v5081 = vunpack.c.h.b16 %v4685
        %v5082 = vunpack.c.l.b16 %v4686
        %v5083 = vunpack.c.h.b16 %v4686
        %v5084 = vunpack.c.l.b16 %v4687
        %v5085 = vunpack.c.h.b16 %v4687
        %v5086 = vunpack.c.l.b16 %v4688
        %v5087 = vunpack.c.h.b16 %v4688
        %v5088 = vunpack.c.l.b16 %v4689
        %v5089 = vunpack.c.h.b16 %v4689
        %v5090 = vunpack.c.l.b16 %v4690
        %v5091 = vunpack.c.h.b16 %v4690
        %v5092 = vunpack.c.l.b16 %v4691
        %v5093 = vunpack.c.h.b16 %v4691
        %v5094 = vunpack.c.l.b16 %v4692
        %v5095 = vunpack.c.h.b16 %v4692
        %v5096 = vunpack.c.l.b16 %v4693
        %v5097 = vunpack.c.h.b16 %v4693
        %v5098 = vunpack.c.l.b16 %v4694
        %v5099 = vunpack.c.h.b16 %v4694
        %v5100 = vunpack.c.l.b16 %v4695
        %v5101 = vunpack.c.h.b16 %v4695
        %v5102 = vpack.c.b16 %v4850, %v4846
        %v5103 = vpack.c.b16 %v4851, %v4847
        %v5104 = vpack.c.b16 %v4852, %v4848
        %v5105 = vpack.c.b16 %v4853, %v4849
        %v5106 = vpack.c.b16 %v4858, %v4854
        %v5107 = vpack.c.b16 %v4859, %v4855
        %v5108 = vpack.c.b16 %v4860, %v4856
        %v5109 = vpack.c.b16 %v4861, %v4857
        %v5110 = vpack.c.b16 %v4866, %v4862
        %v5111 = vpack.c.b16 %v4867, %v4863
        %v5112 = vpack.c.b16 %v4868, %v4864
        %v5113 = vpack.c.b16 %v4869, %v4865
        %v5114 = vpack.c.b16 %v4874, %v4870
        %v5115 = vpack.c.b16 %v4875, %v4871
        %v5116 = vpack.c.b16 %v4876, %v4872
        %v5117 = vpack.c.b16 %v4877, %v4873
        %v5118 = vpack.c.b16 %v4882, %v4878
        %v5119 = vpack.c.b16 %v4883, %v4879
        %v5120 = vpack.c.b16 %v4884, %v4880
        %v5121 = vpack.c.b16 %v4885, %v4881
        %v5122 = vpack.c.b16 %v4890, %v4886
        %v5123 = vpack.c.b16 %v4891, %v4887
        %v5124 = vpack.c.b16 %v4892, %v4888
        %v5125 = vpack.c.b16 %v4893, %v4889
        %v5126 = vpack.c.b16 %v4898, %v4894
        %v5127 = vpack.c.b16 %v4899, %v4895
        %v5128 = vpack.c.b16 %v4900, %v4896
        %v5129 = vpack.c.b16 %v4901, %v4897
        %v5130 = vpack.c.b16 %v4906, %v4902
        %v5131 = vpack.c.b16 %v4907, %v4903
        %v5132 = vpack.c.b16 %v4908, %v4904
        %v5133 = vpack.c.b16 %v4909, %v4905
        %v5134 = vpack.c.b16 %v4914, %v4910
        %v5135 = vpack.c.b16 %v4915, %v4911
        %v5136 = vpack.c.b16 %v4916, %v4912
        %v5137 = vpack.c.b16 %v4917, %v4913
        %v5138 = vpack.c.b16 %v4922, %v4918
        %v5139 = vpack.c.b16 %v4923, %v4919
        %v5140 = vpack.c.b16 %v4924, %v4920
        %v5141 = vpack.c.b16 %v4925, %v4921
        %v5142 = vpack.c.b16 %v4930, %v4926
        %v5143 = vpack.c.b16 %v4931, %v4927
        %v5144 = vpack.c.b16 %v4932, %v4928
        %v5145 = vpack.c.b16 %v4933, %v4929
        %v5146 = vpack.c.b16 %v4938, %v4934
        %v5147 = vpack.c.b16 %v4939, %v4935
        %v5148 = vpack.c.b16 %v4940, %v4936
        %v5149 = vpack.c.b16 %v4941, %v4937
        %v5150 = vpack.c.b16 %v4946, %v4942
        %v5151 = vpack.c.b16 %v4947, %v4943
        %v5152 = vpack.c.b16 %v4948, %v4944
        %v5153 = vpack.c.b16 %v4949, %v4945
        %v5154 = vpack.c.b16 %v4954, %v4950
        %v5155 = vpack.c.b16 %v4955, %v4951
        %v5156 = vpack.c.b16 %v4956, %v4952
        %v5157 = vpack.c.b16 %v4957, %v4953
        %v5158 = vpack.c.b16 %v4962, %v4958
        %v5159 = vpack.c.b16 %v4963, %v4959
        %v5160 = vpack.c.b16 %v4964, %v4960
        %v5161 = vpack.c.b16 %v4965, %v4961
        %v5162 = vpack.c.b16 %v4970, %v4966
        %v5163 = vpack.c.b16 %v4971, %v4967
        %v5164 = vpack.c.b16 %v4972, %v4968
        %v5165 = vpack.c.b16 %v4973, %v4969
        %v5166 = vpack.c.b16 %v4978, %v4974
        %v5167 = vpack.c.b16 %v4979, %v4975
        %v5168 = vpack.c.b16 %v4980, %v4976
        %v5169 = vpack.c.b16 %v4981, %v4977
        %v5170 = vpack.c.b16 %v4986, %v4982
        %v5171 = vpack.c.b16 %v4987, %v4983
        %v5172 = vpack.c.b16 %v4988, %v4984
        %v5173 = vpack.c.b16 %v4989, %v4985
        %v5174 = vpack.c.b16 %v4994, %v4990
        %v5175 = vpack.c.b16 %v4995, %v4991
        %v5176 = vpack.c.b16 %v4996, %v4992
        %v5177 = vpack.c.b16 %v4997, %v4993
        %v5178 = vpack.c.b16 %v5002, %v4998
        %v5179 = vpack.c.b16 %v5003, %v4999
        %v5180 = vpack.c.b16 %v5004, %v5000
        %v5181 = vpack.c.b16 %v5005, %v5001
        %v5182 = vpack.c.b16 %v5010, %v5006
        %v5183 = vpack.c.b16 %v5011, %v5007
        %v5184 = vpack.c.b16 %v5012, %v5008
        %v5185 = vpack.c.b16 %v5013, %v5009
        %v5186 = vpack.c.b16 %v5018, %v5014
        %v5187 = vpack.c.b16 %v5019, %v5015
        %v5188 = vpack.c.b16 %v5020, %v5016
        %v5189 = vpack.c.b16 %v5021, %v5017
        %v5190 = vpack.c.b16 %v5026, %v5022
        %v5191 = vpack.c.b16 %v5027, %v5023
        %v5192 = vpack.c.b16 %v5028, %v5024
        %v5193 = vpack.c.b16 %v5029, %v5025
        %v5194 = vpack.c.b16 %v5034, %v5030
        %v5195 = vpack.c.b16 %v5035, %v5031
        %v5196 = vpack.c.b16 %v5036, %v5032
        %v5197 = vpack.c.b16 %v5037, %v5033
        %v5198 = vpack.c.b16 %v5042, %v5038
        %v5199 = vpack.c.b16 %v5043, %v5039
        %v5200 = vpack.c.b16 %v5044, %v5040
        %v5201 = vpack.c.b16 %v5045, %v5041
        %v5202 = vpack.c.b16 %v5050, %v5046
        %v5203 = vpack.c.b16 %v5051, %v5047
        %v5204 = vpack.c.b16 %v5052, %v5048
        %v5205 = vpack.c.b16 %v5053, %v5049
        %v5206 = vpack.c.b16 %v5058, %v5054
        %v5207 = vpack.c.b16 %v5059, %v5055
        %v5208 = vpack.c.b16 %v5060, %v5056
        %v5209 = vpack.c.b16 %v5061, %v5057
        %v5210 = vpack.c.b16 %v5066, %v5062
        %v5211 = vpack.c.b16 %v5067, %v5063
        %v5212 = vpack.c.b16 %v5068, %v5064
        %v5213 = vpack.c.b16 %v5069, %v5065
        %v5214 = vpack.c.b16 %v5074, %v5070
        %v5215 = vpack.c.b16 %v5075, %v5071
        %v5216 = vpack.c.b16 %v5076, %v5072
        %v5217 = vpack.c.b16 %v5077, %v5073
        %v5218 = vpack.c.b16 %v5082, %v5078
        %v5219 = vpack.c.b16 %v5083, %v5079
        %v5220 = vpack.c.b16 %v5084, %v5080
        %v5221 = vpack.c.b16 %v5085, %v5081
        %v5222 = vpack.c.b16 %v5090, %v5086
        %v5223 = vpack.c.b16 %v5091, %v5087
        %v5224 = vpack.c.b16 %v5092, %v5088
        %v5225 = vpack.c.b16 %v5093, %v5089
        %v5226 = vpack.c.b16 %v5098, %v5094
        %v5227 = vpack.c.b16 %v5099, %v5095
        %v5228 = vpack.c.b16 %v5100, %v5096
        %v5229 = vpack.c.b16 %v5101, %v5097
        %5358 = vmatprep.subr.bf16.mxu0 %v5131
        %5359 = vmatpush1.bf16.msra.mxu0 %v5130
        %5360 = vmatprep.subr.bf16.mxu0 %v5127
        %5361 = vmatpush1.bf16.msra.mxu0 %v5126
        %5362 = vmatprep.subr.bf16.mxu0 %v5123
        %5363 = vmatpush1.bf16.msra.mxu0 %v5122
        %5364 = vmatprep.subr.bf16.mxu0 %v5119
        %5365 = vmatpush1.bf16.msra.mxu0 %v5118
        %5366 = vmatprep.subr.bf16.mxu0 %v5115
        %5367 = vmatpush1.bf16.msra.mxu0 %v5114
        %5368 = vmatprep.subr.bf16.mxu0 %v5111
        %5369 = vmatpush1.bf16.msra.mxu0 %v5110
        %5370 = vmatprep.subr.bf16.mxu0 %v5107
        %5371 = vmatpush1.bf16.msra.mxu0 %v5106
        %5372 = vmatprep.subr.bf16.mxu0 %v5103
        %5373 = vmatpush1.bf16.msra.mxu0 %v5102
        %5374 = vmatprep.subr.bf16.mxu0 %v5163
        %5375 = vmatpush2.bf16.msra.mxu0 %v5162
        %5376 = vmatprep.subr.bf16.mxu0 %v5159
        %5377 = vmatpush2.bf16.msra.mxu0 %v5158
        %5378 = vmatprep.subr.bf16.mxu0 %v5155
        %5379 = vmatpush2.bf16.msra.mxu0 %v5154
        %5380 = vmatprep.subr.bf16.mxu0 %v5151
        %5381 = vmatpush2.bf16.msra.mxu0 %v5150
        %5382 = vmatprep.subr.bf16.mxu0 %v5147
        %5383 = vmatpush2.bf16.msra.mxu0 %v5146
        %5384 = vmatprep.subr.bf16.mxu0 %v5143
        %5385 = vmatpush2.bf16.msra.mxu0 %v5142
        %5386 = vmatprep.subr.bf16.mxu0 %v5139
        %5387 = vmatpush2.bf16.msra.mxu0 %v5138
        %5388 = vmatprep.subr.bf16.mxu0 %v5135
        %5389 = vmatpush2.bf16.msra.mxu0 %v5134
        %5390 = vmatprep.mubr.bf16.mxu0 %v4553
        %5391 = vmatmul.mubr.bf16.gmra.mxu0 %v4552
        %v5392 = vpop.f32.mrf.mxu0
        %v5393 = vadd.f32 %v4701, %v5392
        %v5394 = vpop.f32.mrf.mxu0
        %v5395 = vadd.f32 %v4705, %v5394
        %v5396 = vpop.f32.mrf.mxu0
        %v5397 = vadd.f32 %v4701, %v5396
        %v5398 = vpop.f32.mrf.mxu0
        %v5399 = vadd.f32 %v4705, %v5398
        %5400 = vmatprep.mubr.bf16.mxu0 %v4557
        %5401 = vmatmul.mubr.bf16.gmra.mxu0 %v4556
        %v5402 = vpop.f32.mrf.mxu0
        %v5403 = vadd.f32 %v4701, %v5402
        %v5404 = vpop.f32.mrf.mxu0
        %v5405 = vadd.f32 %v4705, %v5404
        %v5406 = vpop.f32.mrf.mxu0
        %v5407 = vadd.f32 %v4701, %v5406
        %v5408 = vpop.f32.mrf.mxu0
        %v5409 = vadd.f32 %v4705, %v5408
        %5410 = vmatprep.mubr.bf16.mxu0 %v4561
        %5411 = vmatmul.mubr.bf16.gmra.mxu0 %v4560
        %v5412 = vpop.f32.mrf.mxu0
        %v5413 = vadd.f32 %v4701, %v5412
        %v5414 = vpop.f32.mrf.mxu0
        %v5415 = vadd.f32 %v4705, %v5414
        %v5416 = vpop.f32.mrf.mxu0
        %v5417 = vadd.f32 %v4701, %v5416
        %v5418 = vpop.f32.mrf.mxu0
        %v5419 = vadd.f32 %v4705, %v5418
        %5420 = vmatprep.mubr.bf16.mxu0 %v4565
        %5421 = vmatmul.mubr.bf16.gmra.mxu0 %v4564
        %v5422 = vpop.f32.mrf.mxu0
        %v5423 = vadd.f32 %v4701, %v5422
        %v5424 = vpop.f32.mrf.mxu0
        %v5425 = vadd.f32 %v4705, %v5424
        %v5426 = vpop.f32.mrf.mxu0
        %v5427 = vadd.f32 %v4701, %v5426
        %v5428 = vpop.f32.mrf.mxu0
        %v5429 = vadd.f32 %v4705, %v5428
        %5430 = vdwg.mxu0
        %5431 = vmatprep.subr.bf16.mxu0 %v5195
        %5432 = vmatpush1.bf16.msra.mxu0 %v5194
        %5433 = vmatprep.subr.bf16.mxu0 %v5191
        %5434 = vmatpush1.bf16.msra.mxu0 %v5190
        %5435 = vmatprep.subr.bf16.mxu0 %v5187
        %5436 = vmatpush1.bf16.msra.mxu0 %v5186
        %5437 = vmatprep.subr.bf16.mxu0 %v5183
        %5438 = vmatpush1.bf16.msra.mxu0 %v5182
        %5439 = vmatprep.subr.bf16.mxu0 %v5179
        %5440 = vmatpush1.bf16.msra.mxu0 %v5178
        %5441 = vmatprep.subr.bf16.mxu0 %v5175
        %5442 = vmatpush1.bf16.msra.mxu0 %v5174
        %5443 = vmatprep.subr.bf16.mxu0 %v5171
        %5444 = vmatpush1.bf16.msra.mxu0 %v5170
        %5445 = vmatprep.subr.bf16.mxu0 %v5167
        %5446 = vmatpush1.bf16.msra.mxu0 %v5166
        %5447 = vmatprep.subr.bf16.mxu0 %v5227
        %5448 = vmatpush2.bf16.msra.mxu0 %v5226
        %5449 = vmatprep.subr.bf16.mxu0 %v5223
        %5450 = vmatpush2.bf16.msra.mxu0 %v5222
        %5451 = vmatprep.subr.bf16.mxu0 %v5219
        %5452 = vmatpush2.bf16.msra.mxu0 %v5218
        %5453 = vmatprep.subr.bf16.mxu0 %v5215
        %5454 = vmatpush2.bf16.msra.mxu0 %v5214
        %5455 = vmatprep.subr.bf16.mxu0 %v5211
        %5456 = vmatpush2.bf16.msra.mxu0 %v5210
        %5457 = vmatprep.subr.bf16.mxu0 %v5207
        %5458 = vmatpush2.bf16.msra.mxu0 %v5206
        %5459 = vmatprep.subr.bf16.mxu0 %v5203
        %5460 = vmatpush2.bf16.msra.mxu0 %v5202
        %5461 = vmatprep.subr.bf16.mxu0 %v5199
        %5462 = vmatpush2.bf16.msra.mxu0 %v5198
        %5463 = vmatprep.mubr.bf16.mxu0 %v4555
        %5464 = vmatmul.mubr.bf16.gmra.mxu0 %v4554
        %v5465 = vpop.f32.mrf.mxu0
        %v5466 = vadd.f32 %v5393, %v5465
        %v5467 = vpop.f32.mrf.mxu0
        %v5468 = vadd.f32 %v5395, %v5467
        %v5469 = vpop.f32.mrf.mxu0
        %v5470 = vadd.f32 %v5397, %v5469
        %v5471 = vpop.f32.mrf.mxu0
        %v5472 = vadd.f32 %v5399, %v5471
        %5473 = vmatprep.mubr.bf16.mxu0 %v4559
        %5474 = vmatmul.mubr.bf16.gmra.mxu0 %v4558
        %v5475 = vpop.f32.mrf.mxu0
        %v5476 = vadd.f32 %v5403, %v5475
        %v5477 = vpop.f32.mrf.mxu0
        %v5478 = vadd.f32 %v5405, %v5477
        %v5479 = vpop.f32.mrf.mxu0
        %v5480 = vadd.f32 %v5407, %v5479
        %v5481 = vpop.f32.mrf.mxu0
        %v5482 = vadd.f32 %v5409, %v5481
        %5483 = vmatprep.mubr.bf16.mxu0 %v4563
        %5484 = vmatmul.mubr.bf16.gmra.mxu0 %v4562
        %v5485 = vpop.f32.mrf.mxu0
        %v5486 = vadd.f32 %v5413, %v5485
        %v5487 = vpop.f32.mrf.mxu0
        %v5488 = vadd.f32 %v5415, %v5487
        %v5489 = vpop.f32.mrf.mxu0
        %v5490 = vadd.f32 %v5417, %v5489
        %v5491 = vpop.f32.mrf.mxu0
        %v5492 = vadd.f32 %v5419, %v5491
        %5493 = vmatprep.mubr.bf16.mxu0 %v4567
        %5494 = vmatmul.mubr.bf16.gmra.mxu0 %v4566
        %v5495 = vpop.f32.mrf.mxu0
        %v5496 = vadd.f32 %v5423, %v5495
        %v5497 = vpop.f32.mrf.mxu0
        %v5498 = vadd.f32 %v5425, %v5497
        %v5499 = vpop.f32.mrf.mxu0
        %v5500 = vadd.f32 %v5427, %v5499
        %v5501 = vpop.f32.mrf.mxu0
        %v5502 = vadd.f32 %v5429, %v5501
        %5503 = vdwg.mxu0
        %5504 = vmatprep.subr.bf16.mxu0 %v5133
        %5505 = vmatpush1.bf16.msra.mxu0 %v5132
        %5506 = vmatprep.subr.bf16.mxu0 %v5129
        %5507 = vmatpush1.bf16.msra.mxu0 %v5128
        %5508 = vmatprep.subr.bf16.mxu0 %v5125
        %5509 = vmatpush1.bf16.msra.mxu0 %v5124
        %5510 = vmatprep.subr.bf16.mxu0 %v5121
        %5511 = vmatpush1.bf16.msra.mxu0 %v5120
        %5512 = vmatprep.subr.bf16.mxu0 %v5117
        %5513 = vmatpush1.bf16.msra.mxu0 %v5116
        %5514 = vmatprep.subr.bf16.mxu0 %v5113
        %5515 = vmatpush1.bf16.msra.mxu0 %v5112
        %5516 = vmatprep.subr.bf16.mxu0 %v5109
        %5517 = vmatpush1.bf16.msra.mxu0 %v5108
        %5518 = vmatprep.subr.bf16.mxu0 %v5105
        %5519 = vmatpush1.bf16.msra.mxu0 %v5104
        %5520 = vmatprep.subr.bf16.mxu0 %v5165
        %5521 = vmatpush2.bf16.msra.mxu0 %v5164
        %5522 = vmatprep.subr.bf16.mxu0 %v5161
        %5523 = vmatpush2.bf16.msra.mxu0 %v5160
        %5524 = vmatprep.subr.bf16.mxu0 %v5157
        %5525 = vmatpush2.bf16.msra.mxu0 %v5156
        %5526 = vmatprep.subr.bf16.mxu0 %v5153
        %5527 = vmatpush2.bf16.msra.mxu0 %v5152
        %5528 = vmatprep.subr.bf16.mxu0 %v5149
        %5529 = vmatpush2.bf16.msra.mxu0 %v5148
        %5530 = vmatprep.subr.bf16.mxu0 %v5145
        %5531 = vmatpush2.bf16.msra.mxu0 %v5144
        %5532 = vmatprep.subr.bf16.mxu0 %v5141
        %5533 = vmatpush2.bf16.msra.mxu0 %v5140
        %5534 = vmatprep.subr.bf16.mxu0 %v5137
        %5535 = vmatpush2.bf16.msra.mxu0 %v5136
        %5536 = vmatprep.mubr.bf16.mxu0 %v4553
        %5537 = vmatmul.mubr.bf16.gmra.mxu0 %v4552
        %v5538 = vpop.f32.mrf.mxu0
        %v5539 = vadd.f32 %v4709, %v5538
        %v5540 = vpop.f32.mrf.mxu0
        %v5541 = vadd.f32 %v4713, %v5540
        %v5542 = vpop.f32.mrf.mxu0
        %v5543 = vadd.f32 %v4709, %v5542
        %v5544 = vpop.f32.mrf.mxu0
        %v5545 = vadd.f32 %v4713, %v5544
        %5546 = vmatprep.mubr.bf16.mxu0 %v4557
        %5547 = vmatmul.mubr.bf16.gmra.mxu0 %v4556
        %v5548 = vpop.f32.mrf.mxu0
        %v5549 = vadd.f32 %v4709, %v5548
        %v5550 = vpop.f32.mrf.mxu0
        %v5551 = vadd.f32 %v4713, %v5550
        %v5552 = vpop.f32.mrf.mxu0
        %v5553 = vadd.f32 %v4709, %v5552
        %v5554 = vpop.f32.mrf.mxu0
        %v5555 = vadd.f32 %v4713, %v5554
        %5556 = vmatprep.mubr.bf16.mxu0 %v4561
        %5557 = vmatmul.mubr.bf16.gmra.mxu0 %v4560
        %v5558 = vpop.f32.mrf.mxu0
        %v5559 = vadd.f32 %v4709, %v5558
        %v5560 = vpop.f32.mrf.mxu0
        %v5561 = vadd.f32 %v4713, %v5560
        %v5562 = vpop.f32.mrf.mxu0
        %v5563 = vadd.f32 %v4709, %v5562
        %v5564 = vpop.f32.mrf.mxu0
        %v5565 = vadd.f32 %v4713, %v5564
        %5566 = vmatprep.mubr.bf16.mxu0 %v4565
        %5567 = vmatmul.mubr.bf16.gmra.mxu0 %v4564
        %v5568 = vpop.f32.mrf.mxu0
        %v5569 = vadd.f32 %v4709, %v5568
        %v5570 = vpop.f32.mrf.mxu0
        %v5571 = vadd.f32 %v4713, %v5570
        %v5572 = vpop.f32.mrf.mxu0
        %v5573 = vadd.f32 %v4709, %v5572
        %v5574 = vpop.f32.mrf.mxu0
        %v5575 = vadd.f32 %v4713, %v5574
        %5576 = vdwg.mxu0
        %5577 = vmatprep.subr.bf16.mxu0 %v5197
        %5578 = vmatpush1.bf16.msra.mxu0 %v5196
        %5579 = vmatprep.subr.bf16.mxu0 %v5193
        %5580 = vmatpush1.bf16.msra.mxu0 %v5192
        %5581 = vmatprep.subr.bf16.mxu0 %v5189
        %5582 = vmatpush1.bf16.msra.mxu0 %v5188
        %5583 = vmatprep.subr.bf16.mxu0 %v5185
        %5584 = vmatpush1.bf16.msra.mxu0 %v5184
        %5585 = vmatprep.subr.bf16.mxu0 %v5181
        %5586 = vmatpush1.bf16.msra.mxu0 %v5180
        %5587 = vmatprep.subr.bf16.mxu0 %v5177
        %5588 = vmatpush1.bf16.msra.mxu0 %v5176
        %5589 = vmatprep.subr.bf16.mxu0 %v5173
        %5590 = vmatpush1.bf16.msra.mxu0 %v5172
        %5591 = vmatprep.subr.bf16.mxu0 %v5169
        %5592 = vmatpush1.bf16.msra.mxu0 %v5168
        %5593 = vmatprep.subr.bf16.mxu0 %v5229
        %5594 = vmatpush2.bf16.msra.mxu0 %v5228
        %5595 = vmatprep.subr.bf16.mxu0 %v5225
        %5596 = vmatpush2.bf16.msra.mxu0 %v5224
        %5597 = vmatprep.subr.bf16.mxu0 %v5221
        %5598 = vmatpush2.bf16.msra.mxu0 %v5220
        %5599 = vmatprep.subr.bf16.mxu0 %v5217
        %5600 = vmatpush2.bf16.msra.mxu0 %v5216
        %5601 = vmatprep.subr.bf16.mxu0 %v5213
        %5602 = vmatpush2.bf16.msra.mxu0 %v5212
        %5603 = vmatprep.subr.bf16.mxu0 %v5209
        %5604 = vmatpush2.bf16.msra.mxu0 %v5208
        %5605 = vmatprep.subr.bf16.mxu0 %v5205
        %5606 = vmatpush2.bf16.msra.mxu0 %v5204
        %5607 = vmatprep.subr.bf16.mxu0 %v5201
        %5608 = vmatpush2.bf16.msra.mxu0 %v5200
        %5609 = vmatprep.mubr.bf16.mxu0 %v4555
        %5610 = vmatmul.mubr.bf16.gmra.mxu0 %v4554
        %v5611 = vpop.f32.mrf.mxu0
        %v5612 = vadd.f32 %v5539, %v5611
        %v5613 = vpop.f32.mrf.mxu0
        %v5614 = vadd.f32 %v5541, %v5613
        %v5615 = vpop.f32.mrf.mxu0
        %v5616 = vadd.f32 %v5543, %v5615
        %v5617 = vpop.f32.mrf.mxu0
        %v5618 = vadd.f32 %v5545, %v5617
        %5619 = vmatprep.mubr.bf16.mxu0 %v4559
        %5620 = vmatmul.mubr.bf16.gmra.mxu0 %v4558
        %v5621 = vpop.f32.mrf.mxu0
        %v5622 = vadd.f32 %v5549, %v5621
        %v5623 = vpop.f32.mrf.mxu0
        %v5624 = vadd.f32 %v5551, %v5623
        %v5625 = vpop.f32.mrf.mxu0
        %v5626 = vadd.f32 %v5553, %v5625
        %v5627 = vpop.f32.mrf.mxu0
        %v5628 = vadd.f32 %v5555, %v5627
        %5629 = vmatprep.mubr.bf16.mxu0 %v4563
        %5630 = vmatmul.mubr.bf16.gmra.mxu0 %v4562
        %v5631 = vpop.f32.mrf.mxu0
        %v5632 = vadd.f32 %v5559, %v5631
        %v5633 = vpop.f32.mrf.mxu0
        %v5634 = vadd.f32 %v5561, %v5633
        %v5635 = vpop.f32.mrf.mxu0
        %v5636 = vadd.f32 %v5563, %v5635
        %v5637 = vpop.f32.mrf.mxu0
        %v5638 = vadd.f32 %v5565, %v5637
        %5639 = vmatprep.mubr.bf16.mxu0 %v4567
        %5640 = vmatmul.mubr.bf16.gmra.mxu0 %v4566
        %v5641 = vpop.f32.mrf.mxu0
        %v5642 = vadd.f32 %v5569, %v5641
        %v5643 = vpop.f32.mrf.mxu0
        %v5644 = vadd.f32 %v5571, %v5643
        %v5645 = vpop.f32.mrf.mxu0
        %v5646 = vadd.f32 %v5573, %v5645
        %v5647 = vpop.f32.mrf.mxu0
        %v5648 = vadd.f32 %v5575, %v5647
        %5649 = vdwg.mxu0
        %5650 = vst [vmem:[%s257] sm:$0xff] %v5466
        %5651 = vst [vmem:[%s257 + $0x8] sm:$0xff] %v5468
        %5652 = vst [vmem:[%s257 + $0x10] sm:$0xff] %v5612
        %5653 = vst [vmem:[%s257 + $0x18] sm:$0xff] %v5614
        %5654 = vst [vmem:[%s257 + $0x20] sm:$0xff] %v5470
        %5655 = vst [vmem:[%s257 + $0x28] sm:$0xff] %v5472
        %5656 = vst [vmem:[%s257 + $0x30] sm:$0xff] %v5616
        %5657 = vst [vmem:[%s257 + $0x38] sm:$0xff] %v5618
        %5658 = vst [vmem:[%s257 + $0x40] sm:$0xff] %v5476
        %5659 = vst [vmem:[%s257 + $0x48] sm:$0xff] %v5478
        %5660 = vst [vmem:[%s257 + $0x50] sm:$0xff] %v5622
        %5661 = vst [vmem:[%s257 + $0x58] sm:$0xff] %v5624
        %5662 = vst [vmem:[%s257 + $0x60] sm:$0xff] %v5480
        %5663 = vst [vmem:[%s257 + $0x68] sm:$0xff] %v5482
        %5664 = vst [vmem:[%s257 + $0x70] sm:$0xff] %v5626
        %5665 = vst [vmem:[%s257 + $0x78] sm:$0xff] %v5628
        %5666 = vst [vmem:[%s257 + $0x80] sm:$0xff] %v5486
        %5667 = vst [vmem:[%s257 + $0x88] sm:$0xff] %v5488
        %5668 = vst [vmem:[%s257 + $0x90] sm:$0xff] %v5632
        %5669 = vst [vmem:[%s257 + $0x98] sm:$0xff] %v5634
        %5670 = vst [vmem:[%s257 + $0xa0] sm:$0xff] %v5490
        %5671 = vst [vmem:[%s257 + $0xa8] sm:$0xff] %v5492
        %5672 = vst [vmem:[%s257 + $0xb0] sm:$0xff] %v5636
        %5673 = vst [vmem:[%s257 + $0xb8] sm:$0xff] %v5638
        %5674 = vst [vmem:[%s257 + $0xc0] sm:$0xff] %v5496
        %5675 = vst [vmem:[%s257 + $0xc8] sm:$0xff] %v5498
        %5676 = vst [vmem:[%s257 + $0xd0] sm:$0xff] %v5642
        %5677 = vst [vmem:[%s257 + $0xd8] sm:$0xff] %v5644
        %5678 = vst [vmem:[%s257 + $0xe0] sm:$0xff] %v5500
        %5679 = vst [vmem:[%s257 + $0xe8] sm:$0xff] %v5502
        %5680 = vst [vmem:[%s257 + $0xf0] sm:$0xff] %v5646
        %5681 = vst [vmem:[%s257 + $0xf8] sm:$0xff] %v5648
        %s5682 = sand.u32 %s120, 1
        %s5683 = scalar_lea.sflag [#allocation4], %s5682
        %s5684 = sand.u32 %s120, 1
        %s5685 = smul.addr %s5684, 256
        %s5686 = scalar_lea.vmem [#allocation10], %s5685
        // Predicated region
        $region53: #{tpu_custom_call.1} parent=35 // pred_check
          %p5687 = pneg %p130
        $region54: #{tpu_custom_call.1} parent=35 // pred_check_branch
          %5689 = sbr.rel (%p5687) target = $region56
        $region55: #{tpu_custom_call.1} parent=35 // pred_region
          %s5691 = ssub.s32 4096, 4096
          %5692 = vsyncadd %s5683, %s5691
          %s5693 = smul.addr %s23, 32
          %s5694 = smul.addr %s5693, 128
          %s5695 = scalar_lea.hbm %s4, %s5694
          %s5696 = sshll.u32 %s5686, 4
          %s5697 = int_to_ptr.vmem [resolvable:$true] %s5696
          %5702 = dma.vmem_to_hbm [thread:$0]  %s5697, 4096, %s5695, %s5683, 512, 512, 32
        $region56: #{tpu_custom_call.1} parent=35 // pred_fallthru
          _
      $region36: #{tpu_custom_call.1} parent=5 // pred_fallthru
        _
      %p5703 = scmp.le.s32.totalorder 2, %s18
      // Predicated region
      $region57: #{tpu_custom_call.1} parent=5 // pred_check
        %p5704 = pneg %p5703
      $region58: #{tpu_custom_call.1} parent=5 // pred_check_branch
        %5706 = sbr.rel (%p5704) target = $region60
      $region59: #{tpu_custom_call.1} parent=5 // pred_region
        %s5707 = ssub.s32 %s18, 2
        // Predicated region
        $region61: #{tpu_custom_call.1} parent=59 // pred_check
          %p5708 = pneg %p136
        $region62: #{tpu_custom_call.1} parent=59 // pred_check_branch
          %5710 = sbr.rel (%p5708) target = $region64
        $region63: #{tpu_custom_call.1} parent=59 // pred_region
          %s5711 = sand.u32 %s121, 1
          %s5712 = scalar_lea.sflag [#allocation4], %s5711
          %s5713 = sand.u32 %s121, 1
          %s5714 = smul.addr %s5713, 256
          %s5715 = scalar_lea.vmem [#allocation10], %s5714
          %5716 = dma.done %s5712, 4096
        $region64: #{tpu_custom_call.1} parent=59 // pred_fallthru
          _
      $region60: #{tpu_custom_call.1} parent=5 // pred_fallthru
        _
    $region6: #{tpu_custom_call.1} parent=1 // loop_footer
      %s22 = sadd.s32 1, %s18
    $region7: #{tpu_custom_call.1} parent=1 // loop_footer_branch
      %17 = sbr.rel target = $region3
    $region8: #{tpu_custom_call.1} parent=1 // loop_exit
      _
    %5717 = vsyncpa [#allocation3], 1
    %s5718 = scalar_lea.sflag [#allocation3], 1
    %5719 = vsyncpa %s5718, 1
    %5720 = vsyncpa [#allocation6], 1
    %5721 = vsyncpa [#allocation9], 1
    %5722 = vsyncpa [#allocation4], 1
    %s5723 = scalar_lea.sflag [#allocation4], 1
    %5724 = vsyncpa %s5723, 1

</llo_original>
